<compile_context>
chip_gen: v5e
topology: v5e:2x2
jax: 0.10.0
libtpu: 0.0.40
codegen_flags: <defaults>
</compile_context>

<pallas_src>
import functools
import math

import jax
import jax.numpy as jnp
from jax import lax
from jax.experimental import pallas as pl
from jax.experimental.pallas import tpu as pltpu


# ----------------------------------------------------------------------------
# small helpers
# ----------------------------------------------------------------------------
def _round_up(x, m):
    return (x + m - 1) // m * m


def _pad2(a, r, c):
    R, C = a.shape
    if R == r and C == c:
        return a
    return jnp.pad(a, ((0, r - R), (0, c - C)))


_VMEM_LIMIT = 64 * 1024 * 1024  # safe on v5e/v6e (128 MiB) and v7x (64 MiB)
_LN_EPS = 1e-12                 # hyunwoongko LayerNorm default


# ----------------------------------------------------------------------------
# Pallas kernels
# ----------------------------------------------------------------------------
def _linear_kernel(x_ref, w_ref, b_ref, o_ref, acc_ref, *, activation):
    k = pl.program_id(2)

    @pl.when(k == 0)
    def _():
        acc_ref[...] = jnp.zeros_like(acc_ref)

    acc_ref[...] += jnp.dot(x_ref[...], w_ref[...],
                            preferred_element_type=jnp.float32)

    @pl.when(k == pl.num_programs(2) - 1)
    def _():
        y = acc_ref[...] + b_ref[...]
        if activation == "relu":
            y = jnp.maximum(y, 0.0)
        o_ref[...] = y.astype(o_ref.dtype)


def linear_pallas(x, w, b, activation=None, tm=256, tn=256, tk=512):
    """x: [M, K] @ w: [K, N] + b: [N] -> [M, N], tiled over M, N and K."""
    M, K = x.shape
    _, N = w.shape

    tm = min(tm, _round_up(M, 8))
    tn = min(tn, _round_up(N, 128))
    tk = min(tk, _round_up(K, 128))
    Mp, Np, Kp = _round_up(M, tm), _round_up(N, tn), _round_up(K, tk)

    xp = _pad2(x, Mp, Kp)
    wp = _pad2(w, Kp, Np)
    bp = jnp.pad(b, (0, Np - N)).reshape(1, Np)

    kernel = functools.partial(_linear_kernel, activation=activation)
    out = pl.pallas_call(
        kernel,
        out_shape=jax.ShapeDtypeStruct((Mp, Np), x.dtype),
        grid_spec=pltpu.PrefetchScalarGridSpec(
            num_scalar_prefetch=0,
            grid=(Mp // tm, Np // tn, Kp // tk),
            in_specs=[
                pl.BlockSpec((tm, tk), lambda i, j, k: (i, k)),
                pl.BlockSpec((tk, tn), lambda i, j, k: (k, j)),
                pl.BlockSpec((1, tn), lambda i, j, k: (0, j)),
            ],
            out_specs=pl.BlockSpec((tm, tn), lambda i, j, k: (i, j)),
            scratch_shapes=[pltpu.VMEM((tm, tn), jnp.float32)],
        ),
        compiler_params=pltpu.CompilerParams(
            dimension_semantics=("parallel", "parallel", "arbitrary"),
            vmem_limit_bytes=_VMEM_LIMIT,
        ),
    )(xp, wp, bp)
    return out[:M, :N]


def _linear_res_ln_kernel(x_ref, w_ref, b_ref, r_ref, g_ref, be_ref,
                          o_ref, acc_ref, *, eps):
    """LayerNorm(x @ W + b + residual) * gamma + beta, K is a reduction axis."""
    k = pl.program_id(1)

    @pl.when(k == 0)
    def _():
        acc_ref[...] = jnp.zeros_like(acc_ref)

    acc_ref[...] += jnp.dot(x_ref[...], w_ref[...],
                            preferred_element_type=jnp.float32)

    @pl.when(k == pl.num_programs(1) - 1)
    def _():
        y = acc_ref[...] + b_ref[...] + r_ref[...]
        mean = jnp.mean(y, axis=-1, keepdims=True)
        var = jnp.mean((y - mean) ** 2, axis=-1, keepdims=True)  # unbiased=False
        yn = (y - mean) * lax.rsqrt(var + eps)
        o_ref[...] = (g_ref[...] * yn + be_ref[...]).astype(o_ref.dtype)


def linear_residual_layernorm_pallas(x, w, b, res, gamma, beta,
                                     eps=_LN_EPS, tm=256, tk=512):
    """Fused output-projection + residual + LayerNorm.
    x: [M, K], w: [K, D], res: [M, D] -> [M, D] (D kept as a single lane block)."""
    M, K = x.shape
    D = w.shape[1]

    tm = min(tm, _round_up(M, 8))
    tk = min(tk, _round_up(K, 128))
    Mp, Kp = _round_up(M, tm), _round_up(K, tk)

    xp = _pad2(x, Mp, Kp)
    wp = _pad2(w, Kp, D)
    rp = _pad2(res, Mp, D)
    b2 = b.reshape(1, D)
    g2 = gamma.reshape(1, D)
    be2 = beta.reshape(1, D)

    out = pl.pallas_call(
        functools.partial(_linear_res_ln_kernel, eps=eps),
        out_shape=jax.ShapeDtypeStruct((Mp, D), x.dtype),
        grid_spec=pltpu.PrefetchScalarGridSpec(
            num_scalar_prefetch=0,
            grid=(Mp // tm, Kp // tk),
            in_specs=[
                pl.BlockSpec((tm, tk), lambda i, k: (i, k)),
                pl.BlockSpec((tk, D), lambda i, k: (k, 0)),
                pl.BlockSpec((1, D), lambda i, k: (0, 0)),
                pl.BlockSpec((tm, D), lambda i, k: (i, 0)),
                pl.BlockSpec((1, D), lambda i, k: (0, 0)),
                pl.BlockSpec((1, D), lambda i, k: (0, 0)),
            ],
            out_specs=pl.BlockSpec((tm, D), lambda i, k: (i, 0)),
            scratch_shapes=[pltpu.VMEM((tm, D), jnp.float32)],
        ),
        compiler_params=pltpu.CompilerParams(
            dimension_semantics=("parallel", "arbitrary"),
            vmem_limit_bytes=_VMEM_LIMIT,
        ),
    )(xp, wp, b2, rp, g2, be2)
    return out[:M]


def _ffn_res_ln_kernel(x_ref, w1_ref, b1_ref, w2_ref, b2_ref, r_ref, g_ref,
                       be_ref, o_ref, acc_ref, *, eps):
    """LayerNorm(relu(x@W1+b1)@W2 + b2 + residual); hidden dim is a reduction axis."""
    j = pl.program_id(1)

    @pl.when(j == 0)
    def _():
        acc_ref[...] = jnp.zeros_like(acc_ref)

    h = jnp.dot(x_ref[...], w1_ref[...], preferred_element_type=jnp.float32)
    h = jnp.maximum(h + b1_ref[...], 0.0)
    # TODO(synk): dropout between FFN layers omitted (eval-mode identity)
    acc_ref[...] += jnp.dot(h, w2_ref[...], preferred_element_type=jnp.float32)

    @pl.when(j == pl.num_programs(1) - 1)
    def _():
        y = acc_ref[...] + b2_ref[...] + r_ref[...]
        mean = jnp.mean(y, axis=-1, keepdims=True)
        var = jnp.mean((y - mean) ** 2, axis=-1, keepdims=True)
        yn = (y - mean) * lax.rsqrt(var + eps)
        o_ref[...] = (g_ref[...] * yn + be_ref[...]).astype(o_ref.dtype)


def ffn_residual_layernorm_pallas(x2d, w1, b1, w2, b2, res, gamma, beta,
                                  eps=_LN_EPS, tm=256, th=512):
    """Fused position-wise FFN + residual + LayerNorm.  x2d: [M, D] -> [M, D]."""
    M, D = x2d.shape
    H = w1.shape[1]

    tm = min(tm, _round_up(M, 8))
    th = min(th, _round_up(H, 128))
    Mp, Hp = _round_up(M, tm), _round_up(H, th)

    xp = _pad2(x2d, Mp, D)
    w1p = _pad2(w1, D, Hp)
    b1p = jnp.pad(b1, (0, Hp - H)).reshape(1, Hp)
    w2p = _pad2(w2, Hp, D)
    b2p = b2.reshape(1, D)
    rp = _pad2(res, Mp, D)
    g2 = gamma.reshape(1, D)
    be2 = beta.reshape(1, D)

    out = pl.pallas_call(
        functools.partial(_ffn_res_ln_kernel, eps=eps),
        out_shape=jax.ShapeDtypeStruct((Mp, D), x2d.dtype),
        grid_spec=pltpu.PrefetchScalarGridSpec(
            num_scalar_prefetch=0,
            grid=(Mp // tm, Hp // th),
            in_specs=[
                pl.BlockSpec((tm, D), lambda i, j: (i, 0)),
                pl.BlockSpec((D, th), lambda i, j: (0, j)),
                pl.BlockSpec((1, th), lambda i, j: (0, j)),
                pl.BlockSpec((th, D), lambda i, j: (j, 0)),
                pl.BlockSpec((1, D), lambda i, j: (0, 0)),
                pl.BlockSpec((tm, D), lambda i, j: (i, 0)),
                pl.BlockSpec((1, D), lambda i, j: (0, 0)),
                pl.BlockSpec((1, D), lambda i, j: (0, 0)),
            ],
            out_specs=pl.BlockSpec((tm, D), lambda i, j: (i, 0)),
            scratch_shapes=[pltpu.VMEM((tm, D), jnp.float32)],
        ),
        compiler_params=pltpu.CompilerParams(
            dimension_semantics=("parallel", "arbitrary"),
            vmem_limit_bytes=_VMEM_LIMIT,
        ),
    )(xp, w1p, b1p, w2p, b2p, rp, g2, be2)
    return out[:M]


def _mha_kernel(q_ref, k_ref, v_ref, qv_ref, kv_ref, o_ref, *,
                n_head, scale, causal):
    """All heads of one batch element.  Output is a lane-dense [Lq, D] slab."""
    q = q_ref[0]            # [Lq, D]
    k = k_ref[0]            # [Lk, D]
    v = v_ref[0]            # [Lk, D]
    q_valid = qv_ref[0]     # [Lq, 1]
    k_valid = kv_ref[0]     # [1, Lk]

    Lq, D = q.shape
    Lk = k.shape[0]
    dh = D // n_head

    keep = (q_valid > 0.0) & (k_valid > 0.0)                  # [Lq, Lk]
    if causal:
        row = lax.broadcasted_iota(jnp.int32, (Lq, Lk), 0)
        col = lax.broadcasted_iota(jnp.int32, (Lq, Lk), 1)
        keep = keep & (col <= row)

    outs = []
    for h in range(n_head):                                   # small static loop
        qh = q[:, h * dh:(h + 1) * dh]
        kh = k[:, h * dh:(h + 1) * dh]
        vh = v[:, h * dh:(h + 1) * dh]
        # contract last dims directly (no explicit transpose of k)
        s = lax.dot_general(qh, kh, (((1,), (1,)), ((), ())),
                            preferred_element_type=jnp.float32) * scale
        s = jnp.where(keep, s, -10000.0)                      # masked_fill(mask==0, -1e4)
        s = s - jnp.max(s, axis=-1, keepdims=True)
        p = jnp.exp(s)
        p = p * pl.reciprocal(jnp.sum(p, axis=-1, keepdims=True), approx=True)
        outs.append(jnp.dot(p, vh, preferred_element_type=jnp.float32))

    o_ref[0] = jnp.concatenate(outs, axis=-1).astype(o_ref.dtype)


def attention_pallas(q, k, v, q_valid, k_valid, n_head, causal):
    """q: [B,Lq,D], k/v: [B,Lk,D], q_valid: [B,Lq], k_valid: [B,Lk] (1=keep)."""
    B, Lq, D = q.shape
    Lk = k.shape[1]
    scale = 1.0 / math.sqrt(D // n_head)

    qv = q_valid.astype(jnp.float32).reshape(B, Lq, 1)
    kv = k_valid.astype(jnp.float32).reshape(B, 1, Lk)

    kernel = functools.partial(_mha_kernel, n_head=n_head, scale=scale,
                               causal=causal)
    return pl.pallas_call(
        kernel,
        out_shape=jax.ShapeDtypeStruct((B, Lq, D), q.dtype),
        grid=(B,),
        in_specs=[
            pl.BlockSpec((1, Lq, D), lambda b: (b, 0, 0)),
            pl.BlockSpec((1, Lk, D), lambda b: (b, 0, 0)),
            pl.BlockSpec((1, Lk, D), lambda b: (b, 0, 0)),
            pl.BlockSpec((1, Lq, 1), lambda b: (b, 0, 0)),
            pl.BlockSpec((1, 1, Lk), lambda b: (b, 0, 0)),
        ],
        out_specs=pl.BlockSpec((1, Lq, D), lambda b: (b, 0, 0)),
        compiler_params=pltpu.CompilerParams(
            dimension_semantics=("parallel",),
            vmem_limit_bytes=_VMEM_LIMIT,
        ),
    )(q, k, v, qv, kv)


# ----------------------------------------------------------------------------
# Model building blocks (glue around the kernels)
# ----------------------------------------------------------------------------
def embed(tok_table, pos_table, ids):
    # token embedding gather + sinusoidal positional encoding (plain JAX glue)
    B, L = ids.shape
    tok = jnp.take(tok_table, ids, axis=0)          # [B, L, D]
    pos = pos_table[:L][None, :, :]                 # [1, L, D]
    return tok + pos                                # dropout = identity (eval)


def encoder_layer(p, x, src_valid, ones_s, n_head):
    B, L, D = x.shape
    x2d = x.reshape(B * L, D)

    # --- self-attention sublayer (QKV fused) ---
    qkv = linear_pallas(x2d, p["attn"]["w_qkv"], p["attn"]["b_qkv"])
    qkv = qkv.reshape(B, L, 3 * D)
    q, k, v = qkv[..., :D], qkv[..., D:2 * D], qkv[..., 2 * D:]
    o = attention_pallas(q, k, v, ones_s, src_valid, n_head, causal=False)
    # fused: Wo projection + residual + LayerNorm
    x2d = linear_residual_layernorm_pallas(
        o.reshape(B * L, D), p["attn"]["wo"], p["attn"]["bo"], x2d,
        p["ln1"]["gamma"], p["ln1"]["beta"])

    # --- FFN sublayer (fused with residual + LayerNorm) ---
    x2d = ffn_residual_layernorm_pallas(
        x2d, p["ffn"]["w1"], p["ffn"]["b1"], p["ffn"]["w2"], p["ffn"]["b2"],
        x2d, p["ln2"]["gamma"], p["ln2"]["beta"])
    return x2d.reshape(B, L, D)


def decoder_layer(p, dec, enc2d, Lk, trg_valid, ones_t, src_valid, n_head):
    B, Lt, D = dec.shape
    x2d = dec.reshape(B * Lt, D)

    # --- masked self-attention sublayer ---
    qkv = linear_pallas(x2d, p["self_attn"]["w_qkv"], p["self_attn"]["b_qkv"])
    qkv = qkv.reshape(B, Lt, 3 * D)
    q, k, v = qkv[..., :D], qkv[..., D:2 * D], qkv[..., 2 * D:]
    o = attention_pallas(q, k, v, trg_valid, ones_t, n_head, causal=True)
    x2d = linear_residual_layernorm_pallas(
        o.reshape(B * Lt, D), p["self_attn"]["wo"], p["self_attn"]["bo"], x2d,
        p["ln1"]["gamma"], p["ln1"]["beta"])

    # --- encoder-decoder cross-attention sublayer (KV fused) ---
    q = linear_pallas(x2d, p["cross_attn"]["w_q"], p["cross_attn"]["b_q"])
    q = q.reshape(B, Lt, D)
    kv = linear_pallas(enc2d, p["cross_attn"]["w_kv"], p["cross_attn"]["b_kv"])
    kv = kv.reshape(B, Lk, 2 * D)
    k, v = kv[..., :D], kv[..., D:]
    o = attention_pallas(q, k, v, ones_t, src_valid, n_head, causal=False)
    x2d = linear_residual_layernorm_pallas(
        o.reshape(B * Lt, D), p["cross_attn"]["wo"], p["cross_attn"]["bo"], x2d,
        p["ln2"]["gamma"], p["ln2"]["beta"])

    # --- FFN sublayer ---
    x2d = ffn_residual_layernorm_pallas(
        x2d, p["ffn"]["w1"], p["ffn"]["b1"], p["ffn"]["w2"], p["ffn"]["b2"],
        x2d, p["ln3"]["gamma"], p["ln3"]["beta"])
    return x2d.reshape(B, Lt, D)


def transformer_forward(params, cfg, src, trg):
    B, Ls = src.shape
    _, Lt = trg.shape
    n_head = cfg["n_head"]
    D = cfg["d_model"]

    # mask ingredients (same semantics as make_src_mask / make_trg_mask, kept
    # as per-row validity vectors; the full mask is built in-kernel)
    src_valid = (src != cfg["src_pad_idx"]).astype(jnp.float32)   # key mask  [B, Ls]
    trg_valid = (trg != cfg["trg_pad_idx"]).astype(jnp.float32)   # query pad [B, Lt]
    ones_s = jnp.ones_like(src_valid)
    ones_t = jnp.ones_like(trg_valid)

    # encoder
    x = embed(params["enc_tok"], params["pos"], src)
    for lp in params["enc_layers"]:
        x = encoder_layer(lp, x, src_valid, ones_s, n_head)
    enc2d = x.reshape(B * Ls, D)

    # decoder
    y = embed(params["dec_tok"], params["pos"], trg)
    for lp in params["dec_layers"]:
        y = decoder_layer(lp, y, enc2d, Ls, trg_valid, ones_t, src_valid, n_head)

    # final projection to vocabulary (N-tiled inside linear_pallas)
    out = linear_pallas(y.reshape(B * Lt, D), params["out_w"], params["out_b"])
    return out.reshape(B, Lt, cfg["dec_voc_size"])


# ----------------------------------------------------------------------------
# Deterministic parameter initialization
# ----------------------------------------------------------------------------
def _init_dense(key, d_in, d_out):
    w = jax.random.normal(key, (d_in, d_out), jnp.float32) * 0.02
    b = jnp.zeros((d_out,), jnp.float32)
    return w, b


def _init_self_mha(key, d):
    kq, kk, kv, ko = jax.random.split(key, 4)
    wq, bq = _init_dense(kq, d, d)
    wk, bk = _init_dense(kk, d, d)
    wv, bv = _init_dense(kv, d, d)
    wo, bo = _init_dense(ko, d, d)
    return {"w_qkv": jnp.concatenate([wq, wk, wv], axis=1),
            "b_qkv": jnp.concatenate([bq, bk, bv]),
            "wo": wo, "bo": bo}


def _init_cross_mha(key, d):
    kq, kk, kv, ko = jax.random.split(key, 4)
    wq, bq = _init_dense(kq, d, d)
    wk, bk = _init_dense(kk, d, d)
    wv, bv = _init_dense(kv, d, d)
    wo, bo = _init_dense(ko, d, d)
    return {"w_q": wq, "b_q": bq,
            "w_kv": jnp.concatenate([wk, wv], axis=1),
            "b_kv": jnp.concatenate([bk, bv]),
            "wo": wo, "bo": bo}


def _init_ln(d):
    return {"gamma": jnp.ones((d,), jnp.float32),
            "beta": jnp.zeros((d,), jnp.float32)}


def _init_ffn(key, d, ffn_hidden):
    k1, k2 = jax.random.split(key)
    w1, b1 = _init_dense(k1, d, ffn_hidden)
    w2, b2 = _init_dense(k2, ffn_hidden, d)
    return {"w1": w1, "b1": b1, "w2": w2, "b2": b2}


def _sinusoidal_pe(max_len, d_model):
    pos = jnp.arange(max_len, dtype=jnp.float32)[:, None]
    i2 = jnp.arange(0, d_model, 2, dtype=jnp.float32)
    angle = pos / jnp.power(10000.0, i2 / d_model)
    pe = jnp.zeros((max_len, d_model), jnp.float32)
    pe = pe.at[:, 0::2].set(jnp.sin(angle))
    pe = pe.at[:, 1::2].set(jnp.cos(angle))
    return pe


def init_params(key, cfg):
    keys = jax.random.split(key, 8)
    d = cfg["d_model"]

    enc_tok = jax.random.normal(keys[0], (cfg["enc_voc_size"], d), jnp.float32) * 0.02
    enc_tok = enc_tok.at[cfg["src_pad_idx"]].set(0.0)   # nn.Embedding padding_idx
    dec_tok = jax.random.normal(keys[1], (cfg["dec_voc_size"], d), jnp.float32) * 0.02
    dec_tok = dec_tok.at[cfg["trg_pad_idx"]].set(0.0)

    enc_layers = []
    for k in jax.random.split(keys[2], cfg["n_layers"]):
        ka, kf = jax.random.split(k)
        enc_layers.append({"attn": _init_self_mha(ka, d), "ln1": _init_ln(d),
                           "ffn": _init_ffn(kf, d, cfg["ffn_hidden"]),
                           "ln2": _init_ln(d)})

    dec_layers = []
    for k in jax.random.split(keys[3], cfg["n_layers"]):
        ka, kc, kf = jax.random.split(k, 3)
        dec_layers.append({"self_attn": _init_self_mha(ka, d), "ln1": _init_ln(d),
                           "cross_attn": _init_cross_mha(kc, d), "ln2": _init_ln(d),
                           "ffn": _init_ffn(kf, d, cfg["ffn_hidden"]),
                           "ln3": _init_ln(d)})

    out_w, out_b = _init_dense(keys[4], d, cfg["dec_voc_size"])

    return {"enc_tok": enc_tok, "dec_tok": dec_tok,
            "pos": _sinusoidal_pe(cfg["max_len"], d),
            "enc_layers": enc_layers, "dec_layers": dec_layers,
            "out_w": out_w, "out_b": out_b}


# ----------------------------------------------------------------------------
# Main
# ----------------------------------------------------------------------------
if __name__ == "__main__":
    cfg = dict(
        src_pad_idx=1, trg_pad_idx=1, trg_sos_idx=2,
        enc_voc_size=50, dec_voc_size=48,
        d_model=32, n_head=4, max_len=16, ffn_hidden=64, n_layers=2,
        drop_prob=0.1,   # dropout is identity at inference time
    )

    key = jax.random.PRNGKey(0)
    kp, ks, kt = jax.random.split(key, 3)
    params = init_params(kp, cfg)

    B, Ls, Lt = 2, 8, 8
    src = jax.random.randint(ks, (B, Ls), 0, cfg["enc_voc_size"], dtype=jnp.int32)
    trg = jax.random.randint(kt, (B, Lt), 0, cfg["dec_voc_size"], dtype=jnp.int32)
    # put a couple of pad tokens in so the masks matter
    src = src.at[0, -2:].set(cfg["src_pad_idx"])
    trg = trg.at[1, -1:].set(cfg["trg_pad_idx"])

    fwd = jax.jit(functools.partial(transformer_forward, params, cfg))
    out = fwd(src, trg)
    jax.block_until_ready(out)

    assert out.shape == (B, Lt, cfg["dec_voc_size"])
    assert jnp.all(jnp.isfinite(out))
    print("KERNEL_OK")
</pallas_src>

<mosaic_0001>
module attributes {stable_mosaic.version = 11 : i64} {
  func.func @_mha_kernel(%arg0: i32, %arg1: memref<1x8x32xf32, #tpu.memory_space<vmem>>, %arg2: memref<1x8x32xf32, #tpu.memory_space<vmem>>, %arg3: memref<1x8x32xf32, #tpu.memory_space<vmem>>, %arg4: memref<1x8x1xf32, #tpu.memory_space<vmem>>, %arg5: memref<1x1x8xf32, #tpu.memory_space<vmem>>, %arg6: memref<1x8x32xf32, #tpu.memory_space<vmem>>) attributes {dimension_semantics = [#tpu.dimension_semantics<parallel>], iteration_bounds = array<i64: 2>, scalar_prefetch = 0 : i64, scratch_operands = 0 : i64, tpu.core_type = #tpu.core_type<tc>, window_params = [{transform_indices = @transform_0, window_bounds = array<i64: 1, 8, 32>}, {transform_indices = @transform_1, window_bounds = array<i64: 1, 8, 32>}, {transform_indices = @transform_2, window_bounds = array<i64: 1, 8, 32>}, {transform_indices = @transform_3, window_bounds = array<i64: 1, 8, 1>}, {transform_indices = @transform_4, window_bounds = array<i64: 1, 1, 8>}, {transform_indices = @transform_5, window_bounds = array<i64: 1, 8, 32>}]} {
    %c0 = arith.constant 0 : index
    %c0_0 = arith.constant 0 : index
    %c0_1 = arith.constant 0 : index
    %0 = vector.load %arg1[%c0, %c0_0, %c0_1] : memref<1x8x32xf32, #tpu.memory_space<vmem>>, vector<1x8x32xf32>
    %1 = vector.shape_cast %0 : vector<1x8x32xf32> to vector<8x32xf32>
    %c0_2 = arith.constant 0 : index
    %c0_3 = arith.constant 0 : index
    %c0_4 = arith.constant 0 : index
    %2 = vector.load %arg2[%c0_2, %c0_3, %c0_4] : memref<1x8x32xf32, #tpu.memory_space<vmem>>, vector<1x8x32xf32>
    %3 = vector.shape_cast %2 : vector<1x8x32xf32> to vector<8x32xf32>
    %c0_5 = arith.constant 0 : index
    %c0_6 = arith.constant 0 : index
    %c0_7 = arith.constant 0 : index
    %4 = vector.load %arg3[%c0_5, %c0_6, %c0_7] : memref<1x8x32xf32, #tpu.memory_space<vmem>>, vector<1x8x32xf32>
    %5 = vector.shape_cast %4 : vector<1x8x32xf32> to vector<8x32xf32>
    %c0_8 = arith.constant 0 : index
    %c0_9 = arith.constant 0 : index
    %c0_10 = arith.constant 0 : index
    %6 = vector.load %arg4[%c0_8, %c0_9, %c0_10] : memref<1x8x1xf32, #tpu.memory_space<vmem>>, vector<1x8x1xf32>
    %7 = vector.shape_cast %6 : vector<1x8x1xf32> to vector<8x1xf32>
    %c0_11 = arith.constant 0 : index
    %c0_12 = arith.constant 0 : index
    %c0_13 = arith.constant 0 : index
    %8 = vector.load %arg5[%c0_11, %c0_12, %c0_13] : memref<1x1x8xf32, #tpu.memory_space<vmem>>, vector<1x1x8xf32>
    %9 = vector.shape_cast %8 : vector<1x1x8xf32> to vector<1x8xf32>
    %cst = arith.constant 0.000000e+00 : f32
    %10 = vector.broadcast %cst : f32 to vector<8x1xf32>
    %11 = arith.cmpf ogt, %7, %10 : vector<8x1xf32>
    %cst_14 = arith.constant 0.000000e+00 : f32
    %12 = vector.broadcast %cst_14 : f32 to vector<1x8xf32>
    %13 = arith.cmpf ogt, %9, %12 : vector<1x8xf32>
    %14 = vector.broadcast %11 : vector<8x1xi1> to vector<8x8xi1>
    %15 = vector.broadcast %13 : vector<1x8xi1> to vector<8x8xi1>
    %16 = arith.andi %14, %15 : vector<8x8xi1>
    %17 = tpu.iota {dimensions = array<i32: 0>} : vector<8x8xi32>
    %18 = tpu.iota {dimensions = array<i32: 1>} : vector<8x8xi32>
    %19 = arith.cmpi sle, %18, %17 : vector<8x8xi32>
    %20 = arith.andi %16, %19 : vector<8x8xi1>
    %21 = vector.extract_strided_slice %1 {offsets = [0, 0], sizes = [8, 8], strides = [1, 1]} : vector<8x32xf32> to vector<8x8xf32>
    %22 = vector.extract_strided_slice %3 {offsets = [0, 0], sizes = [8, 8], strides = [1, 1]} : vector<8x32xf32> to vector<8x8xf32>
    %23 = vector.extract_strided_slice %5 {offsets = [0, 0], sizes = [8, 8], strides = [1, 1]} : vector<8x32xf32> to vector<8x8xf32>
    %cst_15 = arith.constant dense<0.000000e+00> : vector<8x8xf32>
    %24 = tpu.matmul %21, %22, %cst_15 {dimension_numbers = #tpu.dot_dimension_numbers<[1], [1], [0], [0], [0, 0, 1, 0], [], []>} : vector<8x8xf32>, vector<8x8xf32>, vector<8x8xf32> -> vector<8x8xf32>
    %cst_16 = arith.constant 0.353553385 : f32
    %25 = vector.broadcast %cst_16 : f32 to vector<8x8xf32>
    %26 = arith.mulf %24, %25 : vector<8x8xf32>
    %cst_17 = arith.constant -1.000000e+04 : f32
    %27 = vector.broadcast %cst_17 : f32 to vector<8x8xf32>
    %28 = arith.select %20, %26, %27 : vector<8x8xi1>, vector<8x8xf32>
    %cst_18 = arith.constant dense<0xFF800000> : vector<8xf32>
    %29 = vector.multi_reduction <maximumf>, %28, %cst_18 [1] : vector<8x8xf32> to vector<8xf32>
    %30 = vector.shape_cast %29 : vector<8xf32> to vector<8x1xf32>
    %31 = vector.broadcast %30 : vector<8x1xf32> to vector<8x8xf32>
    %32 = arith.subf %28, %31 : vector<8x8xf32>
    %33 = math.exp %32 : vector<8x8xf32>
    %cst_19 = arith.constant dense<0.000000e+00> : vector<8xf32>
    %34 = vector.multi_reduction <add>, %33, %cst_19 [1] : vector<8x8xf32> to vector<8xf32>
    %35 = vector.shape_cast %34 : vector<8xf32> to vector<8x1xf32>
    %36 = tpu.reciprocal %35 {approx = true} : vector<8x1xf32> -> vector<8x1xf32>
    %37 = vector.broadcast %36 : vector<8x1xf32> to vector<8x8xf32>
    %38 = arith.mulf %33, %37 : vector<8x8xf32>
    %cst_20 = arith.constant dense<0.000000e+00> : vector<8x8xf32>
    %39 = tpu.matmul %38, %23, %cst_20 {dimension_numbers = #tpu.dot_dimension_numbers<[1], [0], [0], [1], [0, 0, 1, 1], [], []>} : vector<8x8xf32>, vector<8x8xf32>, vector<8x8xf32> -> vector<8x8xf32>
    %40 = vector.extract_strided_slice %1 {offsets = [0, 8], sizes = [8, 8], strides = [1, 1]} : vector<8x32xf32> to vector<8x8xf32>
    %41 = vector.extract_strided_slice %3 {offsets = [0, 8], sizes = [8, 8], strides = [1, 1]} : vector<8x32xf32> to vector<8x8xf32>
    %42 = vector.extract_strided_slice %5 {offsets = [0, 8], sizes = [8, 8], strides = [1, 1]} : vector<8x32xf32> to vector<8x8xf32>
    %cst_21 = arith.constant dense<0.000000e+00> : vector<8x8xf32>
    %43 = tpu.matmul %40, %41, %cst_21 {dimension_numbers = #tpu.dot_dimension_numbers<[1], [1], [0], [0], [0, 0, 1, 0], [], []>} : vector<8x8xf32>, vector<8x8xf32>, vector<8x8xf32> -> vector<8x8xf32>
    %cst_22 = arith.constant 0.353553385 : f32
    %44 = vector.broadcast %cst_22 : f32 to vector<8x8xf32>
    %45 = arith.mulf %43, %44 : vector<8x8xf32>
    %cst_23 = arith.constant -1.000000e+04 : f32
    %46 = vector.broadcast %cst_23 : f32 to vector<8x8xf32>
    %47 = arith.select %20, %45, %46 : vector<8x8xi1>, vector<8x8xf32>
    %cst_24 = arith.constant dense<0xFF800000> : vector<8xf32>
    %48 = vector.multi_reduction <maximumf>, %47, %cst_24 [1] : vector<8x8xf32> to vector<8xf32>
    %49 = vector.shape_cast %48 : vector<8xf32> to vector<8x1xf32>
    %50 = vector.broadcast %49 : vector<8x1xf32> to vector<8x8xf32>
    %51 = arith.subf %47, %50 : vector<8x8xf32>
    %52 = math.exp %51 : vector<8x8xf32>
    %cst_25 = arith.constant dense<0.000000e+00> : vector<8xf32>
    %53 = vector.multi_reduction <add>, %52, %cst_25 [1] : vector<8x8xf32> to vector<8xf32>
    %54 = vector.shape_cast %53 : vector<8xf32> to vector<8x1xf32>
    %55 = tpu.reciprocal %54 {approx = true} : vector<8x1xf32> -> vector<8x1xf32>
    %56 = vector.broadcast %55 : vector<8x1xf32> to vector<8x8xf32>
    %57 = arith.mulf %52, %56 : vector<8x8xf32>
    %cst_26 = arith.constant dense<0.000000e+00> : vector<8x8xf32>
    %58 = tpu.matmul %57, %42, %cst_26 {dimension_numbers = #tpu.dot_dimension_numbers<[1], [0], [0], [1], [0, 0, 1, 1], [], []>} : vector<8x8xf32>, vector<8x8xf32>, vector<8x8xf32> -> vector<8x8xf32>
    %59 = vector.extract_strided_slice %1 {offsets = [0, 16], sizes = [8, 8], strides = [1, 1]} : vector<8x32xf32> to vector<8x8xf32>
    %60 = vector.extract_strided_slice %3 {offsets = [0, 16], sizes = [8, 8], strides = [1, 1]} : vector<8x32xf32> to vector<8x8xf32>
    %61 = vector.extract_strided_slice %5 {offsets = [0, 16], sizes = [8, 8], strides = [1, 1]} : vector<8x32xf32> to vector<8x8xf32>
    %cst_27 = arith.constant dense<0.000000e+00> : vector<8x8xf32>
    %62 = tpu.matmul %59, %60, %cst_27 {dimension_numbers = #tpu.dot_dimension_numbers<[1], [1], [0], [0], [0, 0, 1, 0], [], []>} : vector<8x8xf32>, vector<8x8xf32>, vector<8x8xf32> -> vector<8x8xf32>
    %cst_28 = arith.constant 0.353553385 : f32
    %63 = vector.broadcast %cst_28 : f32 to vector<8x8xf32>
    %64 = arith.mulf %62, %63 : vector<8x8xf32>
    %cst_29 = arith.constant -1.000000e+04 : f32
    %65 = vector.broadcast %cst_29 : f32 to vector<8x8xf32>
    %66 = arith.select %20, %64, %65 : vector<8x8xi1>, vector<8x8xf32>
    %cst_30 = arith.constant dense<0xFF800000> : vector<8xf32>
    %67 = vector.multi_reduction <maximumf>, %66, %cst_30 [1] : vector<8x8xf32> to vector<8xf32>
    %68 = vector.shape_cast %67 : vector<8xf32> to vector<8x1xf32>
    %69 = vector.broadcast %68 : vector<8x1xf32> to vector<8x8xf32>
    %70 = arith.subf %66, %69 : vector<8x8xf32>
    %71 = math.exp %70 : vector<8x8xf32>
    %cst_31 = arith.constant dense<0.000000e+00> : vector<8xf32>
    %72 = vector.multi_reduction <add>, %71, %cst_31 [1] : vector<8x8xf32> to vector<8xf32>
    %73 = vector.shape_cast %72 : vector<8xf32> to vector<8x1xf32>
    %74 = tpu.reciprocal %73 {approx = true} : vector<8x1xf32> -> vector<8x1xf32>
    %75 = vector.broadcast %74 : vector<8x1xf32> to vector<8x8xf32>
    %76 = arith.mulf %71, %75 : vector<8x8xf32>
    %cst_32 = arith.constant dense<0.000000e+00> : vector<8x8xf32>
    %77 = tpu.matmul %76, %61, %cst_32 {dimension_numbers = #tpu.dot_dimension_numbers<[1], [0], [0], [1], [0, 0, 1, 1], [], []>} : vector<8x8xf32>, vector<8x8xf32>, vector<8x8xf32> -> vector<8x8xf32>
    %78 = vector.extract_strided_slice %1 {offsets = [0, 24], sizes = [8, 8], strides = [1, 1]} : vector<8x32xf32> to vector<8x8xf32>
    %79 = vector.extract_strided_slice %3 {offsets = [0, 24], sizes = [8, 8], strides = [1, 1]} : vector<8x32xf32> to vector<8x8xf32>
    %80 = vector.extract_strided_slice %5 {offsets = [0, 24], sizes = [8, 8], strides = [1, 1]} : vector<8x32xf32> to vector<8x8xf32>
    %cst_33 = arith.constant dense<0.000000e+00> : vector<8x8xf32>
    %81 = tpu.matmul %78, %79, %cst_33 {dimension_numbers = #tpu.dot_dimension_numbers<[1], [1], [0], [0], [0, 0, 1, 0], [], []>} : vector<8x8xf32>, vector<8x8xf32>, vector<8x8xf32> -> vector<8x8xf32>
    %cst_34 = arith.constant 0.353553385 : f32
    %82 = vector.broadcast %cst_34 : f32 to vector<8x8xf32>
    %83 = arith.mulf %81, %82 : vector<8x8xf32>
    %cst_35 = arith.constant -1.000000e+04 : f32
    %84 = vector.broadcast %cst_35 : f32 to vector<8x8xf32>
    %85 = arith.select %20, %83, %84 : vector<8x8xi1>, vector<8x8xf32>
    %cst_36 = arith.constant dense<0xFF800000> : vector<8xf32>
    %86 = vector.multi_reduction <maximumf>, %85, %cst_36 [1] : vector<8x8xf32> to vector<8xf32>
    %87 = vector.shape_cast %86 : vector<8xf32> to vector<8x1xf32>
    %88 = vector.broadcast %87 : vector<8x1xf32> to vector<8x8xf32>
    %89 = arith.subf %85, %88 : vector<8x8xf32>
    %90 = math.exp %89 : vector<8x8xf32>
    %cst_37 = arith.constant dense<0.000000e+00> : vector<8xf32>
    %91 = vector.multi_reduction <add>, %90, %cst_37 [1] : vector<8x8xf32> to vector<8xf32>
    %92 = vector.shape_cast %91 : vector<8xf32> to vector<8x1xf32>
    %93 = tpu.reciprocal %92 {approx = true} : vector<8x1xf32> -> vector<8x1xf32>
    %94 = vector.broadcast %93 : vector<8x1xf32> to vector<8x8xf32>
    %95 = arith.mulf %90, %94 : vector<8x8xf32>
    %cst_38 = arith.constant dense<0.000000e+00> : vector<8x8xf32>
    %96 = tpu.matmul %95, %80, %cst_38 {dimension_numbers = #tpu.dot_dimension_numbers<[1], [0], [0], [1], [0, 0, 1, 1], [], []>} : vector<8x8xf32>, vector<8x8xf32>, vector<8x8xf32> -> vector<8x8xf32>
    %97 = tpu.concatenate %39, %58, %77, %96 in 1 : vector<8x8xf32>, vector<8x8xf32>, vector<8x8xf32>, vector<8x8xf32> -> vector<8x32xf32>
    %c0_39 = arith.constant 0 : index
    %c0_40 = arith.constant 0 : index
    %c0_41 = arith.constant 0 : index
    %98 = vector.load %arg6[%c0_39, %c0_40, %c0_41] : memref<1x8x32xf32, #tpu.memory_space<vmem>>, vector<1x8x32xf32>
    %99 = vector.shape_cast %98 : vector<1x8x32xf32> to vector<8x32xf32>
    %100 = vector.shape_cast %97 : vector<8x32xf32> to vector<1x8x32xf32>
    tpu.vector_store %arg6[%c0_39, %c0_40, %c0_41], %100 {strides = array<i32>} : memref<1x8x32xf32, #tpu.memory_space<vmem>>, vector<1x8x32xf32>,
    return
  }
  func.func @transform_0(%arg0: i32) -> (i32, i32, i32) {
    %c0_i32 = arith.constant 0 : i32
    %c0_i32_0 = arith.constant 0 : i32
    %c0_i32_1 = arith.constant 0 : i32
    return %arg0, %c0_i32, %c0_i32_0 : i32, i32, i32
  }
  func.func @transform_1(%arg0: i32) -> (i32, i32, i32) {
    %c0_i32 = arith.constant 0 : i32
    %c0_i32_0 = arith.constant 0 : i32
    %c0_i32_1 = arith.constant 0 : i32
    return %arg0, %c0_i32, %c0_i32_0 : i32, i32, i32
  }
  func.func @transform_2(%arg0: i32) -> (i32, i32, i32) {
    %c0_i32 = arith.constant 0 : i32
    %c0_i32_0 = arith.constant 0 : i32
    %c0_i32_1 = arith.constant 0 : i32
    return %arg0, %c0_i32, %c0_i32_0 : i32, i32, i32
  }
  func.func @transform_3(%arg0: i32) -> (i32, i32, i32) {
    %c0_i32 = arith.constant 0 : i32
    %c0_i32_0 = arith.constant 0 : i32
    %c0_i32_1 = arith.constant 0 : i32
    return %arg0, %c0_i32, %c0_i32_0 : i32, i32, i32
  }
  func.func @transform_4(%arg0: i32) -> (i32, i32, i32) {
    %c0_i32 = arith.constant 0 : i32
    %c0_i32_0 = arith.constant 0 : i32
    %c0_i32_1 = arith.constant 0 : i32
    return %arg0, %c0_i32, %c0_i32_0 : i32, i32, i32
  }
  func.func @transform_5(%arg0: i32) -> (i32, i32, i32) {
    %c0_i32 = arith.constant 0 : i32
    %c0_i32_0 = arith.constant 0 : i32
    %c0_i32_1 = arith.constant 0 : i32
    return %arg0, %c0_i32, %c0_i32_0 : i32, i32, i32
  }
}

module attributes {stable_mosaic.version = 11 : i64} {
  func.func @_linear_kernel(%arg0: i32, %arg1: i32, %arg2: i32, %arg3: memref<16x128xf32, #tpu.memory_space<vmem>>, %arg4: memref<128x128xf32, #tpu.memory_space<vmem>>, %arg5: memref<1x128xf32, #tpu.memory_space<vmem>>, %arg6: memref<16x128xf32, #tpu.memory_space<vmem>>, %arg7: memref<16x128xf32, #tpu.memory_space<vmem>>) attributes {dimension_semantics = [#tpu.dimension_semantics<parallel>, #tpu.dimension_semantics<parallel>, #tpu.dimension_semantics<arbitrary>], iteration_bounds = array<i64: 1, 1, 1>, scalar_prefetch = 0 : i64, scratch_operands = 1 : i64, tpu.core_type = #tpu.core_type<tc>, window_params = [{transform_indices = @transform_0, window_bounds = array<i64: 16, 128>}, {transform_indices = @transform_1, window_bounds = array<i64: 128, 128>}, {transform_indices = @transform_2, window_bounds = array<i64: 1, 128>}, {transform_indices = @transform_3, window_bounds = array<i64: 16, 128>}]} {
    %c0_i32 = arith.constant 0 : i32
    %0 = arith.cmpi eq, %arg2, %c0_i32 : i32
    %1 = arith.extui %0 : i1 to i32
    %c0_i32_0 = arith.constant 0 : i32
    %2 = arith.cmpi ne, %1, %c0_i32_0 : i32
    scf.if %2 {
      %cst_10 = arith.constant 0.000000e+00 : f32
      %12 = vector.broadcast %cst_10 : f32 to vector<16x128xf32>
      %c0_11 = arith.constant 0 : index
      %c0_12 = arith.constant 0 : index
      %13 = vector.load %arg7[%c0_11, %c0_12] : memref<16x128xf32, #tpu.memory_space<vmem>>, vector<16x128xf32>
      tpu.vector_store %arg7[%c0_11, %c0_12], %12 {strides = array<i32>} : memref<16x128xf32, #tpu.memory_space<vmem>>, vector<16x128xf32>,
    } else {
    }
    %c0 = arith.constant 0 : index
    %c0_1 = arith.constant 0 : index
    %3 = vector.load %arg7[%c0, %c0_1] : memref<16x128xf32, #tpu.memory_space<vmem>>, vector<16x128xf32>
    %c0_2 = arith.constant 0 : index
    %c0_3 = arith.constant 0 : index
    %4 = vector.load %arg3[%c0_2, %c0_3] : memref<16x128xf32, #tpu.memory_space<vmem>>, vector<16x128xf32>
    %c0_4 = arith.constant 0 : index
    %c0_5 = arith.constant 0 : index
    %5 = vector.load %arg4[%c0_4, %c0_5] : memref<128x128xf32, #tpu.memory_space<vmem>>, vector<128x128xf32>
    %cst = arith.constant dense<0.000000e+00> : vector<16x128xf32>
    %6 = tpu.matmul %4, %5, %cst {dimension_numbers = #tpu.dot_dimension_numbers<[1], [0], [0], [1], [0, 0, 1, 1], [], []>} : vector<16x128xf32>, vector<128x128xf32>, vector<16x128xf32> -> vector<16x128xf32>
    %7 = arith.addf %3, %6 : vector<16x128xf32>
    %c0_6 = arith.constant 0 : index
    %c0_7 = arith.constant 0 : index
    %8 = vector.load %arg7[%c0_6, %c0_7] : memref<16x128xf32, #tpu.memory_space<vmem>>, vector<16x128xf32>
    tpu.vector_store %arg7[%c0_6, %c0_7], %7 {strides = array<i32>} : memref<16x128xf32, #tpu.memory_space<vmem>>, vector<16x128xf32>,
    %c0_i32_8 = arith.constant 0 : i32
    %9 = arith.cmpi eq, %arg2, %c0_i32_8 : i32
    %10 = arith.extui %9 : i1 to i32
    %c0_i32_9 = arith.constant 0 : i32
    %11 = arith.cmpi ne, %10, %c0_i32_9 : i32
    scf.if %11 {
      %c0_10 = arith.constant 0 : index
      %c0_11 = arith.constant 0 : index
      %12 = vector.load %arg7[%c0_10, %c0_11] : memref<16x128xf32, #tpu.memory_space<vmem>>, vector<16x128xf32>
      %c0_12 = arith.constant 0 : index
      %c0_13 = arith.constant 0 : index
      %13 = vector.load %arg5[%c0_12, %c0_13] : memref<1x128xf32, #tpu.memory_space<vmem>>, vector<1x128xf32>
      %14 = vector.broadcast %13 : vector<1x128xf32> to vector<16x128xf32>
      %15 = arith.addf %12, %14 : vector<16x128xf32>
      %c0_14 = arith.constant 0 : index
      %c0_15 = arith.constant 0 : index
      %16 = vector.load %arg6[%c0_14, %c0_15] : memref<16x128xf32, #tpu.memory_space<vmem>>, vector<16x128xf32>
      tpu.vector_store %arg6[%c0_14, %c0_15], %15 {strides = array<i32>} : memref<16x128xf32, #tpu.memory_space<vmem>>, vector<16x128xf32>,
    } else {
    }
    return
  }
  func.func @transform_0(%arg0: i32, %arg1: i32, %arg2: i32) -> (i32, i32) {
    %c0_i32 = arith.constant 0 : i32
    return %arg0, %arg2 : i32, i32
  }
  func.func @transform_1(%arg0: i32, %arg1: i32, %arg2: i32) -> (i32, i32) {
    %c0_i32 = arith.constant 0 : i32
    return %arg2, %arg1 : i32, i32
  }
  func.func @transform_2(%arg0: i32, %arg1: i32, %arg2: i32) -> (i32, i32) {
    %c0_i32 = arith.constant 0 : i32
    %c0_i32_0 = arith.constant 0 : i32
    return %c0_i32, %arg1 : i32, i32
  }
  func.func @transform_3(%arg0: i32, %arg1: i32, %arg2: i32) -> (i32, i32) {
    %c0_i32 = arith.constant 0 : i32
    return %arg0, %arg1 : i32, i32
  }
}

module attributes {stable_mosaic.version = 11 : i64} {
  func.func @_linear_kernel(%arg0: i32, %arg1: i32, %arg2: i32, %arg3: memref<16x128xf32, #tpu.memory_space<vmem>>, %arg4: memref<128x128xf32, #tpu.memory_space<vmem>>, %arg5: memref<1x128xf32, #tpu.memory_space<vmem>>, %arg6: memref<16x128xf32, #tpu.memory_space<vmem>>, %arg7: memref<16x128xf32, #tpu.memory_space<vmem>>) attributes {dimension_semantics = [#tpu.dimension_semantics<parallel>, #tpu.dimension_semantics<parallel>, #tpu.dimension_semantics<arbitrary>], iteration_bounds = array<i64: 1, 1, 1>, scalar_prefetch = 0 : i64, scratch_operands = 1 : i64, tpu.core_type = #tpu.core_type<tc>, window_params = [{transform_indices = @transform_0, window_bounds = array<i64: 16, 128>}, {transform_indices = @transform_1, window_bounds = array<i64: 128, 128>}, {transform_indices = @transform_2, window_bounds = array<i64: 1, 128>}, {transform_indices = @transform_3, window_bounds = array<i64: 16, 128>}]} {
    %c0_i32 = arith.constant 0 : i32
    %0 = arith.cmpi eq, %arg2, %c0_i32 : i32
    %1 = arith.extui %0 : i1 to i32
    %c0_i32_0 = arith.constant 0 : i32
    %2 = arith.cmpi ne, %1, %c0_i32_0 : i32
    scf.if %2 {
      %cst_10 = arith.constant 0.000000e+00 : f32
      %12 = vector.broadcast %cst_10 : f32 to vector<16x128xf32>
      %c0_11 = arith.constant 0 : index
      %c0_12 = arith.constant 0 : index
      %13 = vector.load %arg7[%c0_11, %c0_12] : memref<16x128xf32, #tpu.memory_space<vmem>>, vector<16x128xf32>
      tpu.vector_store %arg7[%c0_11, %c0_12], %12 {strides = array<i32>} : memref<16x128xf32, #tpu.memory_space<vmem>>, vector<16x128xf32>,
    } else {
    }
    %c0 = arith.constant 0 : index
    %c0_1 = arith.constant 0 : index
    %3 = vector.load %arg7[%c0, %c0_1] : memref<16x128xf32, #tpu.memory_space<vmem>>, vector<16x128xf32>
    %c0_2 = arith.constant 0 : index
    %c0_3 = arith.constant 0 : index
    %4 = vector.load %arg3[%c0_2, %c0_3] : memref<16x128xf32, #tpu.memory_space<vmem>>, vector<16x128xf32>
    %c0_4 = arith.constant 0 : index
    %c0_5 = arith.constant 0 : index
    %5 = vector.load %arg4[%c0_4, %c0_5] : memref<128x128xf32, #tpu.memory_space<vmem>>, vector<128x128xf32>
    %cst = arith.constant dense<0.000000e+00> : vector<16x128xf32>
    %6 = tpu.matmul %4, %5, %cst {dimension_numbers = #tpu.dot_dimension_numbers<[1], [0], [0], [1], [0, 0, 1, 1], [], []>} : vector<16x128xf32>, vector<128x128xf32>, vector<16x128xf32> -> vector<16x128xf32>
    %7 = arith.addf %3, %6 : vector<16x128xf32>
    %c0_6 = arith.constant 0 : index
    %c0_7 = arith.constant 0 : index
    %8 = vector.load %arg7[%c0_6, %c0_7] : memref<16x128xf32, #tpu.memory_space<vmem>>, vector<16x128xf32>
    tpu.vector_store %arg7[%c0_6, %c0_7], %7 {strides = array<i32>} : memref<16x128xf32, #tpu.memory_space<vmem>>, vector<16x128xf32>,
    %c0_i32_8 = arith.constant 0 : i32
    %9 = arith.cmpi eq, %arg2, %c0_i32_8 : i32
    %10 = arith.extui %9 : i1 to i32
    %c0_i32_9 = arith.constant 0 : i32
    %11 = arith.cmpi ne, %10, %c0_i32_9 : i32
    scf.if %11 {
      %c0_10 = arith.constant 0 : index
      %c0_11 = arith.constant 0 : index
      %12 = vector.load %arg7[%c0_10, %c0_11] : memref<16x128xf32, #tpu.memory_space<vmem>>, vector<16x128xf32>
      %c0_12 = arith.constant 0 : index
      %c0_13 = arith.constant 0 : index
      %13 = vector.load %arg5[%c0_12, %c0_13] : memref<1x128xf32, #tpu.memory_space<vmem>>, vector<1x128xf32>
      %14 = vector.broadcast %13 : vector<1x128xf32> to vector<16x128xf32>
      %15 = arith.addf %12, %14 : vector<16x128xf32>
      %c0_14 = arith.constant 0 : index
      %c0_15 = arith.constant 0 : index
      %16 = vector.load %arg6[%c0_14, %c0_15] : memref<16x128xf32, #tpu.memory_space<vmem>>, vector<16x128xf32>
      tpu.vector_store %arg6[%c0_14, %c0_15], %15 {strides = array<i32>} : memref<16x128xf32, #tpu.memory_space<vmem>>, vector<16x128xf32>,
    } else {
    }
    return
  }
  func.func @transform_0(%arg0: i32, %arg1: i32, %arg2: i32) -> (i32, i32) {
    %c0_i32 = arith.constant 0 : i32
    return %arg0, %arg2 : i32, i32
  }
  func.func @transform_1(%arg0: i32, %arg1: i32, %arg2: i32) -> (i32, i32) {
    %c0_i32 = arith.constant 0 : i32
    return %arg2, %arg1 : i32, i32
  }
  func.func @transform_2(%arg0: i32, %arg1: i32, %arg2: i32) -> (i32, i32) {
    %c0_i32 = arith.constant 0 : i32
    %c0_i32_0 = arith.constant 0 : i32
    return %c0_i32, %arg1 : i32, i32
  }
  func.func @transform_3(%arg0: i32, %arg1: i32, %arg2: i32) -> (i32, i32) {
    %c0_i32 = arith.constant 0 : i32
    return %arg0, %arg1 : i32, i32
  }
}

module attributes {stable_mosaic.version = 11 : i64} {
  func.func @_linear_res_ln_kernel(%arg0: i32, %arg1: i32, %arg2: memref<16x128xf32, #tpu.memory_space<vmem>>, %arg3: memref<128x32xf32, #tpu.memory_space<vmem>>, %arg4: memref<1x32xf32, #tpu.memory_space<vmem>>, %arg5: memref<16x32xf32, #tpu.memory_space<vmem>>, %arg6: memref<1x32xf32, #tpu.memory_space<vmem>>, %arg7: memref<1x32xf32, #tpu.memory_space<vmem>>, %arg8: memref<16x32xf32, #tpu.memory_space<vmem>>, %arg9: memref<16x32xf32, #tpu.memory_space<vmem>>) attributes {dimension_semantics = [#tpu.dimension_semantics<parallel>, #tpu.dimension_semantics<arbitrary>], iteration_bounds = array<i64: 1, 1>, scalar_prefetch = 0 : i64, scratch_operands = 1 : i64, tpu.core_type = #tpu.core_type<tc>, window_params = [{transform_indices = @transform_0, window_bounds = array<i64: 16, 128>}, {transform_indices = @transform_1, window_bounds = array<i64: 128, 32>}, {pipeline_mode = #tpu.pipeline_mode<synchronous>, transform_indices = @transform_2, window_bounds = array<i64: 1, 32>}, {transform_indices = @transform_3, window_bounds = array<i64: 16, 32>}, {pipeline_mode = #tpu.pipeline_mode<synchronous>, transform_indices = @transform_4, window_bounds = array<i64: 1, 32>}, {pipeline_mode = #tpu.pipeline_mode<synchronous>, transform_indices = @transform_5, window_bounds = array<i64: 1, 32>}, {transform_indices = @transform_6, window_bounds = array<i64: 16, 32>}]} {
    %c0_i32 = arith.constant 0 : i32
    %0 = arith.cmpi eq, %arg1, %c0_i32 : i32
    %1 = arith.extui %0 : i1 to i32
    %c0_i32_0 = arith.constant 0 : i32
    %2 = arith.cmpi ne, %1, %c0_i32_0 : i32
    scf.if %2 {
      %cst_10 = arith.constant 0.000000e+00 : f32
      %12 = vector.broadcast %cst_10 : f32 to vector<16x32xf32>
      %c0_11 = arith.constant 0 : index
      %c0_12 = arith.constant 0 : index
      %13 = vector.load %arg9[%c0_11, %c0_12] : memref<16x32xf32, #tpu.memory_space<vmem>>, vector<16x32xf32>
      tpu.vector_store %arg9[%c0_11, %c0_12], %12 {strides = array<i32>} : memref<16x32xf32, #tpu.memory_space<vmem>>, vector<16x32xf32>,
    } else {
    }
    %c0 = arith.constant 0 : index
    %c0_1 = arith.constant 0 : index
    %3 = vector.load %arg9[%c0, %c0_1] : memref<16x32xf32, #tpu.memory_space<vmem>>, vector<16x32xf32>
    %c0_2 = arith.constant 0 : index
    %c0_3 = arith.constant 0 : index
    %4 = vector.load %arg2[%c0_2, %c0_3] : memref<16x128xf32, #tpu.memory_space<vmem>>, vector<16x128xf32>
    %c0_4 = arith.constant 0 : index
    %c0_5 = arith.constant 0 : index
    %5 = vector.load %arg3[%c0_4, %c0_5] : memref<128x32xf32, #tpu.memory_space<vmem>>, vector<128x32xf32>
    %cst = arith.constant dense<0.000000e+00> : vector<16x32xf32>
    %6 = tpu.matmul %4, %5, %cst {dimension_numbers = #tpu.dot_dimension_numbers<[1], [0], [0], [1], [0, 0, 1, 1], [], []>} : vector<16x128xf32>, vector<128x32xf32>, vector<16x32xf32> -> vector<16x32xf32>
    %7 = arith.addf %3, %6 : vector<16x32xf32>
    %c0_6 = arith.constant 0 : index
    %c0_7 = arith.constant 0 : index
    %8 = vector.load %arg9[%c0_6, %c0_7] : memref<16x32xf32, #tpu.memory_space<vmem>>, vector<16x32xf32>
    tpu.vector_store %arg9[%c0_6, %c0_7], %7 {strides = array<i32>} : memref<16x32xf32, #tpu.memory_space<vmem>>, vector<16x32xf32>,
    %c0_i32_8 = arith.constant 0 : i32
    %9 = arith.cmpi eq, %arg1, %c0_i32_8 : i32
    %10 = arith.extui %9 : i1 to i32
    %c0_i32_9 = arith.constant 0 : i32
    %11 = arith.cmpi ne, %10, %c0_i32_9 : i32
    scf.if %11 {
      %c0_10 = arith.constant 0 : index
      %c0_11 = arith.constant 0 : index
      %12 = vector.load %arg9[%c0_10, %c0_11] : memref<16x32xf32, #tpu.memory_space<vmem>>, vector<16x32xf32>
      %c0_12 = arith.constant 0 : index
      %c0_13 = arith.constant 0 : index
      %13 = vector.load %arg4[%c0_12, %c0_13] : memref<1x32xf32, #tpu.memory_space<vmem>>, vector<1x32xf32>
      %14 = vector.broadcast %13 : vector<1x32xf32> to vector<16x32xf32>
      %15 = arith.addf %12, %14 : vector<16x32xf32>
      %c0_14 = arith.constant 0 : index
      %c0_15 = arith.constant 0 : index
      %16 = vector.load %arg5[%c0_14, %c0_15] : memref<16x32xf32, #tpu.memory_space<vmem>>, vector<16x32xf32>
      %17 = arith.addf %15, %16 : vector<16x32xf32>
      %cst_16 = arith.constant dense<0.000000e+00> : vector<16xf32>
      %18 = vector.multi_reduction <add>, %17, %cst_16 [1] : vector<16x32xf32> to vector<16xf32>
      %19 = vector.shape_cast %18 : vector<16xf32> to vector<16x1xf32>
      %cst_17 = arith.constant 3.200000e+01 : f32
      %20 = vector.broadcast %cst_17 : f32 to vector<16x1xf32>
      %21 = arith.divf %19, %20 : vector<16x1xf32>
      %22 = vector.broadcast %21 : vector<16x1xf32> to vector<16x32xf32>
      %23 = arith.subf %17, %22 : vector<16x32xf32>
      %24 = arith.mulf %23, %23 : vector<16x32xf32>
      %cst_18 = arith.constant dense<0.000000e+00> : vector<16xf32>
      %25 = vector.multi_reduction <add>, %24, %cst_18 [1] : vector<16x32xf32> to vector<16xf32>
      %26 = vector.shape_cast %25 : vector<16xf32> to vector<16x1xf32>
      %cst_19 = arith.constant 3.200000e+01 : f32
      %27 = vector.broadcast %cst_19 : f32 to vector<16x1xf32>
      %28 = arith.divf %26, %27 : vector<16x1xf32>
      %29 = vector.broadcast %21 : vector<16x1xf32> to vector<16x32xf32>
      %30 = arith.subf %17, %29 : vector<16x32xf32>
      %cst_20 = arith.constant 9.99999996E-13 : f32
      %31 = vector.broadcast %cst_20 : f32 to vector<16x1xf32>
      %32 = arith.addf %28, %31 : vector<16x1xf32>
      %33 = math.rsqrt %32 : vector<16x1xf32>
      %34 = vector.broadcast %33 : vector<16x1xf32> to vector<16x32xf32>
      %35 = arith.mulf %30, %34 : vector<16x32xf32>
      %c0_21 = arith.constant 0 : index
      %c0_22 = arith.constant 0 : index
      %36 = vector.load %arg6[%c0_21, %c0_22] : memref<1x32xf32, #tpu.memory_space<vmem>>, vector<1x32xf32>
      %37 = vector.broadcast %36 : vector<1x32xf32> to vector<16x32xf32>
      %38 = arith.mulf %37, %35 : vector<16x32xf32>
      %c0_23 = arith.constant 0 : index
      %c0_24 = arith.constant 0 : index
      %39 = vector.load %arg7[%c0_23, %c0_24] : memref<1x32xf32, #tpu.memory_space<vmem>>, vector<1x32xf32>
      %40 = vector.broadcast %39 : vector<1x32xf32> to vector<16x32xf32>
      %41 = arith.addf %38, %40 : vector<16x32xf32>
      %c0_25 = arith.constant 0 : index
      %c0_26 = arith.constant 0 : index
      %42 = vector.load %arg8[%c0_25, %c0_26] : memref<16x32xf32, #tpu.memory_space<vmem>>, vector<16x32xf32>
      tpu.vector_store %arg8[%c0_25, %c0_26], %41 {strides = array<i32>} : memref<16x32xf32, #tpu.memory_space<vmem>>, vector<16x32xf32>,
    } else {
    }
    return
  }
  func.func @transform_0(%arg0: i32, %arg1: i32) -> (i32, i32) {
    %c0_i32 = arith.constant 0 : i32
    return %arg0, %arg1 : i32, i32
  }
  func.func @transform_1(%arg0: i32, %arg1: i32) -> (i32, i32) {
    %c0_i32 = arith.constant 0 : i32
    %c0_i32_0 = arith.constant 0 : i32
    return %arg1, %c0_i32 : i32, i32
  }
  func.func @transform_2(%arg0: i32, %arg1: i32) -> (i32, i32) {
    %c0_i32 = arith.constant 0 : i32
    %c0_i32_0 = arith.constant 0 : i32
    %c0_i32_1 = arith.constant 0 : i32
    return %c0_i32, %c0_i32_0 : i32, i32
  }
  func.func @transform_3(%arg0: i32, %arg1: i32) -> (i32, i32) {
    %c0_i32 = arith.constant 0 : i32
    %c0_i32_0 = arith.constant 0 : i32
    return %arg0, %c0_i32 : i32, i32
  }
  func.func @transform_4(%arg0: i32, %arg1: i32) -> (i32, i32) {
    %c0_i32 = arith.constant 0 : i32
    %c0_i32_0 = arith.constant 0 : i32
    %c0_i32_1 = arith.constant 0 : i32
    return %c0_i32, %c0_i32_0 : i32, i32
  }
  func.func @transform_5(%arg0: i32, %arg1: i32) -> (i32, i32) {
    %c0_i32 = arith.constant 0 : i32
    %c0_i32_0 = arith.constant 0 : i32
    %c0_i32_1 = arith.constant 0 : i32
    return %c0_i32, %c0_i32_0 : i32, i32
  }
  func.func @transform_6(%arg0: i32, %arg1: i32) -> (i32, i32) {
    %c0_i32 = arith.constant 0 : i32
    %c0_i32_0 = arith.constant 0 : i32
    return %arg0, %c0_i32 : i32, i32
  }
}

module attributes {stable_mosaic.version = 11 : i64} {
  func.func @_mha_kernel(%arg0: i32, %arg1: memref<1x8x32xf32, #tpu.memory_space<vmem>>, %arg2: memref<1x8x32xf32, #tpu.memory_space<vmem>>, %arg3: memref<1x8x32xf32, #tpu.memory_space<vmem>>, %arg4: memref<1x8x1xf32, #tpu.memory_space<vmem>>, %arg5: memref<1x1x8xf32, #tpu.memory_space<vmem>>, %arg6: memref<1x8x32xf32, #tpu.memory_space<vmem>>) attributes {dimension_semantics = [#tpu.dimension_semantics<parallel>], iteration_bounds = array<i64: 2>, scalar_prefetch = 0 : i64, scratch_operands = 0 : i64, tpu.core_type = #tpu.core_type<tc>, window_params = [{transform_indices = @transform_0, window_bounds = array<i64: 1, 8, 32>}, {transform_indices = @transform_1, window_bounds = array<i64: 1, 8, 32>}, {transform_indices = @transform_2, window_bounds = array<i64: 1, 8, 32>}, {transform_indices = @transform_3, window_bounds = array<i64: 1, 8, 1>}, {transform_indices = @transform_4, window_bounds = array<i64: 1, 1, 8>}, {transform_indices = @transform_5, window_bounds = array<i64: 1, 8, 32>}]} {
    %c0 = arith.constant 0 : index
    %c0_0 = arith.constant 0 : index
    %c0_1 = arith.constant 0 : index
    %0 = vector.load %arg1[%c0, %c0_0, %c0_1] : memref<1x8x32xf32, #tpu.memory_space<vmem>>, vector<1x8x32xf32>
    %1 = vector.shape_cast %0 : vector<1x8x32xf32> to vector<8x32xf32>
    %c0_2 = arith.constant 0 : index
    %c0_3 = arith.constant 0 : index
    %c0_4 = arith.constant 0 : index
    %2 = vector.load %arg2[%c0_2, %c0_3, %c0_4] : memref<1x8x32xf32, #tpu.memory_space<vmem>>, vector<1x8x32xf32>
    %3 = vector.shape_cast %2 : vector<1x8x32xf32> to vector<8x32xf32>
    %c0_5 = arith.constant 0 : index
    %c0_6 = arith.constant 0 : index
    %c0_7 = arith.constant 0 : index
    %4 = vector.load %arg3[%c0_5, %c0_6, %c0_7] : memref<1x8x32xf32, #tpu.memory_space<vmem>>, vector<1x8x32xf32>
    %5 = vector.shape_cast %4 : vector<1x8x32xf32> to vector<8x32xf32>
    %c0_8 = arith.constant 0 : index
    %c0_9 = arith.constant 0 : index
    %c0_10 = arith.constant 0 : index
    %6 = vector.load %arg4[%c0_8, %c0_9, %c0_10] : memref<1x8x1xf32, #tpu.memory_space<vmem>>, vector<1x8x1xf32>
    %7 = vector.shape_cast %6 : vector<1x8x1xf32> to vector<8x1xf32>
    %c0_11 = arith.constant 0 : index
    %c0_12 = arith.constant 0 : index
    %c0_13 = arith.constant 0 : index
    %8 = vector.load %arg5[%c0_11, %c0_12, %c0_13] : memref<1x1x8xf32, #tpu.memory_space<vmem>>, vector<1x1x8xf32>
    %9 = vector.shape_cast %8 : vector<1x1x8xf32> to vector<1x8xf32>
    %cst = arith.constant 0.000000e+00 : f32
    %10 = vector.broadcast %cst : f32 to vector<8x1xf32>
    %11 = arith.cmpf ogt, %7, %10 : vector<8x1xf32>
    %cst_14 = arith.constant 0.000000e+00 : f32
    %12 = vector.broadcast %cst_14 : f32 to vector<1x8xf32>
    %13 = arith.cmpf ogt, %9, %12 : vector<1x8xf32>
    %14 = vector.broadcast %11 : vector<8x1xi1> to vector<8x8xi1>
    %15 = vector.broadcast %13 : vector<1x8xi1> to vector<8x8xi1>
    %16 = arith.andi %14, %15 : vector<8x8xi1>
    %17 = vector.extract_strided_slice %1 {offsets = [0, 0], sizes = [8, 8], strides = [1, 1]} : vector<8x32xf32> to vector<8x8xf32>
    %18 = vector.extract_strided_slice %3 {offsets = [0, 0], sizes = [8, 8], strides = [1, 1]} : vector<8x32xf32> to vector<8x8xf32>
    %19 = vector.extract_strided_slice %5 {offsets = [0, 0], sizes = [8, 8], strides = [1, 1]} : vector<8x32xf32> to vector<8x8xf32>
    %cst_15 = arith.constant dense<0.000000e+00> : vector<8x8xf32>
    %20 = tpu.matmul %17, %18, %cst_15 {dimension_numbers = #tpu.dot_dimension_numbers<[1], [1], [0], [0], [0, 0, 1, 0], [], []>} : vector<8x8xf32>, vector<8x8xf32>, vector<8x8xf32> -> vector<8x8xf32>
    %cst_16 = arith.constant 0.353553385 : f32
    %21 = vector.broadcast %cst_16 : f32 to vector<8x8xf32>
    %22 = arith.mulf %20, %21 : vector<8x8xf32>
    %cst_17 = arith.constant -1.000000e+04 : f32
    %23 = vector.broadcast %cst_17 : f32 to vector<8x8xf32>
    %24 = arith.select %16, %22, %23 : vector<8x8xi1>, vector<8x8xf32>
    %cst_18 = arith.constant dense<0xFF800000> : vector<8xf32>
    %25 = vector.multi_reduction <maximumf>, %24, %cst_18 [1] : vector<8x8xf32> to vector<8xf32>
    %26 = vector.shape_cast %25 : vector<8xf32> to vector<8x1xf32>
    %27 = vector.broadcast %26 : vector<8x1xf32> to vector<8x8xf32>
    %28 = arith.subf %24, %27 : vector<8x8xf32>
    %29 = math.exp %28 : vector<8x8xf32>
    %cst_19 = arith.constant dense<0.000000e+00> : vector<8xf32>
    %30 = vector.multi_reduction <add>, %29, %cst_19 [1] : vector<8x8xf32> to vector<8xf32>
    %31 = vector.shape_cast %30 : vector<8xf32> to vector<8x1xf32>
    %32 = tpu.reciprocal %31 {approx = true} : vector<8x1xf32> -> vector<8x1xf32>
    %33 = vector.broadcast %32 : vector<8x1xf32> to vector<8x8xf32>
    %34 = arith.mulf %29, %33 : vector<8x8xf32>
    %cst_20 = arith.constant dense<0.000000e+00> : vector<8x8xf32>
    %35 = tpu.matmul %34, %19, %cst_20 {dimension_numbers = #tpu.dot_dimension_numbers<[1], [0], [0], [1], [0, 0, 1, 1], [], []>} : vector<8x8xf32>, vector<8x8xf32>, vector<8x8xf32> -> vector<8x8xf32>
    %36 = vector.extract_strided_slice %1 {offsets = [0, 8], sizes = [8, 8], strides = [1, 1]} : vector<8x32xf32> to vector<8x8xf32>
    %37 = vector.extract_strided_slice %3 {offsets = [0, 8], sizes = [8, 8], strides = [1, 1]} : vector<8x32xf32> to vector<8x8xf32>
    %38 = vector.extract_strided_slice %5 {offsets = [0, 8], sizes = [8, 8], strides = [1, 1]} : vector<8x32xf32> to vector<8x8xf32>
    %cst_21 = arith.constant dense<0.000000e+00> : vector<8x8xf32>
    %39 = tpu.matmul %36, %37, %cst_21 {dimension_numbers = #tpu.dot_dimension_numbers<[1], [1], [0], [0], [0, 0, 1, 0], [], []>} : vector<8x8xf32>, vector<8x8xf32>, vector<8x8xf32> -> vector<8x8xf32>
    %cst_22 = arith.constant 0.353553385 : f32
    %40 = vector.broadcast %cst_22 : f32 to vector<8x8xf32>
    %41 = arith.mulf %39, %40 : vector<8x8xf32>
    %cst_23 = arith.constant -1.000000e+04 : f32
    %42 = vector.broadcast %cst_23 : f32 to vector<8x8xf32>
    %43 = arith.select %16, %41, %42 : vector<8x8xi1>, vector<8x8xf32>
    %cst_24 = arith.constant dense<0xFF800000> : vector<8xf32>
    %44 = vector.multi_reduction <maximumf>, %43, %cst_24 [1] : vector<8x8xf32> to vector<8xf32>
    %45 = vector.shape_cast %44 : vector<8xf32> to vector<8x1xf32>
    %46 = vector.broadcast %45 : vector<8x1xf32> to vector<8x8xf32>
    %47 = arith.subf %43, %46 : vector<8x8xf32>
    %48 = math.exp %47 : vector<8x8xf32>
    %cst_25 = arith.constant dense<0.000000e+00> : vector<8xf32>
    %49 = vector.multi_reduction <add>, %48, %cst_25 [1] : vector<8x8xf32> to vector<8xf32>
    %50 = vector.shape_cast %49 : vector<8xf32> to vector<8x1xf32>
    %51 = tpu.reciprocal %50 {approx = true} : vector<8x1xf32> -> vector<8x1xf32>
    %52 = vector.broadcast %51 : vector<8x1xf32> to vector<8x8xf32>
    %53 = arith.mulf %48, %52 : vector<8x8xf32>
    %cst_26 = arith.constant dense<0.000000e+00> : vector<8x8xf32>
    %54 = tpu.matmul %53, %38, %cst_26 {dimension_numbers = #tpu.dot_dimension_numbers<[1], [0], [0], [1], [0, 0, 1, 1], [], []>} : vector<8x8xf32>, vector<8x8xf32>, vector<8x8xf32> -> vector<8x8xf32>
    %55 = vector.extract_strided_slice %1 {offsets = [0, 16], sizes = [8, 8], strides = [1, 1]} : vector<8x32xf32> to vector<8x8xf32>
    %56 = vector.extract_strided_slice %3 {offsets = [0, 16], sizes = [8, 8], strides = [1, 1]} : vector<8x32xf32> to vector<8x8xf32>
    %57 = vector.extract_strided_slice %5 {offsets = [0, 16], sizes = [8, 8], strides = [1, 1]} : vector<8x32xf32> to vector<8x8xf32>
    %cst_27 = arith.constant dense<0.000000e+00> : vector<8x8xf32>
    %58 = tpu.matmul %55, %56, %cst_27 {dimension_numbers = #tpu.dot_dimension_numbers<[1], [1], [0], [0], [0, 0, 1, 0], [], []>} : vector<8x8xf32>, vector<8x8xf32>, vector<8x8xf32> -> vector<8x8xf32>
    %cst_28 = arith.constant 0.353553385 : f32
    %59 = vector.broadcast %cst_28 : f32 to vector<8x8xf32>
    %60 = arith.mulf %58, %59 : vector<8x8xf32>
    %cst_29 = arith.constant -1.000000e+04 : f32
    %61 = vector.broadcast %cst_29 : f32 to vector<8x8xf32>
    %62 = arith.select %16, %60, %61 : vector<8x8xi1>, vector<8x8xf32>
    %cst_30 = arith.constant dense<0xFF800000> : vector<8xf32>
    %63 = vector.multi_reduction <maximumf>, %62, %cst_30 [1] : vector<8x8xf32> to vector<8xf32>
    %64 = vector.shape_cast %63 : vector<8xf32> to vector<8x1xf32>
    %65 = vector.broadcast %64 : vector<8x1xf32> to vector<8x8xf32>
    %66 = arith.subf %62, %65 : vector<8x8xf32>
    %67 = math.exp %66 : vector<8x8xf32>
    %cst_31 = arith.constant dense<0.000000e+00> : vector<8xf32>
    %68 = vector.multi_reduction <add>, %67, %cst_31 [1] : vector<8x8xf32> to vector<8xf32>
    %69 = vector.shape_cast %68 : vector<8xf32> to vector<8x1xf32>
    %70 = tpu.reciprocal %69 {approx = true} : vector<8x1xf32> -> vector<8x1xf32>
    %71 = vector.broadcast %70 : vector<8x1xf32> to vector<8x8xf32>
    %72 = arith.mulf %67, %71 : vector<8x8xf32>
    %cst_32 = arith.constant dense<0.000000e+00> : vector<8x8xf32>
    %73 = tpu.matmul %72, %57, %cst_32 {dimension_numbers = #tpu.dot_dimension_numbers<[1], [0], [0], [1], [0, 0, 1, 1], [], []>} : vector<8x8xf32>, vector<8x8xf32>, vector<8x8xf32> -> vector<8x8xf32>
    %74 = vector.extract_strided_slice %1 {offsets = [0, 24], sizes = [8, 8], strides = [1, 1]} : vector<8x32xf32> to vector<8x8xf32>
    %75 = vector.extract_strided_slice %3 {offsets = [0, 24], sizes = [8, 8], strides = [1, 1]} : vector<8x32xf32> to vector<8x8xf32>
    %76 = vector.extract_strided_slice %5 {offsets = [0, 24], sizes = [8, 8], strides = [1, 1]} : vector<8x32xf32> to vector<8x8xf32>
    %cst_33 = arith.constant dense<0.000000e+00> : vector<8x8xf32>
    %77 = tpu.matmul %74, %75, %cst_33 {dimension_numbers = #tpu.dot_dimension_numbers<[1], [1], [0], [0], [0, 0, 1, 0], [], []>} : vector<8x8xf32>, vector<8x8xf32>, vector<8x8xf32> -> vector<8x8xf32>
    %cst_34 = arith.constant 0.353553385 : f32
    %78 = vector.broadcast %cst_34 : f32 to vector<8x8xf32>
    %79 = arith.mulf %77, %78 : vector<8x8xf32>
    %cst_35 = arith.constant -1.000000e+04 : f32
    %80 = vector.broadcast %cst_35 : f32 to vector<8x8xf32>
    %81 = arith.select %16, %79, %80 : vector<8x8xi1>, vector<8x8xf32>
    %cst_36 = arith.constant dense<0xFF800000> : vector<8xf32>
    %82 = vector.multi_reduction <maximumf>, %81, %cst_36 [1] : vector<8x8xf32> to vector<8xf32>
    %83 = vector.shape_cast %82 : vector<8xf32> to vector<8x1xf32>
    %84 = vector.broadcast %83 : vector<8x1xf32> to vector<8x8xf32>
    %85 = arith.subf %81, %84 : vector<8x8xf32>
    %86 = math.exp %85 : vector<8x8xf32>
    %cst_37 = arith.constant dense<0.000000e+00> : vector<8xf32>
    %87 = vector.multi_reduction <add>, %86, %cst_37 [1] : vector<8x8xf32> to vector<8xf32>
    %88 = vector.shape_cast %87 : vector<8xf32> to vector<8x1xf32>
    %89 = tpu.reciprocal %88 {approx = true} : vector<8x1xf32> -> vector<8x1xf32>
    %90 = vector.broadcast %89 : vector<8x1xf32> to vector<8x8xf32>
    %91 = arith.mulf %86, %90 : vector<8x8xf32>
    %cst_38 = arith.constant dense<0.000000e+00> : vector<8x8xf32>
    %92 = tpu.matmul %91, %76, %cst_38 {dimension_numbers = #tpu.dot_dimension_numbers<[1], [0], [0], [1], [0, 0, 1, 1], [], []>} : vector<8x8xf32>, vector<8x8xf32>, vector<8x8xf32> -> vector<8x8xf32>
    %93 = tpu.concatenate %35, %54, %73, %92 in 1 : vector<8x8xf32>, vector<8x8xf32>, vector<8x8xf32>, vector<8x8xf32> -> vector<8x32xf32>
    %c0_39 = arith.constant 0 : index
    %c0_40 = arith.constant 0 : index
    %c0_41 = arith.constant 0 : index
    %94 = vector.load %arg6[%c0_39, %c0_40, %c0_41] : memref<1x8x32xf32, #tpu.memory_space<vmem>>, vector<1x8x32xf32>
    %95 = vector.shape_cast %94 : vector<1x8x32xf32> to vector<8x32xf32>
    %96 = vector.shape_cast %93 : vector<8x32xf32> to vector<1x8x32xf32>
    tpu.vector_store %arg6[%c0_39, %c0_40, %c0_41], %96 {strides = array<i32>} : memref<1x8x32xf32, #tpu.memory_space<vmem>>, vector<1x8x32xf32>,
    return
  }
  func.func @transform_0(%arg0: i32) -> (i32, i32, i32) {
    %c0_i32 = arith.constant 0 : i32
    %c0_i32_0 = arith.constant 0 : i32
    %c0_i32_1 = arith.constant 0 : i32
    return %arg0, %c0_i32, %c0_i32_0 : i32, i32, i32
  }
  func.func @transform_1(%arg0: i32) -> (i32, i32, i32) {
    %c0_i32 = arith.constant 0 : i32
    %c0_i32_0 = arith.constant 0 : i32
    %c0_i32_1 = arith.constant 0 : i32
    return %arg0, %c0_i32, %c0_i32_0 : i32, i32, i32
  }
  func.func @transform_2(%arg0: i32) -> (i32, i32, i32) {
    %c0_i32 = arith.constant 0 : i32
    %c0_i32_0 = arith.constant 0 : i32
    %c0_i32_1 = arith.constant 0 : i32
    return %arg0, %c0_i32, %c0_i32_0 : i32, i32, i32
  }
  func.func @transform_3(%arg0: i32) -> (i32, i32, i32) {
    %c0_i32 = arith.constant 0 : i32
    %c0_i32_0 = arith.constant 0 : i32
    %c0_i32_1 = arith.constant 0 : i32
    return %arg0, %c0_i32, %c0_i32_0 : i32, i32, i32
  }
  func.func @transform_4(%arg0: i32) -> (i32, i32, i32) {
    %c0_i32 = arith.constant 0 : i32
    %c0_i32_0 = arith.constant 0 : i32
    %c0_i32_1 = arith.constant 0 : i32
    return %arg0, %c0_i32, %c0_i32_0 : i32, i32, i32
  }
  func.func @transform_5(%arg0: i32) -> (i32, i32, i32) {
    %c0_i32 = arith.constant 0 : i32
    %c0_i32_0 = arith.constant 0 : i32
    %c0_i32_1 = arith.constant 0 : i32
    return %arg0, %c0_i32, %c0_i32_0 : i32, i32, i32
  }
}

module attributes {stable_mosaic.version = 11 : i64} {
  func.func @_ffn_res_ln_kernel(%arg0: i32, %arg1: i32, %arg2: memref<16x32xf32, #tpu.memory_space<vmem>>, %arg3: memref<32x128xf32, #tpu.memory_space<vmem>>, %arg4: memref<1x128xf32, #tpu.memory_space<vmem>>, %arg5: memref<128x32xf32, #tpu.memory_space<vmem>>, %arg6: memref<1x32xf32, #tpu.memory_space<vmem>>, %arg7: memref<16x32xf32, #tpu.memory_space<vmem>>, %arg8: memref<1x32xf32, #tpu.memory_space<vmem>>, %arg9: memref<1x32xf32, #tpu.memory_space<vmem>>, %arg10: memref<16x32xf32, #tpu.memory_space<vmem>>, %arg11: memref<16x32xf32, #tpu.memory_space<vmem>>) attributes {dimension_semantics = [#tpu.dimension_semantics<parallel>, #tpu.dimension_semantics<arbitrary>], iteration_bounds = array<i64: 1, 1>, scalar_prefetch = 0 : i64, scratch_operands = 1 : i64, tpu.core_type = #tpu.core_type<tc>, window_params = [{transform_indices = @transform_0, window_bounds = array<i64: 16, 32>}, {transform_indices = @transform_1, window_bounds = array<i64: 32, 128>}, {transform_indices = @transform_2, window_bounds = array<i64: 1, 128>}, {transform_indices = @transform_3, window_bounds = array<i64: 128, 32>}, {pipeline_mode = #tpu.pipeline_mode<synchronous>, transform_indices = @transform_4, window_bounds = array<i64: 1, 32>}, {transform_indices = @transform_5, window_bounds = array<i64: 16, 32>}, {pipeline_mode = #tpu.pipeline_mode<synchronous>, transform_indices = @transform_6, window_bounds = array<i64: 1, 32>}, {pipeline_mode = #tpu.pipeline_mode<synchronous>, transform_indices = @transform_7, window_bounds = array<i64: 1, 32>}, {transform_indices = @transform_8, window_bounds = array<i64: 16, 32>}]} {
    %c0_i32 = arith.constant 0 : i32
    %0 = arith.cmpi eq, %arg1, %c0_i32 : i32
    %1 = arith.extui %0 : i1 to i32
    %c0_i32_0 = arith.constant 0 : i32
    %2 = arith.cmpi ne, %1, %c0_i32_0 : i32
    scf.if %2 {
      %cst_16 = arith.constant 0.000000e+00 : f32
      %19 = vector.broadcast %cst_16 : f32 to vector<16x32xf32>
      %c0_17 = arith.constant 0 : index
      %c0_18 = arith.constant 0 : index
      %20 = vector.load %arg11[%c0_17, %c0_18] : memref<16x32xf32, #tpu.memory_space<vmem>>, vector<16x32xf32>
      tpu.vector_store %arg11[%c0_17, %c0_18], %19 {strides = array<i32>} : memref<16x32xf32, #tpu.memory_space<vmem>>, vector<16x32xf32>,
    } else {
    }
    %c0 = arith.constant 0 : index
    %c0_1 = arith.constant 0 : index
    %3 = vector.load %arg2[%c0, %c0_1] : memref<16x32xf32, #tpu.memory_space<vmem>>, vector<16x32xf32>
    %c0_2 = arith.constant 0 : index
    %c0_3 = arith.constant 0 : index
    %4 = vector.load %arg3[%c0_2, %c0_3] : memref<32x128xf32, #tpu.memory_space<vmem>>, vector<32x128xf32>
    %cst = arith.constant dense<0.000000e+00> : vector<16x128xf32>
    %5 = tpu.matmul %3, %4, %cst {dimension_numbers = #tpu.dot_dimension_numbers<[1], [0], [0], [1], [0, 0, 1, 1], [], []>} : vector<16x32xf32>, vector<32x128xf32>, vector<16x128xf32> -> vector<16x128xf32>
    %c0_4 = arith.constant 0 : index
    %c0_5 = arith.constant 0 : index
    %6 = vector.load %arg4[%c0_4, %c0_5] : memref<1x128xf32, #tpu.memory_space<vmem>>, vector<1x128xf32>
    %7 = vector.broadcast %6 : vector<1x128xf32> to vector<16x128xf32>
    %8 = arith.addf %5, %7 : vector<16x128xf32>
    %cst_6 = arith.constant 0.000000e+00 : f32
    %9 = vector.broadcast %cst_6 : f32 to vector<16x128xf32>
    %10 = arith.maximumf %8, %9 : vector<16x128xf32>
    %c0_7 = arith.constant 0 : index
    %c0_8 = arith.constant 0 : index
    %11 = vector.load %arg11[%c0_7, %c0_8] : memref<16x32xf32, #tpu.memory_space<vmem>>, vector<16x32xf32>
    %c0_9 = arith.constant 0 : index
    %c0_10 = arith.constant 0 : index
    %12 = vector.load %arg5[%c0_9, %c0_10] : memref<128x32xf32, #tpu.memory_space<vmem>>, vector<128x32xf32>
    %cst_11 = arith.constant dense<0.000000e+00> : vector<16x32xf32>
    %13 = tpu.matmul %10, %12, %cst_11 {dimension_numbers = #tpu.dot_dimension_numbers<[1], [0], [0], [1], [0, 0, 1, 1], [], []>} : vector<16x128xf32>, vector<128x32xf32>, vector<16x32xf32> -> vector<16x32xf32>
    %14 = arith.addf %11, %13 : vector<16x32xf32>
    %c0_12 = arith.constant 0 : index
    %c0_13 = arith.constant 0 : index
    %15 = vector.load %arg11[%c0_12, %c0_13] : memref<16x32xf32, #tpu.memory_space<vmem>>, vector<16x32xf32>
    tpu.vector_store %arg11[%c0_12, %c0_13], %14 {strides = array<i32>} : memref<16x32xf32, #tpu.memory_space<vmem>>, vector<16x32xf32>,
    %c0_i32_14 = arith.constant 0 : i32
    %16 = arith.cmpi eq, %arg1, %c0_i32_14 : i32
    %17 = arith.extui %16 : i1 to i32
    %c0_i32_15 = arith.constant 0 : i32
    %18 = arith.cmpi ne, %17, %c0_i32_15 : i32
    scf.if %18 {
      %c0_16 = arith.constant 0 : index
      %c0_17 = arith.constant 0 : index
      %19 = vector.load %arg11[%c0_16, %c0_17] : memref<16x32xf32, #tpu.memory_space<vmem>>, vector<16x32xf32>
      %c0_18 = arith.constant 0 : index
      %c0_19 = arith.constant 0 : index
      %20 = vector.load %arg6[%c0_18, %c0_19] : memref<1x32xf32, #tpu.memory_space<vmem>>, vector<1x32xf32>
      %21 = vector.broadcast %20 : vector<1x32xf32> to vector<16x32xf32>
      %22 = arith.addf %19, %21 : vector<16x32xf32>
      %c0_20 = arith.constant 0 : index
      %c0_21 = arith.constant 0 : index
      %23 = vector.load %arg7[%c0_20, %c0_21] : memref<16x32xf32, #tpu.memory_space<vmem>>, vector<16x32xf32>
      %24 = arith.addf %22, %23 : vector<16x32xf32>
      %cst_22 = arith.constant dense<0.000000e+00> : vector<16xf32>
      %25 = vector.multi_reduction <add>, %24, %cst_22 [1] : vector<16x32xf32> to vector<16xf32>
      %26 = vector.shape_cast %25 : vector<16xf32> to vector<16x1xf32>
      %cst_23 = arith.constant 3.200000e+01 : f32
      %27 = vector.broadcast %cst_23 : f32 to vector<16x1xf32>
      %28 = arith.divf %26, %27 : vector<16x1xf32>
      %29 = vector.broadcast %28 : vector<16x1xf32> to vector<16x32xf32>
      %30 = arith.subf %24, %29 : vector<16x32xf32>
      %31 = arith.mulf %30, %30 : vector<16x32xf32>
      %cst_24 = arith.constant dense<0.000000e+00> : vector<16xf32>
      %32 = vector.multi_reduction <add>, %31, %cst_24 [1] : vector<16x32xf32> to vector<16xf32>
      %33 = vector.shape_cast %32 : vector<16xf32> to vector<16x1xf32>
      %cst_25 = arith.constant 3.200000e+01 : f32
      %34 = vector.broadcast %cst_25 : f32 to vector<16x1xf32>
      %35 = arith.divf %33, %34 : vector<16x1xf32>
      %36 = vector.broadcast %28 : vector<16x1xf32> to vector<16x32xf32>
      %37 = arith.subf %24, %36 : vector<16x32xf32>
      %cst_26 = arith.constant 9.99999996E-13 : f32
      %38 = vector.broadcast %cst_26 : f32 to vector<16x1xf32>
      %39 = arith.addf %35, %38 : vector<16x1xf32>
      %40 = math.rsqrt %39 : vector<16x1xf32>
      %41 = vector.broadcast %40 : vector<16x1xf32> to vector<16x32xf32>
      %42 = arith.mulf %37, %41 : vector<16x32xf32>
      %c0_27 = arith.constant 0 : index
      %c0_28 = arith.constant 0 : index
      %43 = vector.load %arg8[%c0_27, %c0_28] : memref<1x32xf32, #tpu.memory_space<vmem>>, vector<1x32xf32>
      %44 = vector.broadcast %43 : vector<1x32xf32> to vector<16x32xf32>
      %45 = arith.mulf %44, %42 : vector<16x32xf32>
      %c0_29 = arith.constant 0 : index
      %c0_30 = arith.constant 0 : index
      %46 = vector.load %arg9[%c0_29, %c0_30] : memref<1x32xf32, #tpu.memory_space<vmem>>, vector<1x32xf32>
      %47 = vector.broadcast %46 : vector<1x32xf32> to vector<16x32xf32>
      %48 = arith.addf %45, %47 : vector<16x32xf32>
      %c0_31 = arith.constant 0 : index
      %c0_32 = arith.constant 0 : index
      %49 = vector.load %arg10[%c0_31, %c0_32] : memref<16x32xf32, #tpu.memory_space<vmem>>, vector<16x32xf32>
      tpu.vector_store %arg10[%c0_31, %c0_32], %48 {strides = array<i32>} : memref<16x32xf32, #tpu.memory_space<vmem>>, vector<16x32xf32>,
    } else {
    }
    return
  }
  func.func @transform_0(%arg0: i32, %arg1: i32) -> (i32, i32) {
    %c0_i32 = arith.constant 0 : i32
    %c0_i32_0 = arith.constant 0 : i32
    return %arg0, %c0_i32 : i32, i32
  }
  func.func @transform_1(%arg0: i32, %arg1: i32) -> (i32, i32) {
    %c0_i32 = arith.constant 0 : i32
    %c0_i32_0 = arith.constant 0 : i32
    return %c0_i32, %arg1 : i32, i32
  }
  func.func @transform_2(%arg0: i32, %arg1: i32) -> (i32, i32) {
    %c0_i32 = arith.constant 0 : i32
    %c0_i32_0 = arith.constant 0 : i32
    return %c0_i32, %arg1 : i32, i32
  }
  func.func @transform_3(%arg0: i32, %arg1: i32) -> (i32, i32) {
    %c0_i32 = arith.constant 0 : i32
    %c0_i32_0 = arith.constant 0 : i32
    return %arg1, %c0_i32 : i32, i32
  }
  func.func @transform_4(%arg0: i32, %arg1: i32) -> (i32, i32) {
    %c0_i32 = arith.constant 0 : i32
    %c0_i32_0 = arith.constant 0 : i32
    %c0_i32_1 = arith.constant 0 : i32
    return %c0_i32, %c0_i32_0 : i32, i32
  }
  func.func @transform_5(%arg0: i32, %arg1: i32) -> (i32, i32) {
    %c0_i32 = arith.constant 0 : i32
    %c0_i32_0 = arith.constant 0 : i32
    return %arg0, %c0_i32 : i32, i32
  }
  func.func @transform_6(%arg0: i32, %arg1: i32) -> (i32, i32) {
    %c0_i32 = arith.constant 0 : i32
    %c0_i32_0 = arith.constant 0 : i32
    %c0_i32_1 = arith.constant 0 : i32
    return %c0_i32, %c0_i32_0 : i32, i32
  }
  func.func @transform_7(%arg0: i32, %arg1: i32) -> (i32, i32) {
    %c0_i32 = arith.constant 0 : i32
    %c0_i32_0 = arith.constant 0 : i32
    %c0_i32_1 = arith.constant 0 : i32
    return %c0_i32, %c0_i32_0 : i32, i32
  }
  func.func @transform_8(%arg0: i32, %arg1: i32) -> (i32, i32) {
    %c0_i32 = arith.constant 0 : i32
    %c0_i32_0 = arith.constant 0 : i32
    return %arg0, %c0_i32 : i32, i32
  }
}

module attributes {stable_mosaic.version = 11 : i64} {
  func.func @_ffn_res_ln_kernel(%arg0: i32, %arg1: i32, %arg2: memref<16x32xf32, #tpu.memory_space<vmem>>, %arg3: memref<32x128xf32, #tpu.memory_space<vmem>>, %arg4: memref<1x128xf32, #tpu.memory_space<vmem>>, %arg5: memref<128x32xf32, #tpu.memory_space<vmem>>, %arg6: memref<1x32xf32, #tpu.memory_space<vmem>>, %arg7: memref<16x32xf32, #tpu.memory_space<vmem>>, %arg8: memref<1x32xf32, #tpu.memory_space<vmem>>, %arg9: memref<1x32xf32, #tpu.memory_space<vmem>>, %arg10: memref<16x32xf32, #tpu.memory_space<vmem>>, %arg11: memref<16x32xf32, #tpu.memory_space<vmem>>) attributes {dimension_semantics = [#tpu.dimension_semantics<parallel>, #tpu.dimension_semantics<arbitrary>], iteration_bounds = array<i64: 1, 1>, scalar_prefetch = 0 : i64, scratch_operands = 1 : i64, tpu.core_type = #tpu.core_type<tc>, window_params = [{transform_indices = @transform_0, window_bounds = array<i64: 16, 32>}, {transform_indices = @transform_1, window_bounds = array<i64: 32, 128>}, {transform_indices = @transform_2, window_bounds = array<i64: 1, 128>}, {transform_indices = @transform_3, window_bounds = array<i64: 128, 32>}, {pipeline_mode = #tpu.pipeline_mode<synchronous>, transform_indices = @transform_4, window_bounds = array<i64: 1, 32>}, {transform_indices = @transform_5, window_bounds = array<i64: 16, 32>}, {pipeline_mode = #tpu.pipeline_mode<synchronous>, transform_indices = @transform_6, window_bounds = array<i64: 1, 32>}, {pipeline_mode = #tpu.pipeline_mode<synchronous>, transform_indices = @transform_7, window_bounds = array<i64: 1, 32>}, {transform_indices = @transform_8, window_bounds = array<i64: 16, 32>}]} {
    %c0_i32 = arith.constant 0 : i32
    %0 = arith.cmpi eq, %arg1, %c0_i32 : i32
    %1 = arith.extui %0 : i1 to i32
    %c0_i32_0 = arith.constant 0 : i32
    %2 = arith.cmpi ne, %1, %c0_i32_0 : i32
    scf.if %2 {
      %cst_16 = arith.constant 0.000000e+00 : f32
      %19 = vector.broadcast %cst_16 : f32 to vector<16x32xf32>
      %c0_17 = arith.constant 0 : index
      %c0_18 = arith.constant 0 : index
      %20 = vector.load %arg11[%c0_17, %c0_18] : memref<16x32xf32, #tpu.memory_space<vmem>>, vector<16x32xf32>
      tpu.vector_store %arg11[%c0_17, %c0_18], %19 {strides = array<i32>} : memref<16x32xf32, #tpu.memory_space<vmem>>, vector<16x32xf32>,
    } else {
    }
    %c0 = arith.constant 0 : index
    %c0_1 = arith.constant 0 : index
    %3 = vector.load %arg2[%c0, %c0_1] : memref<16x32xf32, #tpu.memory_space<vmem>>, vector<16x32xf32>
    %c0_2 = arith.constant 0 : index
    %c0_3 = arith.constant 0 : index
    %4 = vector.load %arg3[%c0_2, %c0_3] : memref<32x128xf32, #tpu.memory_space<vmem>>, vector<32x128xf32>
    %cst = arith.constant dense<0.000000e+00> : vector<16x128xf32>
    %5 = tpu.matmul %3, %4, %cst {dimension_numbers = #tpu.dot_dimension_numbers<[1], [0], [0], [1], [0, 0, 1, 1], [], []>} : vector<16x32xf32>, vector<32x128xf32>, vector<16x128xf32> -> vector<16x128xf32>
    %c0_4 = arith.constant 0 : index
    %c0_5 = arith.constant 0 : index
    %6 = vector.load %arg4[%c0_4, %c0_5] : memref<1x128xf32, #tpu.memory_space<vmem>>, vector<1x128xf32>
    %7 = vector.broadcast %6 : vector<1x128xf32> to vector<16x128xf32>
    %8 = arith.addf %5, %7 : vector<16x128xf32>
    %cst_6 = arith.constant 0.000000e+00 : f32
    %9 = vector.broadcast %cst_6 : f32 to vector<16x128xf32>
    %10 = arith.maximumf %8, %9 : vector<16x128xf32>
    %c0_7 = arith.constant 0 : index
    %c0_8 = arith.constant 0 : index
    %11 = vector.load %arg11[%c0_7, %c0_8] : memref<16x32xf32, #tpu.memory_space<vmem>>, vector<16x32xf32>
    %c0_9 = arith.constant 0 : index
    %c0_10 = arith.constant 0 : index
    %12 = vector.load %arg5[%c0_9, %c0_10] : memref<128x32xf32, #tpu.memory_space<vmem>>, vector<128x32xf32>
    %cst_11 = arith.constant dense<0.000000e+00> : vector<16x32xf32>
    %13 = tpu.matmul %10, %12, %cst_11 {dimension_numbers = #tpu.dot_dimension_numbers<[1], [0], [0], [1], [0, 0, 1, 1], [], []>} : vector<16x128xf32>, vector<128x32xf32>, vector<16x32xf32> -> vector<16x32xf32>
    %14 = arith.addf %11, %13 : vector<16x32xf32>
    %c0_12 = arith.constant 0 : index
    %c0_13 = arith.constant 0 : index
    %15 = vector.load %arg11[%c0_12, %c0_13] : memref<16x32xf32, #tpu.memory_space<vmem>>, vector<16x32xf32>
    tpu.vector_store %arg11[%c0_12, %c0_13], %14 {strides = array<i32>} : memref<16x32xf32, #tpu.memory_space<vmem>>, vector<16x32xf32>,
    %c0_i32_14 = arith.constant 0 : i32
    %16 = arith.cmpi eq, %arg1, %c0_i32_14 : i32
    %17 = arith.extui %16 : i1 to i32
    %c0_i32_15 = arith.constant 0 : i32
    %18 = arith.cmpi ne, %17, %c0_i32_15 : i32
    scf.if %18 {
      %c0_16 = arith.constant 0 : index
      %c0_17 = arith.constant 0 : index
      %19 = vector.load %arg11[%c0_16, %c0_17] : memref<16x32xf32, #tpu.memory_space<vmem>>, vector<16x32xf32>
      %c0_18 = arith.constant 0 : index
      %c0_19 = arith.constant 0 : index
      %20 = vector.load %arg6[%c0_18, %c0_19] : memref<1x32xf32, #tpu.memory_space<vmem>>, vector<1x32xf32>
      %21 = vector.broadcast %20 : vector<1x32xf32> to vector<16x32xf32>
      %22 = arith.addf %19, %21 : vector<16x32xf32>
      %c0_20 = arith.constant 0 : index
      %c0_21 = arith.constant 0 : index
      %23 = vector.load %arg7[%c0_20, %c0_21] : memref<16x32xf32, #tpu.memory_space<vmem>>, vector<16x32xf32>
      %24 = arith.addf %22, %23 : vector<16x32xf32>
      %cst_22 = arith.constant dense<0.000000e+00> : vector<16xf32>
      %25 = vector.multi_reduction <add>, %24, %cst_22 [1] : vector<16x32xf32> to vector<16xf32>
      %26 = vector.shape_cast %25 : vector<16xf32> to vector<16x1xf32>
      %cst_23 = arith.constant 3.200000e+01 : f32
      %27 = vector.broadcast %cst_23 : f32 to vector<16x1xf32>
      %28 = arith.divf %26, %27 : vector<16x1xf32>
      %29 = vector.broadcast %28 : vector<16x1xf32> to vector<16x32xf32>
      %30 = arith.subf %24, %29 : vector<16x32xf32>
      %31 = arith.mulf %30, %30 : vector<16x32xf32>
      %cst_24 = arith.constant dense<0.000000e+00> : vector<16xf32>
      %32 = vector.multi_reduction <add>, %31, %cst_24 [1] : vector<16x32xf32> to vector<16xf32>
      %33 = vector.shape_cast %32 : vector<16xf32> to vector<16x1xf32>
      %cst_25 = arith.constant 3.200000e+01 : f32
      %34 = vector.broadcast %cst_25 : f32 to vector<16x1xf32>
      %35 = arith.divf %33, %34 : vector<16x1xf32>
      %36 = vector.broadcast %28 : vector<16x1xf32> to vector<16x32xf32>
      %37 = arith.subf %24, %36 : vector<16x32xf32>
      %cst_26 = arith.constant 9.99999996E-13 : f32
      %38 = vector.broadcast %cst_26 : f32 to vector<16x1xf32>
      %39 = arith.addf %35, %38 : vector<16x1xf32>
      %40 = math.rsqrt %39 : vector<16x1xf32>
      %41 = vector.broadcast %40 : vector<16x1xf32> to vector<16x32xf32>
      %42 = arith.mulf %37, %41 : vector<16x32xf32>
      %c0_27 = arith.constant 0 : index
      %c0_28 = arith.constant 0 : index
      %43 = vector.load %arg8[%c0_27, %c0_28] : memref<1x32xf32, #tpu.memory_space<vmem>>, vector<1x32xf32>
      %44 = vector.broadcast %43 : vector<1x32xf32> to vector<16x32xf32>
      %45 = arith.mulf %44, %42 : vector<16x32xf32>
      %c0_29 = arith.constant 0 : index
      %c0_30 = arith.constant 0 : index
      %46 = vector.load %arg9[%c0_29, %c0_30] : memref<1x32xf32, #tpu.memory_space<vmem>>, vector<1x32xf32>
      %47 = vector.broadcast %46 : vector<1x32xf32> to vector<16x32xf32>
      %48 = arith.addf %45, %47 : vector<16x32xf32>
      %c0_31 = arith.constant 0 : index
      %c0_32 = arith.constant 0 : index
      %49 = vector.load %arg10[%c0_31, %c0_32] : memref<16x32xf32, #tpu.memory_space<vmem>>, vector<16x32xf32>
      tpu.vector_store %arg10[%c0_31, %c0_32], %48 {strides = array<i32>} : memref<16x32xf32, #tpu.memory_space<vmem>>, vector<16x32xf32>,
    } else {
    }
    return
  }
  func.func @transform_0(%arg0: i32, %arg1: i32) -> (i32, i32) {
    %c0_i32 = arith.constant 0 : i32
    %c0_i32_0 = arith.constant 0 : i32
    return %arg0, %c0_i32 : i32, i32
  }
  func.func @transform_1(%arg0: i32, %arg1: i32) -> (i32, i32) {
    %c0_i32 = arith.constant 0 : i32
    %c0_i32_0 = arith.constant 0 : i32
    return %c0_i32, %arg1 : i32, i32
  }
  func.func @transform_2(%arg0: i32, %arg1: i32) -> (i32, i32) {
    %c0_i32 = arith.constant 0 : i32
    %c0_i32_0 = arith.constant 0 : i32
    return %c0_i32, %arg1 : i32, i32
  }
  func.func @transform_3(%arg0: i32, %arg1: i32) -> (i32, i32) {
    %c0_i32 = arith.constant 0 : i32
    %c0_i32_0 = arith.constant 0 : i32
    return %arg1, %c0_i32 : i32, i32
  }
  func.func @transform_4(%arg0: i32, %arg1: i32) -> (i32, i32) {
    %c0_i32 = arith.constant 0 : i32
    %c0_i32_0 = arith.constant 0 : i32
    %c0_i32_1 = arith.constant 0 : i32
    return %c0_i32, %c0_i32_0 : i32, i32
  }
  func.func @transform_5(%arg0: i32, %arg1: i32) -> (i32, i32) {
    %c0_i32 = arith.constant 0 : i32
    %c0_i32_0 = arith.constant 0 : i32
    return %arg0, %c0_i32 : i32, i32
  }
  func.func @transform_6(%arg0: i32, %arg1: i32) -> (i32, i32) {
    %c0_i32 = arith.constant 0 : i32
    %c0_i32_0 = arith.constant 0 : i32
    %c0_i32_1 = arith.constant 0 : i32
    return %c0_i32, %c0_i32_0 : i32, i32
  }
  func.func @transform_7(%arg0: i32, %arg1: i32) -> (i32, i32) {
    %c0_i32 = arith.constant 0 : i32
    %c0_i32_0 = arith.constant 0 : i32
    %c0_i32_1 = arith.constant 0 : i32
    return %c0_i32, %c0_i32_0 : i32, i32
  }
  func.func @transform_8(%arg0: i32, %arg1: i32) -> (i32, i32) {
    %c0_i32 = arith.constant 0 : i32
    %c0_i32_0 = arith.constant 0 : i32
    return %arg0, %c0_i32 : i32, i32
  }
}

module attributes {stable_mosaic.version = 11 : i64} {
  func.func @_linear_res_ln_kernel(%arg0: i32, %arg1: i32, %arg2: memref<16x128xf32, #tpu.memory_space<vmem>>, %arg3: memref<128x32xf32, #tpu.memory_space<vmem>>, %arg4: memref<1x32xf32, #tpu.memory_space<vmem>>, %arg5: memref<16x32xf32, #tpu.memory_space<vmem>>, %arg6: memref<1x32xf32, #tpu.memory_space<vmem>>, %arg7: memref<1x32xf32, #tpu.memory_space<vmem>>, %arg8: memref<16x32xf32, #tpu.memory_space<vmem>>, %arg9: memref<16x32xf32, #tpu.memory_space<vmem>>) attributes {dimension_semantics = [#tpu.dimension_semantics<parallel>, #tpu.dimension_semantics<arbitrary>], iteration_bounds = array<i64: 1, 1>, scalar_prefetch = 0 : i64, scratch_operands = 1 : i64, tpu.core_type = #tpu.core_type<tc>, window_params = [{transform_indices = @transform_0, window_bounds = array<i64: 16, 128>}, {transform_indices = @transform_1, window_bounds = array<i64: 128, 32>}, {pipeline_mode = #tpu.pipeline_mode<synchronous>, transform_indices = @transform_2, window_bounds = array<i64: 1, 32>}, {transform_indices = @transform_3, window_bounds = array<i64: 16, 32>}, {pipeline_mode = #tpu.pipeline_mode<synchronous>, transform_indices = @transform_4, window_bounds = array<i64: 1, 32>}, {pipeline_mode = #tpu.pipeline_mode<synchronous>, transform_indices = @transform_5, window_bounds = array<i64: 1, 32>}, {transform_indices = @transform_6, window_bounds = array<i64: 16, 32>}]} {
    %c0_i32 = arith.constant 0 : i32
    %0 = arith.cmpi eq, %arg1, %c0_i32 : i32
    %1 = arith.extui %0 : i1 to i32
    %c0_i32_0 = arith.constant 0 : i32
    %2 = arith.cmpi ne, %1, %c0_i32_0 : i32
    scf.if %2 {
      %cst_10 = arith.constant 0.000000e+00 : f32
      %12 = vector.broadcast %cst_10 : f32 to vector<16x32xf32>
      %c0_11 = arith.constant 0 : index
      %c0_12 = arith.constant 0 : index
      %13 = vector.load %arg9[%c0_11, %c0_12] : memref<16x32xf32, #tpu.memory_space<vmem>>, vector<16x32xf32>
      tpu.vector_store %arg9[%c0_11, %c0_12], %12 {strides = array<i32>} : memref<16x32xf32, #tpu.memory_space<vmem>>, vector<16x32xf32>,
    } else {
    }
    %c0 = arith.constant 0 : index
    %c0_1 = arith.constant 0 : index
    %3 = vector.load %arg9[%c0, %c0_1] : memref<16x32xf32, #tpu.memory_space<vmem>>, vector<16x32xf32>
    %c0_2 = arith.constant 0 : index
    %c0_3 = arith.constant 0 : index
    %4 = vector.load %arg2[%c0_2, %c0_3] : memref<16x128xf32, #tpu.memory_space<vmem>>, vector<16x128xf32>
    %c0_4 = arith.constant 0 : index
    %c0_5 = arith.constant 0 : index
    %5 = vector.load %arg3[%c0_4, %c0_5] : memref<128x32xf32, #tpu.memory_space<vmem>>, vector<128x32xf32>
    %cst = arith.constant dense<0.000000e+00> : vector<16x32xf32>
    %6 = tpu.matmul %4, %5, %cst {dimension_numbers = #tpu.dot_dimension_numbers<[1], [0], [0], [1], [0, 0, 1, 1], [], []>} : vector<16x128xf32>, vector<128x32xf32>, vector<16x32xf32> -> vector<16x32xf32>
    %7 = arith.addf %3, %6 : vector<16x32xf32>
    %c0_6 = arith.constant 0 : index
    %c0_7 = arith.constant 0 : index
    %8 = vector.load %arg9[%c0_6, %c0_7] : memref<16x32xf32, #tpu.memory_space<vmem>>, vector<16x32xf32>
    tpu.vector_store %arg9[%c0_6, %c0_7], %7 {strides = array<i32>} : memref<16x32xf32, #tpu.memory_space<vmem>>, vector<16x32xf32>,
    %c0_i32_8 = arith.constant 0 : i32
    %9 = arith.cmpi eq, %arg1, %c0_i32_8 : i32
    %10 = arith.extui %9 : i1 to i32
    %c0_i32_9 = arith.constant 0 : i32
    %11 = arith.cmpi ne, %10, %c0_i32_9 : i32
    scf.if %11 {
      %c0_10 = arith.constant 0 : index
      %c0_11 = arith.constant 0 : index
      %12 = vector.load %arg9[%c0_10, %c0_11] : memref<16x32xf32, #tpu.memory_space<vmem>>, vector<16x32xf32>
      %c0_12 = arith.constant 0 : index
      %c0_13 = arith.constant 0 : index
      %13 = vector.load %arg4[%c0_12, %c0_13] : memref<1x32xf32, #tpu.memory_space<vmem>>, vector<1x32xf32>
      %14 = vector.broadcast %13 : vector<1x32xf32> to vector<16x32xf32>
      %15 = arith.addf %12, %14 : vector<16x32xf32>
      %c0_14 = arith.constant 0 : index
      %c0_15 = arith.constant 0 : index
      %16 = vector.load %arg5[%c0_14, %c0_15] : memref<16x32xf32, #tpu.memory_space<vmem>>, vector<16x32xf32>
      %17 = arith.addf %15, %16 : vector<16x32xf32>
      %cst_16 = arith.constant dense<0.000000e+00> : vector<16xf32>
      %18 = vector.multi_reduction <add>, %17, %cst_16 [1] : vector<16x32xf32> to vector<16xf32>
      %19 = vector.shape_cast %18 : vector<16xf32> to vector<16x1xf32>
      %cst_17 = arith.constant 3.200000e+01 : f32
      %20 = vector.broadcast %cst_17 : f32 to vector<16x1xf32>
      %21 = arith.divf %19, %20 : vector<16x1xf32>
      %22 = vector.broadcast %21 : vector<16x1xf32> to vector<16x32xf32>
      %23 = arith.subf %17, %22 : vector<16x32xf32>
      %24 = arith.mulf %23, %23 : vector<16x32xf32>
      %cst_18 = arith.constant dense<0.000000e+00> : vector<16xf32>
      %25 = vector.multi_reduction <add>, %24, %cst_18 [1] : vector<16x32xf32> to vector<16xf32>
      %26 = vector.shape_cast %25 : vector<16xf32> to vector<16x1xf32>
      %cst_19 = arith.constant 3.200000e+01 : f32
      %27 = vector.broadcast %cst_19 : f32 to vector<16x1xf32>
      %28 = arith.divf %26, %27 : vector<16x1xf32>
      %29 = vector.broadcast %21 : vector<16x1xf32> to vector<16x32xf32>
      %30 = arith.subf %17, %29 : vector<16x32xf32>
      %cst_20 = arith.constant 9.99999996E-13 : f32
      %31 = vector.broadcast %cst_20 : f32 to vector<16x1xf32>
      %32 = arith.addf %28, %31 : vector<16x1xf32>
      %33 = math.rsqrt %32 : vector<16x1xf32>
      %34 = vector.broadcast %33 : vector<16x1xf32> to vector<16x32xf32>
      %35 = arith.mulf %30, %34 : vector<16x32xf32>
      %c0_21 = arith.constant 0 : index
      %c0_22 = arith.constant 0 : index
      %36 = vector.load %arg6[%c0_21, %c0_22] : memref<1x32xf32, #tpu.memory_space<vmem>>, vector<1x32xf32>
      %37 = vector.broadcast %36 : vector<1x32xf32> to vector<16x32xf32>
      %38 = arith.mulf %37, %35 : vector<16x32xf32>
      %c0_23 = arith.constant 0 : index
      %c0_24 = arith.constant 0 : index
      %39 = vector.load %arg7[%c0_23, %c0_24] : memref<1x32xf32, #tpu.memory_space<vmem>>, vector<1x32xf32>
      %40 = vector.broadcast %39 : vector<1x32xf32> to vector<16x32xf32>
      %41 = arith.addf %38, %40 : vector<16x32xf32>
      %c0_25 = arith.constant 0 : index
      %c0_26 = arith.constant 0 : index
      %42 = vector.load %arg8[%c0_25, %c0_26] : memref<16x32xf32, #tpu.memory_space<vmem>>, vector<16x32xf32>
      tpu.vector_store %arg8[%c0_25, %c0_26], %41 {strides = array<i32>} : memref<16x32xf32, #tpu.memory_space<vmem>>, vector<16x32xf32>,
    } else {
    }
    return
  }
  func.func @transform_0(%arg0: i32, %arg1: i32) -> (i32, i32) {
    %c0_i32 = arith.constant 0 : i32
    return %arg0, %arg1 : i32, i32
  }
  func.func @transform_1(%arg0: i32, %arg1: i32) -> (i32, i32) {
    %c0_i32 = arith.constant 0 : i32
    %c0_i32_0 = arith.constant 0 : i32
    return %arg1, %c0_i32 : i32, i32
  }
  func.func @transform_2(%arg0: i32, %arg1: i32) -> (i32, i32) {
    %c0_i32 = arith.constant 0 : i32
    %c0_i32_0 = arith.constant 0 : i32
    %c0_i32_1 = arith.constant 0 : i32
    return %c0_i32, %c0_i32_0 : i32, i32
  }
  func.func @transform_3(%arg0: i32, %arg1: i32) -> (i32, i32) {
    %c0_i32 = arith.constant 0 : i32
    %c0_i32_0 = arith.constant 0 : i32
    return %arg0, %c0_i32 : i32, i32
  }
  func.func @transform_4(%arg0: i32, %arg1: i32) -> (i32, i32) {
    %c0_i32 = arith.constant 0 : i32
    %c0_i32_0 = arith.constant 0 : i32
    %c0_i32_1 = arith.constant 0 : i32
    return %c0_i32, %c0_i32_0 : i32, i32
  }
  func.func @transform_5(%arg0: i32, %arg1: i32) -> (i32, i32) {
    %c0_i32 = arith.constant 0 : i32
    %c0_i32_0 = arith.constant 0 : i32
    %c0_i32_1 = arith.constant 0 : i32
    return %c0_i32, %c0_i32_0 : i32, i32
  }
  func.func @transform_6(%arg0: i32, %arg1: i32) -> (i32, i32) {
    %c0_i32 = arith.constant 0 : i32
    %c0_i32_0 = arith.constant 0 : i32
    return %arg0, %c0_i32 : i32, i32
  }
}

module attributes {stable_mosaic.version = 11 : i64} {
  func.func @_ffn_res_ln_kernel(%arg0: i32, %arg1: i32, %arg2: memref<16x32xf32, #tpu.memory_space<vmem>>, %arg3: memref<32x128xf32, #tpu.memory_space<vmem>>, %arg4: memref<1x128xf32, #tpu.memory_space<vmem>>, %arg5: memref<128x32xf32, #tpu.memory_space<vmem>>, %arg6: memref<1x32xf32, #tpu.memory_space<vmem>>, %arg7: memref<16x32xf32, #tpu.memory_space<vmem>>, %arg8: memref<1x32xf32, #tpu.memory_space<vmem>>, %arg9: memref<1x32xf32, #tpu.memory_space<vmem>>, %arg10: memref<16x32xf32, #tpu.memory_space<vmem>>, %arg11: memref<16x32xf32, #tpu.memory_space<vmem>>) attributes {dimension_semantics = [#tpu.dimension_semantics<parallel>, #tpu.dimension_semantics<arbitrary>], iteration_bounds = array<i64: 1, 1>, scalar_prefetch = 0 : i64, scratch_operands = 1 : i64, tpu.core_type = #tpu.core_type<tc>, window_params = [{transform_indices = @transform_0, window_bounds = array<i64: 16, 32>}, {transform_indices = @transform_1, window_bounds = array<i64: 32, 128>}, {transform_indices = @transform_2, window_bounds = array<i64: 1, 128>}, {transform_indices = @transform_3, window_bounds = array<i64: 128, 32>}, {pipeline_mode = #tpu.pipeline_mode<synchronous>, transform_indices = @transform_4, window_bounds = array<i64: 1, 32>}, {transform_indices = @transform_5, window_bounds = array<i64: 16, 32>}, {pipeline_mode = #tpu.pipeline_mode<synchronous>, transform_indices = @transform_6, window_bounds = array<i64: 1, 32>}, {pipeline_mode = #tpu.pipeline_mode<synchronous>, transform_indices = @transform_7, window_bounds = array<i64: 1, 32>}, {transform_indices = @transform_8, window_bounds = array<i64: 16, 32>}]} {
    %c0_i32 = arith.constant 0 : i32
    %0 = arith.cmpi eq, %arg1, %c0_i32 : i32
    %1 = arith.extui %0 : i1 to i32
    %c0_i32_0 = arith.constant 0 : i32
    %2 = arith.cmpi ne, %1, %c0_i32_0 : i32
    scf.if %2 {
      %cst_16 = arith.constant 0.000000e+00 : f32
      %19 = vector.broadcast %cst_16 : f32 to vector<16x32xf32>
      %c0_17 = arith.constant 0 : index
      %c0_18 = arith.constant 0 : index
      %20 = vector.load %arg11[%c0_17, %c0_18] : memref<16x32xf32, #tpu.memory_space<vmem>>, vector<16x32xf32>
      tpu.vector_store %arg11[%c0_17, %c0_18], %19 {strides = array<i32>} : memref<16x32xf32, #tpu.memory_space<vmem>>, vector<16x32xf32>,
    } else {
    }
    %c0 = arith.constant 0 : index
    %c0_1 = arith.constant 0 : index
    %3 = vector.load %arg2[%c0, %c0_1] : memref<16x32xf32, #tpu.memory_space<vmem>>, vector<16x32xf32>
    %c0_2 = arith.constant 0 : index
    %c0_3 = arith.constant 0 : index
    %4 = vector.load %arg3[%c0_2, %c0_3] : memref<32x128xf32, #tpu.memory_space<vmem>>, vector<32x128xf32>
    %cst = arith.constant dense<0.000000e+00> : vector<16x128xf32>
    %5 = tpu.matmul %3, %4, %cst {dimension_numbers = #tpu.dot_dimension_numbers<[1], [0], [0], [1], [0, 0, 1, 1], [], []>} : vector<16x32xf32>, vector<32x128xf32>, vector<16x128xf32> -> vector<16x128xf32>
    %c0_4 = arith.constant 0 : index
    %c0_5 = arith.constant 0 : index
    %6 = vector.load %arg4[%c0_4, %c0_5] : memref<1x128xf32, #tpu.memory_space<vmem>>, vector<1x128xf32>
    %7 = vector.broadcast %6 : vector<1x128xf32> to vector<16x128xf32>
    %8 = arith.addf %5, %7 : vector<16x128xf32>
    %cst_6 = arith.constant 0.000000e+00 : f32
    %9 = vector.broadcast %cst_6 : f32 to vector<16x128xf32>
    %10 = arith.maximumf %8, %9 : vector<16x128xf32>
    %c0_7 = arith.constant 0 : index
    %c0_8 = arith.constant 0 : index
    %11 = vector.load %arg11[%c0_7, %c0_8] : memref<16x32xf32, #tpu.memory_space<vmem>>, vector<16x32xf32>
    %c0_9 = arith.constant 0 : index
    %c0_10 = arith.constant 0 : index
    %12 = vector.load %arg5[%c0_9, %c0_10] : memref<128x32xf32, #tpu.memory_space<vmem>>, vector<128x32xf32>
    %cst_11 = arith.constant dense<0.000000e+00> : vector<16x32xf32>
    %13 = tpu.matmul %10, %12, %cst_11 {dimension_numbers = #tpu.dot_dimension_numbers<[1], [0], [0], [1], [0, 0, 1, 1], [], []>} : vector<16x128xf32>, vector<128x32xf32>, vector<16x32xf32> -> vector<16x32xf32>
    %14 = arith.addf %11, %13 : vector<16x32xf32>
    %c0_12 = arith.constant 0 : index
    %c0_13 = arith.constant 0 : index
    %15 = vector.load %arg11[%c0_12, %c0_13] : memref<16x32xf32, #tpu.memory_space<vmem>>, vector<16x32xf32>
    tpu.vector_store %arg11[%c0_12, %c0_13], %14 {strides = array<i32>} : memref<16x32xf32, #tpu.memory_space<vmem>>, vector<16x32xf32>,
    %c0_i32_14 = arith.constant 0 : i32
    %16 = arith.cmpi eq, %arg1, %c0_i32_14 : i32
    %17 = arith.extui %16 : i1 to i32
    %c0_i32_15 = arith.constant 0 : i32
    %18 = arith.cmpi ne, %17, %c0_i32_15 : i32
    scf.if %18 {
      %c0_16 = arith.constant 0 : index
      %c0_17 = arith.constant 0 : index
      %19 = vector.load %arg11[%c0_16, %c0_17] : memref<16x32xf32, #tpu.memory_space<vmem>>, vector<16x32xf32>
      %c0_18 = arith.constant 0 : index
      %c0_19 = arith.constant 0 : index
      %20 = vector.load %arg6[%c0_18, %c0_19] : memref<1x32xf32, #tpu.memory_space<vmem>>, vector<1x32xf32>
      %21 = vector.broadcast %20 : vector<1x32xf32> to vector<16x32xf32>
      %22 = arith.addf %19, %21 : vector<16x32xf32>
      %c0_20 = arith.constant 0 : index
      %c0_21 = arith.constant 0 : index
      %23 = vector.load %arg7[%c0_20, %c0_21] : memref<16x32xf32, #tpu.memory_space<vmem>>, vector<16x32xf32>
      %24 = arith.addf %22, %23 : vector<16x32xf32>
      %cst_22 = arith.constant dense<0.000000e+00> : vector<16xf32>
      %25 = vector.multi_reduction <add>, %24, %cst_22 [1] : vector<16x32xf32> to vector<16xf32>
      %26 = vector.shape_cast %25 : vector<16xf32> to vector<16x1xf32>
      %cst_23 = arith.constant 3.200000e+01 : f32
      %27 = vector.broadcast %cst_23 : f32 to vector<16x1xf32>
      %28 = arith.divf %26, %27 : vector<16x1xf32>
      %29 = vector.broadcast %28 : vector<16x1xf32> to vector<16x32xf32>
      %30 = arith.subf %24, %29 : vector<16x32xf32>
      %31 = arith.mulf %30, %30 : vector<16x32xf32>
      %cst_24 = arith.constant dense<0.000000e+00> : vector<16xf32>
      %32 = vector.multi_reduction <add>, %31, %cst_24 [1] : vector<16x32xf32> to vector<16xf32>
      %33 = vector.shape_cast %32 : vector<16xf32> to vector<16x1xf32>
      %cst_25 = arith.constant 3.200000e+01 : f32
      %34 = vector.broadcast %cst_25 : f32 to vector<16x1xf32>
      %35 = arith.divf %33, %34 : vector<16x1xf32>
      %36 = vector.broadcast %28 : vector<16x1xf32> to vector<16x32xf32>
      %37 = arith.subf %24, %36 : vector<16x32xf32>
      %cst_26 = arith.constant 9.99999996E-13 : f32
      %38 = vector.broadcast %cst_26 : f32 to vector<16x1xf32>
      %39 = arith.addf %35, %38 : vector<16x1xf32>
      %40 = math.rsqrt %39 : vector<16x1xf32>
      %41 = vector.broadcast %40 : vector<16x1xf32> to vector<16x32xf32>
      %42 = arith.mulf %37, %41 : vector<16x32xf32>
      %c0_27 = arith.constant 0 : index
      %c0_28 = arith.constant 0 : index
      %43 = vector.load %arg8[%c0_27, %c0_28] : memref<1x32xf32, #tpu.memory_space<vmem>>, vector<1x32xf32>
      %44 = vector.broadcast %43 : vector<1x32xf32> to vector<16x32xf32>
      %45 = arith.mulf %44, %42 : vector<16x32xf32>
      %c0_29 = arith.constant 0 : index
      %c0_30 = arith.constant 0 : index
      %46 = vector.load %arg9[%c0_29, %c0_30] : memref<1x32xf32, #tpu.memory_space<vmem>>, vector<1x32xf32>
      %47 = vector.broadcast %46 : vector<1x32xf32> to vector<16x32xf32>
      %48 = arith.addf %45, %47 : vector<16x32xf32>
      %c0_31 = arith.constant 0 : index
      %c0_32 = arith.constant 0 : index
      %49 = vector.load %arg10[%c0_31, %c0_32] : memref<16x32xf32, #tpu.memory_space<vmem>>, vector<16x32xf32>
      tpu.vector_store %arg10[%c0_31, %c0_32], %48 {strides = array<i32>} : memref<16x32xf32, #tpu.memory_space<vmem>>, vector<16x32xf32>,
    } else {
    }
    return
  }
  func.func @transform_0(%arg0: i32, %arg1: i32) -> (i32, i32) {
    %c0_i32 = arith.constant 0 : i32
    %c0_i32_0 = arith.constant 0 : i32
    return %arg0, %c0_i32 : i32, i32
  }
  func.func @transform_1(%arg0: i32, %arg1: i32) -> (i32, i32) {
    %c0_i32 = arith.constant 0 : i32
    %c0_i32_0 = arith.constant 0 : i32
    return %c0_i32, %arg1 : i32, i32
  }
  func.func @transform_2(%arg0: i32, %arg1: i32) -> (i32, i32) {
    %c0_i32 = arith.constant 0 : i32
    %c0_i32_0 = arith.constant 0 : i32
    return %c0_i32, %arg1 : i32, i32
  }
  func.func @transform_3(%arg0: i32, %arg1: i32) -> (i32, i32) {
    %c0_i32 = arith.constant 0 : i32
    %c0_i32_0 = arith.constant 0 : i32
    return %arg1, %c0_i32 : i32, i32
  }
  func.func @transform_4(%arg0: i32, %arg1: i32) -> (i32, i32) {
    %c0_i32 = arith.constant 0 : i32
    %c0_i32_0 = arith.constant 0 : i32
    %c0_i32_1 = arith.constant 0 : i32
    return %c0_i32, %c0_i32_0 : i32, i32
  }
  func.func @transform_5(%arg0: i32, %arg1: i32) -> (i32, i32) {
    %c0_i32 = arith.constant 0 : i32
    %c0_i32_0 = arith.constant 0 : i32
    return %arg0, %c0_i32 : i32, i32
  }
  func.func @transform_6(%arg0: i32, %arg1: i32) -> (i32, i32) {
    %c0_i32 = arith.constant 0 : i32
    %c0_i32_0 = arith.constant 0 : i32
    %c0_i32_1 = arith.constant 0 : i32
    return %c0_i32, %c0_i32_0 : i32, i32
  }
  func.func @transform_7(%arg0: i32, %arg1: i32) -> (i32, i32) {
    %c0_i32 = arith.constant 0 : i32
    %c0_i32_0 = arith.constant 0 : i32
    %c0_i32_1 = arith.constant 0 : i32
    return %c0_i32, %c0_i32_0 : i32, i32
  }
  func.func @transform_8(%arg0: i32, %arg1: i32) -> (i32, i32) {
    %c0_i32 = arith.constant 0 : i32
    %c0_i32_0 = arith.constant 0 : i32
    return %arg0, %c0_i32 : i32, i32
  }
}

</mosaic_0001>

<llo_original>
// kernel: transformer_forward.25
$region0: #{transformer_forward.25}
  #allocation0 [shape = 'u32[]', space=smem, size = 0x4, offset = 0x4, fixed_abs, tag = 'smem constant byte address 0x4 - core index']
  #allocation1 [shape = 'u32[72,128]{1,0:T(1,128)}', space=vmem, size = 0x9000, scoped, tag = 'internal scratch']
  #allocation2 [shape = 'f32[16,128]{1,0:T(8,128)}', space=vmem, size = 0x2000, scoped, tag = 'scratch operand']
  %s0 = inlined_call_operand.vmem [shape: f32[16,128], index: 0, kind: input, shape index: {}]
  %s1 = inlined_call_operand.vmem [shape: f32[128,128], index: 1, kind: input, shape index: {}]
  %s2 = inlined_call_operand.vmem [shape: f32[1,128], index: 2, kind: input, shape index: {}]
  %s3 = inlined_call_operand.vmem [shape: f32[16,128], index: 3, kind: output, shape index: {}]
  %s4 = sld [smem:[#allocation0]]
  $region30: #{transformer_forward.25} parent=0
    _
  %s6 = ssub.s32 1, %s4
  %s7 = scalar_select 0, %s6, %s4
  // Predicated region
  $region2: #{transformer_forward.25} parent=0 // pred_check
    _
  $region3: #{transformer_forward.25} parent=0 // pred_check_branch
    %9 = sbr.rel (0) target = $region5
  $region4: #{transformer_forward.25} parent=0 // pred_region
    _
  $region5: #{transformer_forward.25} parent=0 // pred_fallthru
    _
  // Predicated region
  $region6: #{transformer_forward.25} parent=0 // pred_check
    _
  $region7: #{transformer_forward.25} parent=0 // pred_check_branch
    %11 = sbr.rel (0) target = $region9
  $region8: #{transformer_forward.25} parent=0 // pred_region
    _
  $region9: #{transformer_forward.25} parent=0 // pred_fallthru
    _
  // Predicated region
  $region10: #{transformer_forward.25} parent=0 // pred_check
    _
  $region11: #{transformer_forward.25} parent=0 // pred_check_branch
    %13 = sbr.rel (0) target = $region13
  $region12: #{transformer_forward.25} parent=0 // pred_region
    _
  $region13: #{transformer_forward.25} parent=0 // pred_fallthru
    _
  %p14 = scmp.eq.s32.totalorder 0, 0
  // Predicated region
  $region14: #{transformer_forward.25} parent=0 // pred_check
    %p15 = pneg %p14
  $region15: #{transformer_forward.25} parent=0 // pred_check_branch
    %17 = sbr.rel (%p15) target = $region17
  $region16: #{transformer_forward.25} parent=0 // pred_region
    %18 = vst [vmem:[#allocation2] sm:$0xff] 0.0
    %19 = vst [vmem:[#allocation2 + $0x8] sm:$0xff] 0.0
  $region17: #{transformer_forward.25} parent=0 // pred_fallthru
    _
  %v20 = vld [vmem:[#allocation2] sm:$0xff]
  %v21 = vld [vmem:[#allocation2 + $0x8] sm:$0xff]
  %v22 = vld [vmem:[%s0] sm:$0xff]
  %v23 = vld [vmem:[%s0 + $0x8] sm:$0xff]
  %v24 = vld [vmem:[%s1] sm:$0xff]
  %v25 = vld [vmem:[%s1 + $0x8] sm:$0xff]
  %v26 = vld [vmem:[%s1 + $0x10] sm:$0xff]
  %v27 = vld [vmem:[%s1 + $0x18] sm:$0xff]
  %v28 = vld [vmem:[%s1 + $0x20] sm:$0xff]
  %v29 = vld [vmem:[%s1 + $0x28] sm:$0xff]
  %v30 = vld [vmem:[%s1 + $0x30] sm:$0xff]
  %v31 = vld [vmem:[%s1 + $0x38] sm:$0xff]
  %v32 = vld [vmem:[%s1 + $0x40] sm:$0xff]
  %v33 = vld [vmem:[%s1 + $0x48] sm:$0xff]
  %v34 = vld [vmem:[%s1 + $0x50] sm:$0xff]
  %v35 = vld [vmem:[%s1 + $0x58] sm:$0xff]
  %v36 = vld [vmem:[%s1 + $0x60] sm:$0xff]
  %v37 = vld [vmem:[%s1 + $0x68] sm:$0xff]
  %v38 = vld [vmem:[%s1 + $0x70] sm:$0xff]
  %v39 = vld [vmem:[%s1 + $0x78] sm:$0xff]
  %40 = vmatpush.msra.mxu0 %v39
  %41 = vmatpush.msra.mxu0 %v38
  %42 = vmatpush.msra.mxu0 %v37
  %43 = vmatpush.msra.mxu0 %v36
  %44 = vmatpush.msra.mxu0 %v35
  %45 = vmatpush.msra.mxu0 %v34
  %46 = vmatpush.msra.mxu0 %v33
  %47 = vmatpush.msra.mxu0 %v32
  %48 = vmatpush.msra.mxu0 %v31
  %49 = vmatpush.msra.mxu0 %v30
  %50 = vmatpush.msra.mxu0 %v29
  %51 = vmatpush.msra.mxu0 %v28
  %52 = vmatpush.msra.mxu0 %v27
  %53 = vmatpush.msra.mxu0 %v26
  %54 = vmatpush.msra.mxu0 %v25
  %55 = vmatpush.msra.mxu0 %v24
  %56 = vmatmul.f32.gmra.mxu0 %v22
  %v57 = vpop.f32.mrf.mxu0
  %v58 = vadd.f32 0.0, %v57
  %59 = vmatmul.f32.gmra.mxu0 %v23
  %v60 = vpop.f32.mrf.mxu0
  %v61 = vadd.f32 0.0, %v60
  %62 = vdwg.mxu0
  %v63 = vadd.f32 %v20, %v58
  %v64 = vadd.f32 %v21, %v61
  %65 = vst [vmem:[#allocation2] sm:$0xff] %v63
  %66 = vst [vmem:[#allocation2 + $0x8] sm:$0xff] %v64
  // Predicated region
  $region18: #{transformer_forward.25} parent=0 // pred_check
    %p67 = pneg %p14
  $region19: #{transformer_forward.25} parent=0 // pred_check_branch
    %69 = sbr.rel (%p67) target = $region21
  $region20: #{transformer_forward.25} parent=0 // pred_region
    %v70 = vld [vmem:[#allocation2] sm:$0xff]
    %v71 = vld [vmem:[#allocation2 + $0x8] sm:$0xff]
    %v72 = vld [vmem:[%s2] sm:$0x1]
    %v74 = vperm.slane %v72, 0
    %v76 = vadd.f32 %v70, %v74
    %v77 = vadd.f32 %v71, %v74
    %78 = vst [vmem:[%s3] sm:$0xff] %v76
    %79 = vst [vmem:[%s3 + $0x8] sm:$0xff] %v77
  $region21: #{transformer_forward.25} parent=0 // pred_fallthru
    _
  // Predicated region
  $region22: #{transformer_forward.25} parent=0 // pred_check
    _
  $region23: #{transformer_forward.25} parent=0 // pred_check_branch
    %81 = sbr.rel (0) target = $region25
  $region24: #{transformer_forward.25} parent=0 // pred_region
    _
  $region25: #{transformer_forward.25} parent=0 // pred_fallthru
    _
  // Predicated region
  $region26: #{transformer_forward.25} parent=0 // pred_check
    _
  $region27: #{transformer_forward.25} parent=0 // pred_check_branch
    %83 = sbr.rel (0) target = $region29
  $region28: #{transformer_forward.25} parent=0 // pred_region
    _
  $region29: #{transformer_forward.25} parent=0 // pred_fallthru
    _

// kernel: transformer_forward.33
$region0: #{transformer_forward.33}
  #allocation0 [shape = 'u32[]', space=smem, size = 0x4, offset = 0x4, fixed_abs, tag = 'smem constant byte address 0x4 - core index']
  #allocation1 [shape = 'u32[72,128]{1,0:T(1,128)}', space=vmem, size = 0x9000, scoped, tag = 'internal scratch']
  #allocation2 [shape = 'f32[16,128]{1,0:T(8,128)}', space=vmem, size = 0x2000, scoped, tag = 'scratch operand']
  %s0 = inlined_call_operand.vmem [shape: f32[16,128], index: 0, kind: input, shape index: {}]
  %s1 = inlined_call_operand.hbm [shape: f32[128,128], index: 1, kind: input, shape index: {}]
  %s2 = inlined_call_operand.vmem [shape: f32[1,128], index: 2, kind: input, shape index: {}]
  %s3 = inlined_call_operand.vmem [shape: f32[16,128], index: 3, kind: output, shape index: {}]
  %s4 = sld [smem:[#allocation0]]
  $region34: #{transformer_forward.33} parent=0
    _
  %s6 = ssub.s32 1, %s4
  %s7 = scalar_select 0, %s6, %s4
  $region1: #{transformer_forward.33} parent=0
    #allocation3 [shape = 'u8[65536]{0}', space=vmem, size = 0x10000, scoped, tag = 'input window, operand 1, single buffered']
    #allocation4 [shape = 's32[1]{0}', space=sflag, size = 0x4, scoped, tag = 'scoped memory for transformer_forward.33']
    %8 = vsyncpa [#allocation4], 0
    // Predicated region
    $region2: #{transformer_forward.33} parent=1 // pred_check
      _
    $region3: #{transformer_forward.33} parent=1 // pred_check_branch
      %10 = sbr.rel (0) target = $region5
    $region4: #{transformer_forward.33} parent=1 // pred_region
      _
    $region5: #{transformer_forward.33} parent=1 // pred_fallthru
      _
    // Predicated region
    $region6: #{transformer_forward.33} parent=1 // pred_check
      _
    $region7: #{transformer_forward.33} parent=1 // pred_check_branch
      %12 = sbr.rel (0) target = $region9
    $region8: #{transformer_forward.33} parent=1 // pred_region
      %14 = vsyncadd [#allocation4], 0
      %s15 = sshll.u32 %s1, 4
      %s16 = int_to_ptr.hbm [resolvable:$true] %s15
      %s17 = sshll.u32 [#allocation3], 4
      %s18 = int_to_ptr.vmem [resolvable:$true] %s17
      %23 = dma.hbm_to_vmem [thread:$0]  %s16, 2048, %s18, [#allocation4], 128, 128, 8
    $region9: #{transformer_forward.33} parent=1 // pred_fallthru
      _
    // Predicated region
    $region10: #{transformer_forward.33} parent=1 // pred_check
      _
    $region11: #{transformer_forward.33} parent=1 // pred_check_branch
      %25 = sbr.rel (0) target = $region13
    $region12: #{transformer_forward.33} parent=1 // pred_region
      _
    $region13: #{transformer_forward.33} parent=1 // pred_fallthru
      _
    // Predicated region
    $region14: #{transformer_forward.33} parent=1 // pred_check
      _
    $region15: #{transformer_forward.33} parent=1 // pred_check_branch
      %27 = sbr.rel (0) target = $region17
    $region16: #{transformer_forward.33} parent=1 // pred_region
      %29 = dma.done [#allocation4], 2048
    $region17: #{transformer_forward.33} parent=1 // pred_fallthru
      _
    %p30 = scmp.eq.s32.totalorder 0, 0
    // Predicated region
    $region18: #{transformer_forward.33} parent=1 // pred_check
      %p31 = pneg %p30
    $region19: #{transformer_forward.33} parent=1 // pred_check_branch
      %33 = sbr.rel (%p31) target = $region21
    $region20: #{transformer_forward.33} parent=1 // pred_region
      %34 = vst [vmem:[#allocation2] sm:$0xff] 0.0
      %35 = vst [vmem:[#allocation2 + $0x8] sm:$0xff] 0.0
    $region21: #{transformer_forward.33} parent=1 // pred_fallthru
      _
    %v36 = vld [vmem:[#allocation2] sm:$0xff]
    %v37 = vld [vmem:[#allocation2 + $0x8] sm:$0xff]
    %v38 = vld [vmem:[%s0] sm:$0xff]
    %v39 = vld [vmem:[%s0 + $0x8] sm:$0xff]
    %v40 = vld [vmem:[#allocation3] sm:$0xff]
    %v41 = vld [vmem:[#allocation3 + $0x8] sm:$0xff]
    %v42 = vld [vmem:[#allocation3 + $0x10] sm:$0xff]
    %v43 = vld [vmem:[#allocation3 + $0x18] sm:$0xff]
    %v44 = vld [vmem:[#allocation3 + $0x20] sm:$0xff]
    %v45 = vld [vmem:[#allocation3 + $0x28] sm:$0xff]
    %v46 = vld [vmem:[#allocation3 + $0x30] sm:$0xff]
    %v47 = vld [vmem:[#allocation3 + $0x38] sm:$0xff]
    %v48 = vld [vmem:[#allocation3 + $0x40] sm:$0xff]
    %v49 = vld [vmem:[#allocation3 + $0x48] sm:$0xff]
    %v50 = vld [vmem:[#allocation3 + $0x50] sm:$0xff]
    %v51 = vld [vmem:[#allocation3 + $0x58] sm:$0xff]
    %v52 = vld [vmem:[#allocation3 + $0x60] sm:$0xff]
    %v53 = vld [vmem:[#allocation3 + $0x68] sm:$0xff]
    %v54 = vld [vmem:[#allocation3 + $0x70] sm:$0xff]
    %v55 = vld [vmem:[#allocation3 + $0x78] sm:$0xff]
    %56 = vmatpush.msra.mxu0 %v55
    %57 = vmatpush.msra.mxu0 %v54
    %58 = vmatpush.msra.mxu0 %v53
    %59 = vmatpush.msra.mxu0 %v52
    %60 = vmatpush.msra.mxu0 %v51
    %61 = vmatpush.msra.mxu0 %v50
    %62 = vmatpush.msra.mxu0 %v49
    %63 = vmatpush.msra.mxu0 %v48
    %64 = vmatpush.msra.mxu0 %v47
    %65 = vmatpush.msra.mxu0 %v46
    %66 = vmatpush.msra.mxu0 %v45
    %67 = vmatpush.msra.mxu0 %v44
    %68 = vmatpush.msra.mxu0 %v43
    %69 = vmatpush.msra.mxu0 %v42
    %70 = vmatpush.msra.mxu0 %v41
    %71 = vmatpush.msra.mxu0 %v40
    %72 = vmatmul.f32.gmra.mxu0 %v38
    %v73 = vpop.f32.mrf.mxu0
    %v74 = vadd.f32 0.0, %v73
    %75 = vmatmul.f32.gmra.mxu0 %v39
    %v76 = vpop.f32.mrf.mxu0
    %v77 = vadd.f32 0.0, %v76
    %78 = vdwg.mxu0
    %v79 = vadd.f32 %v36, %v74
    %v80 = vadd.f32 %v37, %v77
    %81 = vst [vmem:[#allocation2] sm:$0xff] %v79
    %82 = vst [vmem:[#allocation2 + $0x8] sm:$0xff] %v80
    // Predicated region
    $region22: #{transformer_forward.33} parent=1 // pred_check
      %p83 = pneg %p30
    $region23: #{transformer_forward.33} parent=1 // pred_check_branch
      %85 = sbr.rel (%p83) target = $region25
    $region24: #{transformer_forward.33} parent=1 // pred_region
      %v86 = vld [vmem:[#allocation2] sm:$0xff]
      %v87 = vld [vmem:[#allocation2 + $0x8] sm:$0xff]
      %v88 = vld [vmem:[%s2] sm:$0x1]
      %v90 = vperm.slane %v88, 0
      %v92 = vadd.f32 %v86, %v90
      %v93 = vadd.f32 %v87, %v90
      %94 = vst [vmem:[%s3] sm:$0xff] %v92
      %95 = vst [vmem:[%s3 + $0x8] sm:$0xff] %v93
    $region25: #{transformer_forward.33} parent=1 // pred_fallthru
      _
    // Predicated region
    $region26: #{transformer_forward.33} parent=1 // pred_check
      _
    $region27: #{transformer_forward.33} parent=1 // pred_check_branch
      %97 = sbr.rel (0) target = $region29
    $region28: #{transformer_forward.33} parent=1 // pred_region
      _
    $region29: #{transformer_forward.33} parent=1 // pred_fallthru
      _
    // Predicated region
    $region30: #{transformer_forward.33} parent=1 // pred_check
      _
    $region31: #{transformer_forward.33} parent=1 // pred_check_branch
      %99 = sbr.rel (0) target = $region33
    $region32: #{transformer_forward.33} parent=1 // pred_region
      _
    $region33: #{transformer_forward.33} parent=1 // pred_fallthru
      _
    %100 = vsyncpa [#allocation4], 1

// kernel: transformer_forward.35
$region0: #{transformer_forward.35}
  #allocation0 [shape = 'u32[]', space=smem, size = 0x4, offset = 0x4, fixed_abs, tag = 'smem constant byte address 0x4 - core index']
  #allocation1 [shape = 'u32[72,128]{1,0:T(1,128)}', space=vmem, size = 0x9000, scoped, tag = 'internal scratch']
  #allocation2 [shape = 'f32[16,32]{1,0:T(8,128)}', space=vmem, size = 0x2000, scoped, tag = 'scratch operand']
  %s0 = inlined_call_operand.vmem [shape: f32[16,128], index: 0, kind: input, shape index: {}]
  %s1 = inlined_call_operand.hbm [shape: f32[128,32], index: 1, kind: input, shape index: {}]
  %s2 = inlined_call_operand.vmem [shape: f32[1,32], index: 2, kind: input, shape index: {}, may-alias: {2,5}]
  %s3 = inlined_call_operand.vmem [shape: f32[16,32], index: 3, kind: input, shape index: {}]
  %s4 = inlined_call_operand.vmem [shape: f32[1,32], index: 4, kind: input, shape index: {}]
  %s5 = inlined_call_operand.vmem [shape: f32[1,32], index: 5, kind: input, shape index: {}, may-alias: {2,5}]
  %s6 = inlined_call_operand.vmem [shape: f32[16,32], index: 6, kind: output, shape index: {}]
  %s7 = sld [smem:[#allocation0]]
  $region46: #{transformer_forward.35} parent=0
    _
  %s9 = ssub.s32 1, %s7
  %s10 = scalar_select 0, %s9, %s7
  $region1: #{transformer_forward.35} parent=0
    #allocation3 [shape = 'u8[65536]{0}', space=vmem, size = 0x10000, scoped, tag = 'input window, operand 1, single buffered']
    #allocation4 [shape = 's32[1]{0}', space=sflag, size = 0x4, scoped, tag = 'scoped memory for transformer_forward.35']
    %11 = vsyncpa [#allocation4], 0
    // Predicated region
    $region2: #{transformer_forward.35} parent=1 // pred_check
      _
    $region3: #{transformer_forward.35} parent=1 // pred_check_branch
      %13 = sbr.rel (0) target = $region5
    $region4: #{transformer_forward.35} parent=1 // pred_region
      _
    $region5: #{transformer_forward.35} parent=1 // pred_fallthru
      _
    // Predicated region
    $region6: #{transformer_forward.35} parent=1 // pred_check
      _
    $region7: #{transformer_forward.35} parent=1 // pred_check_branch
      %15 = sbr.rel (0) target = $region9
    $region8: #{transformer_forward.35} parent=1 // pred_region
      %17 = vsyncadd [#allocation4], 0
      %s18 = sshll.u32 %s1, 4
      %s19 = int_to_ptr.hbm [resolvable:$true] %s18
      %s20 = sshll.u32 [#allocation3], 4
      %s21 = int_to_ptr.vmem [resolvable:$true] %s20
      %26 = dma.hbm_to_vmem [thread:$0]  %s19, 2048, %s21, [#allocation4], 128, 128, 8
    $region9: #{transformer_forward.35} parent=1 // pred_fallthru
      _
    // Predicated region
    $region10: #{transformer_forward.35} parent=1 // pred_check
      _
    $region11: #{transformer_forward.35} parent=1 // pred_check_branch
      %28 = sbr.rel (0) target = $region13
    $region12: #{transformer_forward.35} parent=1 // pred_region
      _
    $region13: #{transformer_forward.35} parent=1 // pred_fallthru
      _
    // Predicated region
    $region14: #{transformer_forward.35} parent=1 // pred_check
      _
    $region15: #{transformer_forward.35} parent=1 // pred_check_branch
      %30 = sbr.rel (0) target = $region17
    $region16: #{transformer_forward.35} parent=1 // pred_region
      _
    $region17: #{transformer_forward.35} parent=1 // pred_fallthru
      _
    // Predicated region
    $region18: #{transformer_forward.35} parent=1 // pred_check
      _
    $region19: #{transformer_forward.35} parent=1 // pred_check_branch
      %32 = sbr.rel (0) target = $region21
    $region20: #{transformer_forward.35} parent=1 // pred_region
      _
    $region21: #{transformer_forward.35} parent=1 // pred_fallthru
      _
    // Predicated region
    $region22: #{transformer_forward.35} parent=1 // pred_check
      _
    $region23: #{transformer_forward.35} parent=1 // pred_check_branch
      %34 = sbr.rel (0) target = $region25
    $region24: #{transformer_forward.35} parent=1 // pred_region
      _
    $region25: #{transformer_forward.35} parent=1 // pred_fallthru
      _
    // Predicated region
    $region26: #{transformer_forward.35} parent=1 // pred_check
      _
    $region27: #{transformer_forward.35} parent=1 // pred_check_branch
      %36 = sbr.rel (0) target = $region29
    $region28: #{transformer_forward.35} parent=1 // pred_region
      %38 = dma.done [#allocation4], 2048
    $region29: #{transformer_forward.35} parent=1 // pred_fallthru
      _
    %p39 = scmp.eq.s32.totalorder 0, 0
    // Predicated region
    $region30: #{transformer_forward.35} parent=1 // pred_check
      %p40 = pneg %p39
    $region31: #{transformer_forward.35} parent=1 // pred_check_branch
      %42 = sbr.rel (%p40) target = $region33
    $region32: #{transformer_forward.35} parent=1 // pred_region
      %vm43 = vcmask 261120
      %44 = vst.msk [vmem:[#allocation2] sm:$0xff] %vm43, 0.0
      %45 = vst.msk [vmem:[#allocation2 + $0x8] sm:$0xff] %vm43, 0.0
    $region33: #{transformer_forward.35} parent=1 // pred_fallthru
      _
    %v46 = vld [vmem:[#allocation2] sm:$0xff]
    %v47 = vld [vmem:[#allocation2 + $0x8] sm:$0xff]
    %v48 = vld [vmem:[%s0] sm:$0xff]
    %v49 = vld [vmem:[%s0 + $0x8] sm:$0xff]
    %v50 = vld [vmem:[#allocation3] sm:$0xff]
    %v51 = vld [vmem:[#allocation3 + $0x8] sm:$0xff]
    %v52 = vld [vmem:[#allocation3 + $0x10] sm:$0xff]
    %v53 = vld [vmem:[#allocation3 + $0x18] sm:$0xff]
    %v54 = vld [vmem:[#allocation3 + $0x20] sm:$0xff]
    %v55 = vld [vmem:[#allocation3 + $0x28] sm:$0xff]
    %v56 = vld [vmem:[#allocation3 + $0x30] sm:$0xff]
    %v57 = vld [vmem:[#allocation3 + $0x38] sm:$0xff]
    %v58 = vld [vmem:[#allocation3 + $0x40] sm:$0xff]
    %v59 = vld [vmem:[#allocation3 + $0x48] sm:$0xff]
    %v60 = vld [vmem:[#allocation3 + $0x50] sm:$0xff]
    %v61 = vld [vmem:[#allocation3 + $0x58] sm:$0xff]
    %v62 = vld [vmem:[#allocation3 + $0x60] sm:$0xff]
    %v63 = vld [vmem:[#allocation3 + $0x68] sm:$0xff]
    %v64 = vld [vmem:[#allocation3 + $0x70] sm:$0xff]
    %v65 = vld [vmem:[#allocation3 + $0x78] sm:$0xff]
    %66 = vmatpush.msra.mxu0 %v65
    %67 = vmatpush.msra.mxu0 %v64
    %68 = vmatpush.msra.mxu0 %v63
    %69 = vmatpush.msra.mxu0 %v62
    %70 = vmatpush.msra.mxu0 %v61
    %71 = vmatpush.msra.mxu0 %v60
    %72 = vmatpush.msra.mxu0 %v59
    %73 = vmatpush.msra.mxu0 %v58
    %74 = vmatpush.msra.mxu0 %v57
    %75 = vmatpush.msra.mxu0 %v56
    %76 = vmatpush.msra.mxu0 %v55
    %77 = vmatpush.msra.mxu0 %v54
    %78 = vmatpush.msra.mxu0 %v53
    %79 = vmatpush.msra.mxu0 %v52
    %80 = vmatpush.msra.mxu0 %v51
    %81 = vmatpush.msra.mxu0 %v50
    %82 = vmatmul.f32.gmra.mxu0 %v48
    %v83 = vpop.f32.mrf.mxu0
    %v84 = vadd.f32 0.0, %v83
    %85 = vmatmul.f32.gmra.mxu0 %v49
    %v86 = vpop.f32.mrf.mxu0
    %v87 = vadd.f32 0.0, %v86
    %88 = vdwg.mxu0
    %v89 = vadd.f32 %v46, %v84
    %v90 = vadd.f32 %v47, %v87
    %vm91 = vcmask 261120
    %92 = vst.msk [vmem:[#allocation2] sm:$0xff] %vm91, %v89
    %93 = vst.msk [vmem:[#allocation2 + $0x8] sm:$0xff] %vm91, %v90
    // Predicated region
    $region34: #{transformer_forward.35} parent=1 // pred_check
      %p94 = pneg %p39
    $region35: #{transformer_forward.35} parent=1 // pred_check_branch
      %96 = sbr.rel (%p94) target = $region37
    $region36: #{transformer_forward.35} parent=1 // pred_region
      %v97 = vld [vmem:[#allocation2] sm:$0xff]
      %v98 = vld [vmem:[#allocation2 + $0x8] sm:$0xff]
      %v99 = vld [vmem:[%s2] sm:$0x1]
      %v101 = vperm.slane %v99, 0
      %v103 = vadd.f32 %v97, %v101
      %v104 = vadd.f32 %v98, %v101
      %v105 = vld [vmem:[%s3] sm:$0xff]
      %v106 = vld [vmem:[%s3 + $0x8] sm:$0xff]
      %v107 = vadd.f32 %v103, %v105
      %v108 = vadd.f32 %v104, %v106
      %v109 = vsel %vm91, %v107, 0.0
      %110 = vadd.xlane.f32.xlu0 %v109
      %v111 = vpop.xlane.xlu0 %110
      %v112 = vsel %vm91, %v108, 0.0
      %113 = vadd.xlane.f32.xlu0 %v112
      %v114 = vpop.xlane.xlu0 %113
      %v115 = vrcp.pop 32.0
      %v116 = vmul.f32 32.0, %v115
      %v117 = vsub.f32 1.0, %v116
      %v118 = vmul.f32 %v115, %v117
      %v119 = vadd.f32 %v115, %v118
      %vm120 = vweird.f32 %v115
      %v121 = vsel %vm120, %v115, %v119
      %v122 = vmul.f32 %v111, %v121
      %v123 = vmul.f32 %v114, %v121
      %v124 = vsub.f32 %v107, %v122
      %v125 = vsub.f32 %v108, %v123
      %v126 = vmul.f32 %v124, %v124
      %v127 = vmul.f32 %v125, %v125
      %v128 = vsel %vm91, %v126, 0.0
      %129 = vadd.xlane.f32.xlu0 %v128
      %v130 = vpop.xlane.xlu0 %129
      %v131 = vsel %vm91, %v127, 0.0
      %132 = vadd.xlane.f32.xlu0 %v131
      %v133 = vpop.xlane.xlu0 %132
      %v134 = vmul.f32 %v130, %v121
      %v135 = vmul.f32 %v133, %v121
      %v136 = vadd.f32 %v134, 1e-12
      %v137 = vadd.f32 %v135, 1e-12
      %v138 = vrsqrt.pop %v136
      %v139 = vmul.f32 %v138, %v136
      %v140 = vmul.f32 %v139, %v138
      %v141 = vmul.f32 0.5, %v140
      %v142 = vsub.f32 1.5, %v141
      %v143 = vmul.f32 %v138, %v142
      %vm144 = vweird.f32 %v136
      %vm145 = vweird.f32 %v138
      %vm146 = vmor %vm144, %vm145
      %v147 = vsel %vm146, %v138, %v143
      %v148 = vrsqrt.pop %v137
      %v149 = vmul.f32 %v148, %v137
      %v150 = vmul.f32 %v149, %v148
      %v151 = vmul.f32 0.5, %v150
      %v152 = vsub.f32 1.5, %v151
      %v153 = vmul.f32 %v148, %v152
      %vm154 = vweird.f32 %v137
      %vm155 = vweird.f32 %v148
      %vm156 = vmor %vm154, %vm155
      %v157 = vsel %vm156, %v148, %v153
      %v158 = vmul.f32 %v124, %v147
      %v159 = vmul.f32 %v125, %v157
      %v160 = vld [vmem:[%s4] sm:$0x1]
      %v162 = vperm.slane %v160, 0
      %v164 = vmul.f32 %v162, %v158
      %v165 = vmul.f32 %v162, %v159
      %v166 = vld [vmem:[%s5] sm:$0x1]
      %v168 = vperm.slane %v166, 0
      %v170 = vadd.f32 %v164, %v168
      %v171 = vadd.f32 %v165, %v168
      %172 = vst.msk [vmem:[%s6] sm:$0xff] %vm91, %v170
      %173 = vst.msk [vmem:[%s6 + $0x8] sm:$0xff] %vm91, %v171
    $region37: #{transformer_forward.35} parent=1 // pred_fallthru
      _
    // Predicated region
    $region38: #{transformer_forward.35} parent=1 // pred_check
      _
    $region39: #{transformer_forward.35} parent=1 // pred_check_branch
      %175 = sbr.rel (0) target = $region41
    $region40: #{transformer_forward.35} parent=1 // pred_region
      _
    $region41: #{transformer_forward.35} parent=1 // pred_fallthru
      _
    // Predicated region
    $region42: #{transformer_forward.35} parent=1 // pred_check
      _
    $region43: #{transformer_forward.35} parent=1 // pred_check_branch
      %177 = sbr.rel (0) target = $region45
    $region44: #{transformer_forward.35} parent=1 // pred_region
      _
    $region45: #{transformer_forward.35} parent=1 // pred_fallthru
      _
    %178 = vsyncpa [#allocation4], 1

// kernel: transformer_forward.34
$region0: #{transformer_forward.34}
  #allocation0 [shape = 'u32[]', space=smem, size = 0x4, offset = 0x4, fixed_abs, tag = 'smem constant byte address 0x4 - core index']
  #allocation1 [shape = 'u32[72,128]{1,0:T(1,128)}', space=vmem, size = 0x9000, scoped, tag = 'internal scratch']
  %s0 = inlined_call_operand.vmem [shape: f32[2,8,32], index: 0, kind: input, shape index: {}]
  %s1 = inlined_call_operand.vmem [shape: f32[2,8,32], index: 1, kind: input, shape index: {}]
  %s2 = inlined_call_operand.vmem [shape: f32[2,8,32], index: 2, kind: input, shape index: {}]
  %s3 = inlined_call_operand.vmem [shape: f32[2,8,1], index: 3, kind: input, shape index: {}]
  %s4 = inlined_call_operand.vmem [shape: f32[2,1,8], index: 4, kind: input, shape index: {}]
  %s5 = inlined_call_operand.vmem [shape: f32[2,8,32], index: 5, kind: output, shape index: {}]
  %s6 = sld [smem:[#allocation0]]
  $region53: #{transformer_forward.34} parent=0
    _
  %s8 = ssub.s32 1, %s6
  %s9 = scalar_select 0, %s8, %s6
  loop: start=0, step=1, limit=4
  $region2: #{transformer_forward.34} parent=0 // loop_pre_header
    _
  $region3: #{transformer_forward.34} parent=0 // loop_header
    %s11 = sphi 0, %s15
    %p12 = scmp.ge.s32.totalorder %s11, 4
    %s21 = sphi 0, %s23
    %s24 = sphi 0, %s21
    %s25 = sphi 0, %s24
    %s41 = sphi 0, %s25
    %s47 = sphi 0, %s49
    %s50 = sphi 0, %s47
    %s51 = sphi 0, %s50
    %s67 = sphi 0, %s51
    %s73 = sphi 0, %s75
    %s76 = sphi 0, %s73
    %s77 = sphi 0, %s76
    %s93 = sphi 0, %s77
    %s99 = sphi 0, %s101
    %s102 = sphi 0, %s99
    %s103 = sphi 0, %s102
    %s119 = sphi 0, %s103
    %s125 = sphi 0, %s127
    %s128 = sphi 0, %s125
    %s129 = sphi 0, %s128
    %s145 = sphi 0, %s129
    %s151 = sphi 0, %s153
    %s154 = sphi 0, %s151
    %s155 = sphi 0, %s154
    %s171 = sphi 0, %s155
  $region4: #{transformer_forward.34} parent=0 // loop_header_branch
    %14 = sbr.rel (%p12) target = $region8
  $region5: #{transformer_forward.34} parent=0 // loop_body
    %s16 = ssub.s32 %s11, 1
    %s17 = ssub.s32 %s11, 2
    %s18 = sadd.s32 %s11, 1
    %s19 = ssub.s32 %s11, %s18
    %p20 = scmp.eq.s32.totalorder %s19, 0
    %s22 = sadd.s32 %s21, 1
    %s23 = scalar_select %p20, %s21, %s22
    %p26 = pneg %p20
    %p27 = scmp.eq.s32.totalorder %s11, 1
    %p28 = por %p26, %p27
    %p29 = scmp.ne.s32.totalorder %s21, %s24
    %p30 = scmp.eq.s32.totalorder %s11, 0
    %p31 = por %p29, %p30
    %p32 = scmp.ne.s32.totalorder %s21, %s24
    %p33 = scmp.eq.s32.totalorder %s16, 1
    %p34 = por %p32, %p33
    %p35 = scmp.ne.s32.totalorder %s24, %s25
    %p36 = scmp.eq.s32.totalorder %s16, 0
    %p37 = por %p35, %p36
    %p38 = scmp.ne.s32.totalorder %s24, %s25
    %p39 = scmp.eq.s32.totalorder %s17, 1
    %p40 = por %p38, %p39
    %p42 = scmp.ne.s32.totalorder %s25, %s41
    %p43 = scmp.eq.s32.totalorder %s17, 0
    %p44 = por %p42, %p43
    %s45 = ssub.s32 %s11, %s18
    %p46 = scmp.eq.s32.totalorder %s45, 0
    %s48 = sadd.s32 %s47, 1
    %s49 = scalar_select %p46, %s47, %s48
    %p52 = pneg %p46
    %p53 = scmp.eq.s32.totalorder %s11, 1
    %p54 = por %p52, %p53
    %p55 = scmp.ne.s32.totalorder %s47, %s50
    %p56 = scmp.eq.s32.totalorder %s11, 0
    %p57 = por %p55, %p56
    %p58 = scmp.ne.s32.totalorder %s47, %s50
    %p59 = scmp.eq.s32.totalorder %s16, 1
    %p60 = por %p58, %p59
    %p61 = scmp.ne.s32.totalorder %s50, %s51
    %p62 = scmp.eq.s32.totalorder %s16, 0
    %p63 = por %p61, %p62
    %p64 = scmp.ne.s32.totalorder %s50, %s51
    %p65 = scmp.eq.s32.totalorder %s17, 1
    %p66 = por %p64, %p65
    %p68 = scmp.ne.s32.totalorder %s51, %s67
    %p69 = scmp.eq.s32.totalorder %s17, 0
    %p70 = por %p68, %p69
    %s71 = ssub.s32 %s11, %s18
    %p72 = scmp.eq.s32.totalorder %s71, 0
    %s74 = sadd.s32 %s73, 1
    %s75 = scalar_select %p72, %s73, %s74
    %p78 = pneg %p72
    %p79 = scmp.eq.s32.totalorder %s11, 1
    %p80 = por %p78, %p79
    %p81 = scmp.ne.s32.totalorder %s73, %s76
    %p82 = scmp.eq.s32.totalorder %s11, 0
    %p83 = por %p81, %p82
    %p84 = scmp.ne.s32.totalorder %s73, %s76
    %p85 = scmp.eq.s32.totalorder %s16, 1
    %p86 = por %p84, %p85
    %p87 = scmp.ne.s32.totalorder %s76, %s77
    %p88 = scmp.eq.s32.totalorder %s16, 0
    %p89 = por %p87, %p88
    %p90 = scmp.ne.s32.totalorder %s76, %s77
    %p91 = scmp.eq.s32.totalorder %s17, 1
    %p92 = por %p90, %p91
    %p94 = scmp.ne.s32.totalorder %s77, %s93
    %p95 = scmp.eq.s32.totalorder %s17, 0
    %p96 = por %p94, %p95
    %s97 = ssub.s32 %s11, %s18
    %p98 = scmp.eq.s32.totalorder %s97, 0
    %s100 = sadd.s32 %s99, 1
    %s101 = scalar_select %p98, %s99, %s100
    %p104 = pneg %p98
    %p105 = scmp.eq.s32.totalorder %s11, 1
    %p106 = por %p104, %p105
    %p107 = scmp.ne.s32.totalorder %s99, %s102
    %p108 = scmp.eq.s32.totalorder %s11, 0
    %p109 = por %p107, %p108
    %p110 = scmp.ne.s32.totalorder %s99, %s102
    %p111 = scmp.eq.s32.totalorder %s16, 1
    %p112 = por %p110, %p111
    %p113 = scmp.ne.s32.totalorder %s102, %s103
    %p114 = scmp.eq.s32.totalorder %s16, 0
    %p115 = por %p113, %p114
    %p116 = scmp.ne.s32.totalorder %s102, %s103
    %p117 = scmp.eq.s32.totalorder %s17, 1
    %p118 = por %p116, %p117
    %p120 = scmp.ne.s32.totalorder %s103, %s119
    %p121 = scmp.eq.s32.totalorder %s17, 0
    %p122 = por %p120, %p121
    %s123 = ssub.s32 %s11, %s18
    %p124 = scmp.eq.s32.totalorder %s123, 0
    %s126 = sadd.s32 %s125, 1
    %s127 = scalar_select %p124, %s125, %s126
    %p130 = pneg %p124
    %p131 = scmp.eq.s32.totalorder %s11, 1
    %p132 = por %p130, %p131
    %p133 = scmp.ne.s32.totalorder %s125, %s128
    %p134 = scmp.eq.s32.totalorder %s11, 0
    %p135 = por %p133, %p134
    %p136 = scmp.ne.s32.totalorder %s125, %s128
    %p137 = scmp.eq.s32.totalorder %s16, 1
    %p138 = por %p136, %p137
    %p139 = scmp.ne.s32.totalorder %s128, %s129
    %p140 = scmp.eq.s32.totalorder %s16, 0
    %p141 = por %p139, %p140
    %p142 = scmp.ne.s32.totalorder %s128, %s129
    %p143 = scmp.eq.s32.totalorder %s17, 1
    %p144 = por %p142, %p143
    %p146 = scmp.ne.s32.totalorder %s129, %s145
    %p147 = scmp.eq.s32.totalorder %s17, 0
    %p148 = por %p146, %p147
    %s149 = ssub.s32 %s11, %s18
    %p150 = scmp.eq.s32.totalorder %s149, 0
    %s152 = sadd.s32 %s151, 1
    %s153 = scalar_select %p150, %s151, %s152
    %p156 = pneg %p150
    %p157 = scmp.eq.s32.totalorder %s11, 1
    %p158 = por %p156, %p157
    %p159 = scmp.ne.s32.totalorder %s151, %s154
    %p160 = scmp.eq.s32.totalorder %s11, 0
    %p161 = por %p159, %p160
    %p162 = scmp.ne.s32.totalorder %s151, %s154
    %p163 = scmp.eq.s32.totalorder %s16, 1
    %p164 = por %p162, %p163
    %p165 = scmp.ne.s32.totalorder %s154, %s155
    %p166 = scmp.eq.s32.totalorder %s16, 0
    %p167 = por %p165, %p166
    %p168 = scmp.ne.s32.totalorder %s154, %s155
    %p169 = scmp.eq.s32.totalorder %s17, 1
    %p170 = por %p168, %p169
    %p172 = scmp.ne.s32.totalorder %s155, %s171
    %p173 = scmp.eq.s32.totalorder %s17, 0
    %p174 = por %p172, %p173
    %p175 = scmp.le.s32.totalorder 1, %s11
    %p176 = scmp.lt.s32.totalorder %s11, 3
    %p177 = pnand %p175, %p176
    %p178 = pneg %p177
    // Predicated region
    $region9: #{transformer_forward.34} parent=5 // pred_check
      _
    $region10: #{transformer_forward.34} parent=5 // pred_check_branch
      %180 = sbr.rel (%p177) target = $region12
    $region11: #{transformer_forward.34} parent=5 // pred_region
      %s181 = ssub.s32 %s11, 1
    $region12: #{transformer_forward.34} parent=5 // pred_fallthru
      _
    %p182 = scmp.lt.s32.totalorder %s11, 2
    // Predicated region
    $region13: #{transformer_forward.34} parent=5 // pred_check
      %p183 = pneg %p182
    $region14: #{transformer_forward.34} parent=5 // pred_check_branch
      %185 = sbr.rel (%p183) target = $region16
    $region15: #{transformer_forward.34} parent=5 // pred_region
      // Predicated region
      $region17: #{transformer_forward.34} parent=15 // pred_check
        %p186 = pneg %p31
      $region18: #{transformer_forward.34} parent=15 // pred_check_branch
        %188 = sbr.rel (%p186) target = $region20
      $region19: #{transformer_forward.34} parent=15 // pred_region
        %p189 = scmp.lt.s32.totalorder %s11, 1
        %s190 = scalar_select %p189, %s11, 1
        %s191 = smul.addr %s190, 8
        %s192 = scalar_lea.vmem %s0, %s191
      $region20: #{transformer_forward.34} parent=15 // pred_fallthru
        _
      // Predicated region
      $region21: #{transformer_forward.34} parent=15 // pred_check
        %p193 = pneg %p57
      $region22: #{transformer_forward.34} parent=15 // pred_check_branch
        %195 = sbr.rel (%p193) target = $region24
      $region23: #{transformer_forward.34} parent=15 // pred_region
        %p196 = scmp.lt.s32.totalorder %s11, 1
        %s197 = scalar_select %p196, %s11, 1
        %s198 = smul.addr %s197, 8
        %s199 = scalar_lea.vmem %s1, %s198
      $region24: #{transformer_forward.34} parent=15 // pred_fallthru
        _
      // Predicated region
      $region25: #{transformer_forward.34} parent=15 // pred_check
        %p200 = pneg %p83
      $region26: #{transformer_forward.34} parent=15 // pred_check_branch
        %202 = sbr.rel (%p200) target = $region28
      $region27: #{transformer_forward.34} parent=15 // pred_region
        %p203 = scmp.lt.s32.totalorder %s11, 1
        %s204 = scalar_select %p203, %s11, 1
        %s205 = smul.addr %s204, 8
        %s206 = scalar_lea.vmem %s2, %s205
      $region28: #{transformer_forward.34} parent=15 // pred_fallthru
        _
      // Predicated region
      $region29: #{transformer_forward.34} parent=15 // pred_check
        %p207 = pneg %p109
      $region30: #{transformer_forward.34} parent=15 // pred_check_branch
        %209 = sbr.rel (%p207) target = $region32
      $region31: #{transformer_forward.34} parent=15 // pred_region
        %p210 = scmp.lt.s32.totalorder %s11, 1
        %s211 = scalar_select %p210, %s11, 1
        %s212 = smul.addr %s211, 8
        %s213 = scalar_lea.vmem %s3, %s212
      $region32: #{transformer_forward.34} parent=15 // pred_fallthru
        _
      // Predicated region
      $region33: #{transformer_forward.34} parent=15 // pred_check
        %p214 = pneg %p135
      $region34: #{transformer_forward.34} parent=15 // pred_check_branch
        %216 = sbr.rel (%p214) target = $region36
      $region35: #{transformer_forward.34} parent=15 // pred_region
        %p217 = scmp.lt.s32.totalorder %s11, 1
        %s218 = scalar_select %p217, %s11, 1
        %s219 = scalar_lea.vmem %s4, %s218
      $region36: #{transformer_forward.34} parent=15 // pred_fallthru
        _
    $region16: #{transformer_forward.34} parent=5 // pred_fallthru
      _
    %p220 = scmp.le.s32.totalorder 1, %s11
    %p221 = scmp.lt.s32.totalorder %s11, 3
    %p222 = pnand %p220, %p221
    %p223 = pneg %p222
    // Predicated region
    $region37: #{transformer_forward.34} parent=5 // pred_check
      _
    $region38: #{transformer_forward.34} parent=5 // pred_check_branch
      %225 = sbr.rel (%p222) target = $region40
    $region39: #{transformer_forward.34} parent=5 // pred_region
      %s226 = ssub.s32 %s11, 1
      %p227 = scmp.lt.s32.totalorder %s16, 1
      %s228 = scalar_select %p227, %s16, 1
      %s229 = smul.addr %s228, 8
      %s230 = scalar_lea.vmem %s0, %s229
      %p231 = pneg %p37
      %p232 = pneg %p34
      %p233 = scmp.lt.s32.totalorder %s16, 1
      %s234 = scalar_select %p233, %s16, 1
      %s235 = smul.addr %s234, 8
      %s236 = scalar_lea.vmem %s1, %s235
      %p237 = pneg %p63
      %p238 = pneg %p60
      %p239 = scmp.lt.s32.totalorder %s16, 1
      %s240 = scalar_select %p239, %s16, 1
      %s241 = smul.addr %s240, 8
      %s242 = scalar_lea.vmem %s2, %s241
      %p243 = pneg %p89
      %p244 = pneg %p86
      %p245 = scmp.lt.s32.totalorder %s16, 1
      %s246 = scalar_select %p245, %s16, 1
      %s247 = smul.addr %s246, 8
      %s248 = scalar_lea.vmem %s3, %s247
      %p249 = pneg %p115
      %p250 = pneg %p112
      %p251 = scmp.lt.s32.totalorder %s16, 1
      %s252 = scalar_select %p251, %s16, 1
      %s253 = scalar_lea.vmem %s4, %s252
      %p254 = pneg %p141
      %p255 = pneg %p138
      %p256 = pneg %p167
      %p257 = pneg %p164
      %p258 = scmp.lt.s32.totalorder %s16, 1
      %s259 = scalar_select %p258, %s16, 1
      %s260 = smul.addr %s259, 8
      %s261 = scalar_lea.vmem %s5, %s260
      %p262 = scmp.lt.s32.totalorder %s16, 1
      %s263 = scalar_select %p262, %s16, 1
      %s264 = smul.addr %s263, 8
      %s265 = scalar_lea.vmem %s0, %s264
      %p266 = scmp.lt.s32.totalorder %s16, 1
      %s267 = scalar_select %p266, %s16, 1
      %s268 = smul.addr %s267, 8
      %s269 = scalar_lea.vmem %s1, %s268
      %p270 = scmp.lt.s32.totalorder %s16, 1
      %s271 = scalar_select %p270, %s16, 1
      %s272 = smul.addr %s271, 8
      %s273 = scalar_lea.vmem %s2, %s272
      %p274 = scmp.lt.s32.totalorder %s16, 1
      %s275 = scalar_select %p274, %s16, 1
      %s276 = smul.addr %s275, 8
      %s277 = scalar_lea.vmem %s3, %s276
      %p278 = scmp.lt.s32.totalorder %s16, 1
      %s279 = scalar_select %p278, %s16, 1
      %s280 = scalar_lea.vmem %s4, %s279
      %p281 = scmp.lt.s32.totalorder %s16, 1
      %s282 = scalar_select %p281, %s16, 1
      %s283 = smul.addr %s282, 8
      %s284 = scalar_lea.vmem %s5, %s283
      %v285 = vld [vmem:[%s265] sm:$0xff]
      %v286 = vld [vmem:[%s269] sm:$0xff]
      %v287 = vld [vmem:[%s273] sm:$0xff]
      %v288 = vld [vmem:[%s277] sm:$0xff]
      %v289 = vld [vmem:[%s280] sm:$0x1]
      %vm290 = vcmp.gt.f32.partialorder %v288, 0.0
      %vm291 = vcmp.gt.f32.partialorder %v289, 0.0
      %v292 = vsel %vm290, 1, 0
      %293 = vset.pattern.permute.xlu0 0
      %294 = vperm.xlu0 %293, %v292
      %v295 = vpop.permute.xlu0 %294
      %vm296 = vcmp.eq.s32.totalorder %v295, 1
      %v297 = vsel %vm291, 1, 0
      %v298 = vperm.slane %v297, 0
      %vm299 = vcmp.eq.s32.totalorder %v298, 1
      %vm300 = vmand %vm296, %vm299
      %v301 = vlaneseq
      %v302 = vshrl.u32 %v301, 7
      %v303 = vlaneseq
      %v304 = vand.u32 %v303, 127
      %vm305 = vcmp.le.s32.totalorder %v304, %v302
      %vm306 = vmand %vm300, %vm305
      %vm307 = vcmask 64512
      %v309 = vsel %vm307, %v285, 0
      %v312 = vsel %vm307, %v286, 0
      %314 = vmatpush.xpose.msra.mxu0 0.0
      %315 = vmatpush.xpose.msra.mxu0 0.0
      %316 = vmatpush.xpose.msra.mxu0 0.0
      %317 = vmatpush.xpose.msra.mxu0 0.0
      %318 = vmatpush.xpose.msra.mxu0 0.0
      %319 = vmatpush.xpose.msra.mxu0 0.0
      %320 = vmatpush.xpose.msra.mxu0 0.0
      %321 = vmatpush.xpose.msra.mxu0 0.0
      %322 = vmatpush.xpose.msra.mxu0 0.0
      %323 = vmatpush.xpose.msra.mxu0 0.0
      %324 = vmatpush.xpose.msra.mxu0 0.0
      %325 = vmatpush.xpose.msra.mxu0 0.0
      %326 = vmatpush.xpose.msra.mxu0 0.0
      %327 = vmatpush.xpose.msra.mxu0 0.0
      %328 = vmatpush.xpose.msra.mxu0 0.0
      %329 = vmatpush.xpose.msra.mxu0 %v312
      %330 = vmatmul.f32.gmra.mxu0 %v309
      %v331 = vpop.f32.mrf.mxu0
      %v332 = vadd.f32 0.0, %v331
      %333 = vdwg.mxu0
      %v334 = vmul.f32 %v332, 0.35355338
      %v335 = vsel %vm306, %v334, -10000.0
      %v336 = vsel %vm307, %v335, -inf
      %337 = vmax.xlane.f32.xlu0 %v336
      %v338 = vpop.xlane.xlu0 %337
      %v339 = vsub.f32 %v335, %v338
      %v340 = vmul.f32 %v339, 1.442695
      %v341 = vpow.pop %v340
      %v342 = vsel %vm307, %v341, 0.0
      %343 = vadd.xlane.f32.xlu0 %v342
      %v344 = vpop.xlane.xlu0 %343
      %v345 = vrcp.pop %v344
      %v346 = vmul.f32 %v341, %v345
      %v348 = vsel %vm307, %v346, 0
      %350 = vmatpush.msra.mxu0 0.0
      %351 = vmatpush.msra.mxu0 0.0
      %352 = vmatpush.msra.mxu0 0.0
      %353 = vmatpush.msra.mxu0 0.0
      %354 = vmatpush.msra.mxu0 0.0
      %355 = vmatpush.msra.mxu0 0.0
      %356 = vmatpush.msra.mxu0 0.0
      %357 = vmatpush.msra.mxu0 0.0
      %358 = vmatpush.msra.mxu0 0.0
      %359 = vmatpush.msra.mxu0 0.0
      %360 = vmatpush.msra.mxu0 0.0
      %361 = vmatpush.msra.mxu0 0.0
      %362 = vmatpush.msra.mxu0 0.0
      %363 = vmatpush.msra.mxu0 0.0
      %364 = vmatpush.msra.mxu0 0.0
      %365 = vmatpush.msra.mxu0 %v287
      %366 = vmatmul.f32.gmra.mxu0 %v348
      %v367 = vpop.f32.mrf.mxu0
      %v368 = vadd.f32 0.0, %v367
      %369 = vdwg.mxu0
      %370 = vrot.lane.b32.xlu0 %v285, 120
      %v371 = vpop.permute.xlu0 %370
      %372 = vrot.lane.b32.xlu0 %v286, 120
      %v373 = vpop.permute.xlu0 %372
      %v374 = vsel %vm307, %v371, 0
      %v376 = vsel %vm307, %v373, 0
      %378 = vmatpush.xpose.msra.mxu0 0.0
      %379 = vmatpush.xpose.msra.mxu0 0.0
      %380 = vmatpush.xpose.msra.mxu0 0.0
      %381 = vmatpush.xpose.msra.mxu0 0.0
      %382 = vmatpush.xpose.msra.mxu0 0.0
      %383 = vmatpush.xpose.msra.mxu0 0.0
      %384 = vmatpush.xpose.msra.mxu0 0.0
      %385 = vmatpush.xpose.msra.mxu0 0.0
      %386 = vmatpush.xpose.msra.mxu0 0.0
      %387 = vmatpush.xpose.msra.mxu0 0.0
      %388 = vmatpush.xpose.msra.mxu0 0.0
      %389 = vmatpush.xpose.msra.mxu0 0.0
      %390 = vmatpush.xpose.msra.mxu0 0.0
      %391 = vmatpush.xpose.msra.mxu0 0.0
      %392 = vmatpush.xpose.msra.mxu0 0.0
      %393 = vmatpush.xpose.msra.mxu0 %v376
      %394 = vmatmul.f32.gmra.mxu0 %v374
      %v395 = vpop.f32.mrf.mxu0
      %v396 = vadd.f32 0.0, %v395
      %397 = vdwg.mxu0
      %v398 = vmul.f32 %v396, 0.35355338
      %v399 = vsel %vm306, %v398, -10000.0
      %v400 = vsel %vm307, %v399, -inf
      %401 = vmax.xlane.f32.xlu0 %v400
      %v402 = vpop.xlane.xlu0 %401
      %v403 = vsub.f32 %v399, %v402
      %v404 = vmul.f32 %v403, 1.442695
      %v405 = vpow.pop %v404
      %v406 = vsel %vm307, %v405, 0.0
      %407 = vadd.xlane.f32.xlu0 %v406
      %v408 = vpop.xlane.xlu0 %407
      %v409 = vrcp.pop %v408
      %v410 = vmul.f32 %v405, %v409
      %412 = vrot.lane.b32.xlu0 %v287, 120
      %v413 = vpop.permute.xlu0 %412
      %v416 = vsel %vm307, %v410, 0
      %418 = vmatpush.msra.mxu0 0.0
      %419 = vmatpush.msra.mxu0 0.0
      %420 = vmatpush.msra.mxu0 0.0
      %421 = vmatpush.msra.mxu0 0.0
      %422 = vmatpush.msra.mxu0 0.0
      %423 = vmatpush.msra.mxu0 0.0
      %424 = vmatpush.msra.mxu0 0.0
      %425 = vmatpush.msra.mxu0 0.0
      %426 = vmatpush.msra.mxu0 0.0
      %427 = vmatpush.msra.mxu0 0.0
      %428 = vmatpush.msra.mxu0 0.0
      %429 = vmatpush.msra.mxu0 0.0
      %430 = vmatpush.msra.mxu0 0.0
      %431 = vmatpush.msra.mxu0 0.0
      %432 = vmatpush.msra.mxu0 0.0
      %433 = vmatpush.msra.mxu0 %v413
      %434 = vmatmul.f32.gmra.mxu0 %v416
      %v435 = vpop.f32.mrf.mxu0
      %v436 = vadd.f32 0.0, %v435
      %437 = vdwg.mxu0
      %438 = vrot.lane.b32.xlu0 %v285, 112
      %v439 = vpop.permute.xlu0 %438
      %440 = vrot.lane.b32.xlu0 %v286, 112
      %v441 = vpop.permute.xlu0 %440
      %v442 = vsel %vm307, %v439, 0
      %v444 = vsel %vm307, %v441, 0
      %446 = vmatpush.xpose.msra.mxu0 0.0
      %447 = vmatpush.xpose.msra.mxu0 0.0
      %448 = vmatpush.xpose.msra.mxu0 0.0
      %449 = vmatpush.xpose.msra.mxu0 0.0
      %450 = vmatpush.xpose.msra.mxu0 0.0
      %451 = vmatpush.xpose.msra.mxu0 0.0
      %452 = vmatpush.xpose.msra.mxu0 0.0
      %453 = vmatpush.xpose.msra.mxu0 0.0
      %454 = vmatpush.xpose.msra.mxu0 0.0
      %455 = vmatpush.xpose.msra.mxu0 0.0
      %456 = vmatpush.xpose.msra.mxu0 0.0
      %457 = vmatpush.xpose.msra.mxu0 0.0
      %458 = vmatpush.xpose.msra.mxu0 0.0
      %459 = vmatpush.xpose.msra.mxu0 0.0
      %460 = vmatpush.xpose.msra.mxu0 0.0
      %461 = vmatpush.xpose.msra.mxu0 %v444
      %462 = vmatmul.f32.gmra.mxu0 %v442
      %v463 = vpop.f32.mrf.mxu0
      %v464 = vadd.f32 0.0, %v463
      %465 = vdwg.mxu0
      %v466 = vmul.f32 %v464, 0.35355338
      %v467 = vsel %vm306, %v466, -10000.0
      %v468 = vsel %vm307, %v467, -inf
      %469 = vmax.xlane.f32.xlu0 %v468
      %v470 = vpop.xlane.xlu0 %469
      %v471 = vsub.f32 %v467, %v470
      %v472 = vmul.f32 %v471, 1.442695
      %v473 = vpow.pop %v472
      %v474 = vsel %vm307, %v473, 0.0
      %475 = vadd.xlane.f32.xlu0 %v474
      %v476 = vpop.xlane.xlu0 %475
      %v477 = vrcp.pop %v476
      %v478 = vmul.f32 %v473, %v477
      %479 = vrot.lane.b32.xlu0 %v287, 112
      %v480 = vpop.permute.xlu0 %479
      %v483 = vsel %vm307, %v478, 0
      %485 = vmatpush.msra.mxu0 0.0
      %486 = vmatpush.msra.mxu0 0.0
      %487 = vmatpush.msra.mxu0 0.0
      %488 = vmatpush.msra.mxu0 0.0
      %489 = vmatpush.msra.mxu0 0.0
      %490 = vmatpush.msra.mxu0 0.0
      %491 = vmatpush.msra.mxu0 0.0
      %492 = vmatpush.msra.mxu0 0.0
      %493 = vmatpush.msra.mxu0 0.0
      %494 = vmatpush.msra.mxu0 0.0
      %495 = vmatpush.msra.mxu0 0.0
      %496 = vmatpush.msra.mxu0 0.0
      %497 = vmatpush.msra.mxu0 0.0
      %498 = vmatpush.msra.mxu0 0.0
      %499 = vmatpush.msra.mxu0 0.0
      %500 = vmatpush.msra.mxu0 %v480
      %501 = vmatmul.f32.gmra.mxu0 %v483
      %v502 = vpop.f32.mrf.mxu0
      %v503 = vadd.f32 0.0, %v502
      %504 = vdwg.mxu0
      %505 = vrot.lane.b32.xlu0 %v285, 104
      %v506 = vpop.permute.xlu0 %505
      %507 = vrot.lane.b32.xlu0 %v286, 104
      %v508 = vpop.permute.xlu0 %507
      %v509 = vsel %vm307, %v506, 0
      %v511 = vsel %vm307, %v508, 0
      %513 = vmatpush.xpose.msra.mxu0 0.0
      %514 = vmatpush.xpose.msra.mxu0 0.0
      %515 = vmatpush.xpose.msra.mxu0 0.0
      %516 = vmatpush.xpose.msra.mxu0 0.0
      %517 = vmatpush.xpose.msra.mxu0 0.0
      %518 = vmatpush.xpose.msra.mxu0 0.0
      %519 = vmatpush.xpose.msra.mxu0 0.0
      %520 = vmatpush.xpose.msra.mxu0 0.0
      %521 = vmatpush.xpose.msra.mxu0 0.0
      %522 = vmatpush.xpose.msra.mxu0 0.0
      %523 = vmatpush.xpose.msra.mxu0 0.0
      %524 = vmatpush.xpose.msra.mxu0 0.0
      %525 = vmatpush.xpose.msra.mxu0 0.0
      %526 = vmatpush.xpose.msra.mxu0 0.0
      %527 = vmatpush.xpose.msra.mxu0 0.0
      %528 = vmatpush.xpose.msra.mxu0 %v511
      %529 = vmatmul.f32.gmra.mxu0 %v509
      %v530 = vpop.f32.mrf.mxu0
      %v531 = vadd.f32 0.0, %v530
      %532 = vdwg.mxu0
      %v533 = vmul.f32 %v531, 0.35355338
      %v534 = vsel %vm306, %v533, -10000.0
      %v535 = vsel %vm307, %v534, -inf
      %536 = vmax.xlane.f32.xlu0 %v535
      %v537 = vpop.xlane.xlu0 %536
      %v538 = vsub.f32 %v534, %v537
      %v539 = vmul.f32 %v538, 1.442695
      %v540 = vpow.pop %v539
      %v541 = vsel %vm307, %v540, 0.0
      %542 = vadd.xlane.f32.xlu0 %v541
      %v543 = vpop.xlane.xlu0 %542
      %v544 = vrcp.pop %v543
      %v545 = vmul.f32 %v540, %v544
      %546 = vrot.lane.b32.xlu0 %v287, 104
      %v547 = vpop.permute.xlu0 %546
      %v550 = vsel %vm307, %v545, 0
      %552 = vmatpush.msra.mxu0 0.0
      %553 = vmatpush.msra.mxu0 0.0
      %554 = vmatpush.msra.mxu0 0.0
      %555 = vmatpush.msra.mxu0 0.0
      %556 = vmatpush.msra.mxu0 0.0
      %557 = vmatpush.msra.mxu0 0.0
      %558 = vmatpush.msra.mxu0 0.0
      %559 = vmatpush.msra.mxu0 0.0
      %560 = vmatpush.msra.mxu0 0.0
      %561 = vmatpush.msra.mxu0 0.0
      %562 = vmatpush.msra.mxu0 0.0
      %563 = vmatpush.msra.mxu0 0.0
      %564 = vmatpush.msra.mxu0 0.0
      %565 = vmatpush.msra.mxu0 0.0
      %566 = vmatpush.msra.mxu0 0.0
      %567 = vmatpush.msra.mxu0 %v547
      %568 = vmatmul.f32.gmra.mxu0 %v550
      %v569 = vpop.f32.mrf.mxu0
      %v570 = vadd.f32 0.0, %v569
      %571 = vdwg.mxu0
      %573 = vrot.lane.b32.xlu0 %v436, 8
      %v574 = vpop.permute.xlu0 %573
      %577 = vrot.lane.b32.xlu0 %v503, 16
      %v578 = vpop.permute.xlu0 %577
      %581 = vrot.lane.b32.xlu0 %v570, 24
      %v582 = vpop.permute.xlu0 %581
      %v584 = vsel %vm307, %v368, %v574
      %vm585 = vcmask 130048
      %v586 = vsel %vm585, %v584, %v578
      %vm587 = vcmask 195584
      %v588 = vsel %vm587, %v586, %v582
      %vm589 = vcmask 261120
      %590 = vst.msk [vmem:[%s284] sm:$0xff] %vm589, %v588
      %p591 = scmp.lt.s32.totalorder %s16, 1
      %s592 = scalar_select %p591, %s16, 1
      %s593 = smul.addr %s592, 8
      %s594 = scalar_lea.vmem %s5, %s593
      // Predicated region
      $region41: #{transformer_forward.34} parent=39 // pred_check
        %p595 = pneg %p164
      $region42: #{transformer_forward.34} parent=39 // pred_check_branch
        %597 = sbr.rel (%p595) target = $region44
      $region43: #{transformer_forward.34} parent=39 // pred_region
        _
      $region44: #{transformer_forward.34} parent=39 // pred_fallthru
        _
    $region40: #{transformer_forward.34} parent=5 // pred_fallthru
      _
    %p598 = scmp.le.s32.totalorder 2, %s11
    // Predicated region
    $region45: #{transformer_forward.34} parent=5 // pred_check
      %p599 = pneg %p598
    $region46: #{transformer_forward.34} parent=5 // pred_check_branch
      %601 = sbr.rel (%p599) target = $region48
    $region47: #{transformer_forward.34} parent=5 // pred_region
      %s602 = ssub.s32 %s11, 2
      // Predicated region
      $region49: #{transformer_forward.34} parent=47 // pred_check
        %p603 = pneg %p170
      $region50: #{transformer_forward.34} parent=47 // pred_check_branch
        %605 = sbr.rel (%p603) target = $region52
      $region51: #{transformer_forward.34} parent=47 // pred_region
        %p606 = scmp.lt.s32.totalorder %s17, 1
        %s607 = scalar_select %p606, %s17, 1
        %s608 = smul.addr %s607, 8
        %s609 = scalar_lea.vmem %s5, %s608
      $region52: #{transformer_forward.34} parent=47 // pred_fallthru
        _
    $region48: #{transformer_forward.34} parent=5 // pred_fallthru
      _
  $region6: #{transformer_forward.34} parent=0 // loop_footer
    %s15 = sadd.s32 1, %s11
  $region7: #{transformer_forward.34} parent=0 // loop_footer_branch
    %10 = sbr.rel target = $region3
  $region8: #{transformer_forward.34} parent=0 // loop_exit
    _

// kernel: transformer_forward.28
$region0: #{transformer_forward.28}
  #allocation0 [shape = 'u32[]', space=smem, size = 0x4, offset = 0x4, fixed_abs, tag = 'smem constant byte address 0x4 - core index']
  #allocation1 [shape = 'u32[72,128]{1,0:T(1,128)}', space=vmem, size = 0x9000, scoped, tag = 'internal scratch']
  #allocation2 [shape = 'f32[16,32]{1,0:T(8,128)}', space=vmem, size = 0x2000, scoped, tag = 'scratch operand']
  %s0 = inlined_call_operand.vmem [shape: f32[16,32], index: 0, kind: input, shape index: {}, may-alias: {0,5}]
  %s1 = inlined_call_operand.hbm [shape: f32[32,128], index: 1, kind: input, shape index: {}]
  %s2 = inlined_call_operand.vmem [shape: f32[1,128], index: 2, kind: input, shape index: {}]
  %s3 = inlined_call_operand.hbm [shape: f32[128,32], index: 3, kind: input, shape index: {}]
  %s4 = inlined_call_operand.vmem [shape: f32[1,32], index: 4, kind: input, shape index: {}, may-alias: {4,7}]
  %s5 = inlined_call_operand.vmem [shape: f32[16,32], index: 5, kind: input, shape index: {}, may-alias: {0,5}]
  %s6 = inlined_call_operand.vmem [shape: f32[1,32], index: 6, kind: input, shape index: {}]
  %s7 = inlined_call_operand.vmem [shape: f32[1,32], index: 7, kind: input, shape index: {}, may-alias: {4,7}]
  %s8 = inlined_call_operand.vmem [shape: f32[16,32], index: 8, kind: output, shape index: {}]
  %s9 = sld [smem:[#allocation0]]
  $region58: #{transformer_forward.28} parent=0
    _
  %s11 = ssub.s32 1, %s9
  %s12 = scalar_select 0, %s11, %s9
  $region1: #{transformer_forward.28} parent=0
    #allocation3 [shape = 'u8[16384]{0}', space=vmem, size = 0x4000, scoped, tag = 'input window, operand 1, single buffered']
    #allocation4 [shape = 's32[1]{0}', space=sflag, size = 0x4, scoped, tag = 'scoped memory for transformer_forward.28']
    #allocation5 [shape = 'u8[65536]{0}', space=vmem, size = 0x10000, scoped, tag = 'input window, operand 3, single buffered']
    #allocation6 [shape = 's32[1]{0}', space=sflag, size = 0x4, scoped, tag = 'scoped memory for transformer_forward.28']
    %13 = vsyncpa [#allocation4], 0
    %14 = vsyncpa [#allocation6], 0
    // Predicated region
    $region2: #{transformer_forward.28} parent=1 // pred_check
      _
    $region3: #{transformer_forward.28} parent=1 // pred_check_branch
      %16 = sbr.rel (0) target = $region5
    $region4: #{transformer_forward.28} parent=1 // pred_region
      _
    $region5: #{transformer_forward.28} parent=1 // pred_fallthru
      _
    // Predicated region
    $region6: #{transformer_forward.28} parent=1 // pred_check
      _
    $region7: #{transformer_forward.28} parent=1 // pred_check_branch
      %18 = sbr.rel (0) target = $region9
    $region8: #{transformer_forward.28} parent=1 // pred_region
      %20 = vsyncadd [#allocation4], 0
      %s21 = sshll.u32 %s1, 4
      %s22 = int_to_ptr.hbm [resolvable:$true] %s21
      %s23 = sshll.u32 [#allocation3], 4
      %s24 = int_to_ptr.vmem [resolvable:$true] %s23
      %29 = dma.hbm_to_vmem [thread:$0]  %s22, 512, %s24, [#allocation4], 128, 128, 8
    $region9: #{transformer_forward.28} parent=1 // pred_fallthru
      _
    // Predicated region
    $region10: #{transformer_forward.28} parent=1 // pred_check
      _
    $region11: #{transformer_forward.28} parent=1 // pred_check_branch
      %31 = sbr.rel (0) target = $region13
    $region12: #{transformer_forward.28} parent=1 // pred_region
      _
    $region13: #{transformer_forward.28} parent=1 // pred_fallthru
      _
    // Predicated region
    $region14: #{transformer_forward.28} parent=1 // pred_check
      _
    $region15: #{transformer_forward.28} parent=1 // pred_check_branch
      %33 = sbr.rel (0) target = $region17
    $region16: #{transformer_forward.28} parent=1 // pred_region
      %35 = vsyncadd [#allocation6], 0
      %s36 = sshll.u32 %s3, 4
      %s37 = int_to_ptr.hbm [resolvable:$true] %s36
      %s38 = sshll.u32 [#allocation5], 4
      %s39 = int_to_ptr.vmem [resolvable:$true] %s38
      %44 = dma.hbm_to_vmem [thread:$0]  %s37, 2048, %s39, [#allocation6], 128, 128, 8
    $region17: #{transformer_forward.28} parent=1 // pred_fallthru
      _
    // Predicated region
    $region18: #{transformer_forward.28} parent=1 // pred_check
      _
    $region19: #{transformer_forward.28} parent=1 // pred_check_branch
      %46 = sbr.rel (0) target = $region21
    $region20: #{transformer_forward.28} parent=1 // pred_region
      _
    $region21: #{transformer_forward.28} parent=1 // pred_fallthru
      _
    // Predicated region
    $region22: #{transformer_forward.28} parent=1 // pred_check
      _
    $region23: #{transformer_forward.28} parent=1 // pred_check_branch
      %48 = sbr.rel (0) target = $region25
    $region24: #{transformer_forward.28} parent=1 // pred_region
      _
    $region25: #{transformer_forward.28} parent=1 // pred_fallthru
      _
    // Predicated region
    $region26: #{transformer_forward.28} parent=1 // pred_check
      _
    $region27: #{transformer_forward.28} parent=1 // pred_check_branch
      %50 = sbr.rel (0) target = $region29
    $region28: #{transformer_forward.28} parent=1 // pred_region
      _
    $region29: #{transformer_forward.28} parent=1 // pred_fallthru
      _
    // Predicated region
    $region30: #{transformer_forward.28} parent=1 // pred_check
      _
    $region31: #{transformer_forward.28} parent=1 // pred_check_branch
      %52 = sbr.rel (0) target = $region33
    $region32: #{transformer_forward.28} parent=1 // pred_region
      _
    $region33: #{transformer_forward.28} parent=1 // pred_fallthru
      _
    // Predicated region
    $region34: #{transformer_forward.28} parent=1 // pred_check
      _
    $region35: #{transformer_forward.28} parent=1 // pred_check_branch
      %54 = sbr.rel (0) target = $region37
    $region36: #{transformer_forward.28} parent=1 // pred_region
      %56 = dma.done [#allocation4], 512
    $region37: #{transformer_forward.28} parent=1 // pred_fallthru
      _
    // Predicated region
    $region38: #{transformer_forward.28} parent=1 // pred_check
      _
    $region39: #{transformer_forward.28} parent=1 // pred_check_branch
      %58 = sbr.rel (0) target = $region41
    $region40: #{transformer_forward.28} parent=1 // pred_region
      %60 = dma.done [#allocation6], 2048
    $region41: #{transformer_forward.28} parent=1 // pred_fallthru
      _
    %p61 = scmp.eq.s32.totalorder 0, 0
    // Predicated region
    $region42: #{transformer_forward.28} parent=1 // pred_check
      %p62 = pneg %p61
    $region43: #{transformer_forward.28} parent=1 // pred_check_branch
      %64 = sbr.rel (%p62) target = $region45
    $region44: #{transformer_forward.28} parent=1 // pred_region
      %vm65 = vcmask 261120
      %66 = vst.msk [vmem:[#allocation2] sm:$0xff] %vm65, 0.0
      %67 = vst.msk [vmem:[#allocation2 + $0x8] sm:$0xff] %vm65, 0.0
    $region45: #{transformer_forward.28} parent=1 // pred_fallthru
      _
    %v68 = vld [vmem:[%s0] sm:$0xff]
    %v69 = vld [vmem:[%s0 + $0x8] sm:$0xff]
    %v70 = vld [vmem:[#allocation3] sm:$0xff]
    %v71 = vld [vmem:[#allocation3 + $0x8] sm:$0xff]
    %v72 = vld [vmem:[#allocation3 + $0x10] sm:$0xff]
    %v73 = vld [vmem:[#allocation3 + $0x18] sm:$0xff]
    %v74 = vld [vmem:[%s2] sm:$0x1]
    %v76 = vperm.slane %v74, 0
    %vm78 = vcmask 261120
    %v80 = vsel %vm78, %v68, 0
    %v83 = vsel %vm78, %v69, 0
    %85 = vmatpush.msra.mxu0 0.0
    %86 = vmatpush.msra.mxu0 0.0
    %87 = vmatpush.msra.mxu0 0.0
    %88 = vmatpush.msra.mxu0 0.0
    %89 = vmatpush.msra.mxu0 0.0
    %90 = vmatpush.msra.mxu0 0.0
    %91 = vmatpush.msra.mxu0 0.0
    %92 = vmatpush.msra.mxu0 0.0
    %93 = vmatpush.msra.mxu0 0.0
    %94 = vmatpush.msra.mxu0 0.0
    %95 = vmatpush.msra.mxu0 0.0
    %96 = vmatpush.msra.mxu0 0.0
    %97 = vmatpush.msra.mxu0 %v73
    %98 = vmatpush.msra.mxu0 %v72
    %99 = vmatpush.msra.mxu0 %v71
    %100 = vmatpush.msra.mxu0 %v70
    %101 = vmatmul.f32.gmra.mxu0 %v80
    %v102 = vpop.f32.mrf.mxu0
    %v103 = vadd.f32 %v76, %v102
    %104 = vmatmul.f32.gmra.mxu0 %v83
    %v105 = vpop.f32.mrf.mxu0
    %v106 = vadd.f32 %v76, %v105
    %107 = vdwg.mxu0
    %v108 = vmax.f32 %v103, 0.0
    %v109 = vmax.f32 %v106, 0.0
    %v110 = vld [vmem:[#allocation2] sm:$0xff]
    %v111 = vld [vmem:[#allocation2 + $0x8] sm:$0xff]
    %v112 = vld [vmem:[#allocation5] sm:$0xff]
    %v113 = vld [vmem:[#allocation5 + $0x8] sm:$0xff]
    %v114 = vld [vmem:[#allocation5 + $0x10] sm:$0xff]
    %v115 = vld [vmem:[#allocation5 + $0x18] sm:$0xff]
    %v116 = vld [vmem:[#allocation5 + $0x20] sm:$0xff]
    %v117 = vld [vmem:[#allocation5 + $0x28] sm:$0xff]
    %v118 = vld [vmem:[#allocation5 + $0x30] sm:$0xff]
    %v119 = vld [vmem:[#allocation5 + $0x38] sm:$0xff]
    %v120 = vld [vmem:[#allocation5 + $0x40] sm:$0xff]
    %v121 = vld [vmem:[#allocation5 + $0x48] sm:$0xff]
    %v122 = vld [vmem:[#allocation5 + $0x50] sm:$0xff]
    %v123 = vld [vmem:[#allocation5 + $0x58] sm:$0xff]
    %v124 = vld [vmem:[#allocation5 + $0x60] sm:$0xff]
    %v125 = vld [vmem:[#allocation5 + $0x68] sm:$0xff]
    %v126 = vld [vmem:[#allocation5 + $0x70] sm:$0xff]
    %v127 = vld [vmem:[#allocation5 + $0x78] sm:$0xff]
    %128 = vmatpush.msra.mxu0 %v127
    %129 = vmatpush.msra.mxu0 %v126
    %130 = vmatpush.msra.mxu0 %v125
    %131 = vmatpush.msra.mxu0 %v124
    %132 = vmatpush.msra.mxu0 %v123
    %133 = vmatpush.msra.mxu0 %v122
    %134 = vmatpush.msra.mxu0 %v121
    %135 = vmatpush.msra.mxu0 %v120
    %136 = vmatpush.msra.mxu0 %v119
    %137 = vmatpush.msra.mxu0 %v118
    %138 = vmatpush.msra.mxu0 %v117
    %139 = vmatpush.msra.mxu0 %v116
    %140 = vmatpush.msra.mxu0 %v115
    %141 = vmatpush.msra.mxu0 %v114
    %142 = vmatpush.msra.mxu0 %v113
    %143 = vmatpush.msra.mxu0 %v112
    %144 = vmatmul.f32.gmra.mxu0 %v108
    %v145 = vpop.f32.mrf.mxu0
    %v146 = vadd.f32 0.0, %v145
    %147 = vmatmul.f32.gmra.mxu0 %v109
    %v148 = vpop.f32.mrf.mxu0
    %v149 = vadd.f32 0.0, %v148
    %150 = vdwg.mxu0
    %v151 = vadd.f32 %v110, %v146
    %v152 = vadd.f32 %v111, %v149
    %153 = vst.msk [vmem:[#allocation2] sm:$0xff] %vm78, %v151
    %154 = vst.msk [vmem:[#allocation2 + $0x8] sm:$0xff] %vm78, %v152
    // Predicated region
    $region46: #{transformer_forward.28} parent=1 // pred_check
      %p155 = pneg %p61
    $region47: #{transformer_forward.28} parent=1 // pred_check_branch
      %157 = sbr.rel (%p155) target = $region49
    $region48: #{transformer_forward.28} parent=1 // pred_region
      %v158 = vld [vmem:[#allocation2] sm:$0xff]
      %v159 = vld [vmem:[#allocation2 + $0x8] sm:$0xff]
      %v160 = vld [vmem:[%s4] sm:$0x1]
      %v162 = vperm.slane %v160, 0
      %v164 = vadd.f32 %v158, %v162
      %v165 = vadd.f32 %v159, %v162
      %v166 = vld [vmem:[%s5] sm:$0xff]
      %v167 = vld [vmem:[%s5 + $0x8] sm:$0xff]
      %v168 = vadd.f32 %v164, %v166
      %v169 = vadd.f32 %v165, %v167
      %v170 = vsel %vm78, %v168, 0.0
      %171 = vadd.xlane.f32.xlu0 %v170
      %v172 = vpop.xlane.xlu0 %171
      %v173 = vsel %vm78, %v169, 0.0
      %174 = vadd.xlane.f32.xlu0 %v173
      %v175 = vpop.xlane.xlu0 %174
      %v176 = vrcp.pop 32.0
      %v177 = vmul.f32 32.0, %v176
      %v178 = vsub.f32 1.0, %v177
      %v179 = vmul.f32 %v176, %v178
      %v180 = vadd.f32 %v176, %v179
      %vm181 = vweird.f32 %v176
      %v182 = vsel %vm181, %v176, %v180
      %v183 = vmul.f32 %v172, %v182
      %v184 = vmul.f32 %v175, %v182
      %v185 = vsub.f32 %v168, %v183
      %v186 = vsub.f32 %v169, %v184
      %v187 = vmul.f32 %v185, %v185
      %v188 = vmul.f32 %v186, %v186
      %v189 = vsel %vm78, %v187, 0.0
      %190 = vadd.xlane.f32.xlu0 %v189
      %v191 = vpop.xlane.xlu0 %190
      %v192 = vsel %vm78, %v188, 0.0
      %193 = vadd.xlane.f32.xlu0 %v192
      %v194 = vpop.xlane.xlu0 %193
      %v195 = vmul.f32 %v191, %v182
      %v196 = vmul.f32 %v194, %v182
      %v197 = vadd.f32 %v195, 1e-12
      %v198 = vadd.f32 %v196, 1e-12
      %v199 = vrsqrt.pop %v197
      %v200 = vmul.f32 %v199, %v197
      %v201 = vmul.f32 %v200, %v199
      %v202 = vmul.f32 0.5, %v201
      %v203 = vsub.f32 1.5, %v202
      %v204 = vmul.f32 %v199, %v203
      %vm205 = vweird.f32 %v197
      %vm206 = vweird.f32 %v199
      %vm207 = vmor %vm205, %vm206
      %v208 = vsel %vm207, %v199, %v204
      %v209 = vrsqrt.pop %v198
      %v210 = vmul.f32 %v209, %v198
      %v211 = vmul.f32 %v210, %v209
      %v212 = vmul.f32 0.5, %v211
      %v213 = vsub.f32 1.5, %v212
      %v214 = vmul.f32 %v209, %v213
      %vm215 = vweird.f32 %v198
      %vm216 = vweird.f32 %v209
      %vm217 = vmor %vm215, %vm216
      %v218 = vsel %vm217, %v209, %v214
      %v219 = vmul.f32 %v185, %v208
      %v220 = vmul.f32 %v186, %v218
      %v221 = vld [vmem:[%s6] sm:$0x1]
      %v223 = vperm.slane %v221, 0
      %v225 = vmul.f32 %v223, %v219
      %v226 = vmul.f32 %v223, %v220
      %v227 = vld [vmem:[%s7] sm:$0x1]
      %v229 = vperm.slane %v227, 0
      %v231 = vadd.f32 %v225, %v229
      %v232 = vadd.f32 %v226, %v229
      %233 = vst.msk [vmem:[%s8] sm:$0xff] %vm78, %v231
      %234 = vst.msk [vmem:[%s8 + $0x8] sm:$0xff] %vm78, %v232
    $region49: #{transformer_forward.28} parent=1 // pred_fallthru
      _
    // Predicated region
    $region50: #{transformer_forward.28} parent=1 // pred_check
      _
    $region51: #{transformer_forward.28} parent=1 // pred_check_branch
      %236 = sbr.rel (0) target = $region53
    $region52: #{transformer_forward.28} parent=1 // pred_region
      _
    $region53: #{transformer_forward.28} parent=1 // pred_fallthru
      _
    // Predicated region
    $region54: #{transformer_forward.28} parent=1 // pred_check
      _
    $region55: #{transformer_forward.28} parent=1 // pred_check_branch
      %238 = sbr.rel (0) target = $region57
    $region56: #{transformer_forward.28} parent=1 // pred_region
      _
    $region57: #{transformer_forward.28} parent=1 // pred_fallthru
      _
    %239 = vsyncpa [#allocation4], 1
    %240 = vsyncpa [#allocation6], 1

// kernel: transformer_forward.26
$region0: #{transformer_forward.26}
  #allocation0 [shape = 'u32[]', space=smem, size = 0x4, offset = 0x4, fixed_abs, tag = 'smem constant byte address 0x4 - core index']
  #allocation1 [shape = 'u32[72,128]{1,0:T(1,128)}', space=vmem, size = 0x9000, scoped, tag = 'internal scratch']
  %s0 = inlined_call_operand.vmem [shape: f32[2,8,32], index: 0, kind: input, shape index: {}]
  %s1 = inlined_call_operand.vmem [shape: f32[2,8,32], index: 1, kind: input, shape index: {}]
  %s2 = inlined_call_operand.vmem [shape: f32[2,8,32], index: 2, kind: input, shape index: {}]
  %s3 = inlined_call_operand.vmem [shape: f32[2,8,1], index: 3, kind: input, shape index: {}]
  %s4 = inlined_call_operand.vmem [shape: f32[2,1,8], index: 4, kind: input, shape index: {}]
  %s5 = inlined_call_operand.vmem [shape: f32[2,8,32], index: 5, kind: output, shape index: {}]
  %s6 = sld [smem:[#allocation0]]
  $region53: #{transformer_forward.26} parent=0
    _
  %s8 = ssub.s32 1, %s6
  %s9 = scalar_select 0, %s8, %s6
  loop: start=0, step=1, limit=4
  $region2: #{transformer_forward.26} parent=0 // loop_pre_header
    _
  $region3: #{transformer_forward.26} parent=0 // loop_header
    %s11 = sphi 0, %s15
    %p12 = scmp.ge.s32.totalorder %s11, 4
    %s21 = sphi 0, %s23
    %s24 = sphi 0, %s21
    %s25 = sphi 0, %s24
    %s41 = sphi 0, %s25
    %s47 = sphi 0, %s49
    %s50 = sphi 0, %s47
    %s51 = sphi 0, %s50
    %s67 = sphi 0, %s51
    %s73 = sphi 0, %s75
    %s76 = sphi 0, %s73
    %s77 = sphi 0, %s76
    %s93 = sphi 0, %s77
    %s99 = sphi 0, %s101
    %s102 = sphi 0, %s99
    %s103 = sphi 0, %s102
    %s119 = sphi 0, %s103
    %s125 = sphi 0, %s127
    %s128 = sphi 0, %s125
    %s129 = sphi 0, %s128
    %s145 = sphi 0, %s129
    %s151 = sphi 0, %s153
    %s154 = sphi 0, %s151
    %s155 = sphi 0, %s154
    %s171 = sphi 0, %s155
  $region4: #{transformer_forward.26} parent=0 // loop_header_branch
    %14 = sbr.rel (%p12) target = $region8
  $region5: #{transformer_forward.26} parent=0 // loop_body
    %s16 = ssub.s32 %s11, 1
    %s17 = ssub.s32 %s11, 2
    %s18 = sadd.s32 %s11, 1
    %s19 = ssub.s32 %s11, %s18
    %p20 = scmp.eq.s32.totalorder %s19, 0
    %s22 = sadd.s32 %s21, 1
    %s23 = scalar_select %p20, %s21, %s22
    %p26 = pneg %p20
    %p27 = scmp.eq.s32.totalorder %s11, 1
    %p28 = por %p26, %p27
    %p29 = scmp.ne.s32.totalorder %s21, %s24
    %p30 = scmp.eq.s32.totalorder %s11, 0
    %p31 = por %p29, %p30
    %p32 = scmp.ne.s32.totalorder %s21, %s24
    %p33 = scmp.eq.s32.totalorder %s16, 1
    %p34 = por %p32, %p33
    %p35 = scmp.ne.s32.totalorder %s24, %s25
    %p36 = scmp.eq.s32.totalorder %s16, 0
    %p37 = por %p35, %p36
    %p38 = scmp.ne.s32.totalorder %s24, %s25
    %p39 = scmp.eq.s32.totalorder %s17, 1
    %p40 = por %p38, %p39
    %p42 = scmp.ne.s32.totalorder %s25, %s41
    %p43 = scmp.eq.s32.totalorder %s17, 0
    %p44 = por %p42, %p43
    %s45 = ssub.s32 %s11, %s18
    %p46 = scmp.eq.s32.totalorder %s45, 0
    %s48 = sadd.s32 %s47, 1
    %s49 = scalar_select %p46, %s47, %s48
    %p52 = pneg %p46
    %p53 = scmp.eq.s32.totalorder %s11, 1
    %p54 = por %p52, %p53
    %p55 = scmp.ne.s32.totalorder %s47, %s50
    %p56 = scmp.eq.s32.totalorder %s11, 0
    %p57 = por %p55, %p56
    %p58 = scmp.ne.s32.totalorder %s47, %s50
    %p59 = scmp.eq.s32.totalorder %s16, 1
    %p60 = por %p58, %p59
    %p61 = scmp.ne.s32.totalorder %s50, %s51
    %p62 = scmp.eq.s32.totalorder %s16, 0
    %p63 = por %p61, %p62
    %p64 = scmp.ne.s32.totalorder %s50, %s51
    %p65 = scmp.eq.s32.totalorder %s17, 1
    %p66 = por %p64, %p65
    %p68 = scmp.ne.s32.totalorder %s51, %s67
    %p69 = scmp.eq.s32.totalorder %s17, 0
    %p70 = por %p68, %p69
    %s71 = ssub.s32 %s11, %s18
    %p72 = scmp.eq.s32.totalorder %s71, 0
    %s74 = sadd.s32 %s73, 1
    %s75 = scalar_select %p72, %s73, %s74
    %p78 = pneg %p72
    %p79 = scmp.eq.s32.totalorder %s11, 1
    %p80 = por %p78, %p79
    %p81 = scmp.ne.s32.totalorder %s73, %s76
    %p82 = scmp.eq.s32.totalorder %s11, 0
    %p83 = por %p81, %p82
    %p84 = scmp.ne.s32.totalorder %s73, %s76
    %p85 = scmp.eq.s32.totalorder %s16, 1
    %p86 = por %p84, %p85
    %p87 = scmp.ne.s32.totalorder %s76, %s77
    %p88 = scmp.eq.s32.totalorder %s16, 0
    %p89 = por %p87, %p88
    %p90 = scmp.ne.s32.totalorder %s76, %s77
    %p91 = scmp.eq.s32.totalorder %s17, 1
    %p92 = por %p90, %p91
    %p94 = scmp.ne.s32.totalorder %s77, %s93
    %p95 = scmp.eq.s32.totalorder %s17, 0
    %p96 = por %p94, %p95
    %s97 = ssub.s32 %s11, %s18
    %p98 = scmp.eq.s32.totalorder %s97, 0
    %s100 = sadd.s32 %s99, 1
    %s101 = scalar_select %p98, %s99, %s100
    %p104 = pneg %p98
    %p105 = scmp.eq.s32.totalorder %s11, 1
    %p106 = por %p104, %p105
    %p107 = scmp.ne.s32.totalorder %s99, %s102
    %p108 = scmp.eq.s32.totalorder %s11, 0
    %p109 = por %p107, %p108
    %p110 = scmp.ne.s32.totalorder %s99, %s102
    %p111 = scmp.eq.s32.totalorder %s16, 1
    %p112 = por %p110, %p111
    %p113 = scmp.ne.s32.totalorder %s102, %s103
    %p114 = scmp.eq.s32.totalorder %s16, 0
    %p115 = por %p113, %p114
    %p116 = scmp.ne.s32.totalorder %s102, %s103
    %p117 = scmp.eq.s32.totalorder %s17, 1
    %p118 = por %p116, %p117
    %p120 = scmp.ne.s32.totalorder %s103, %s119
    %p121 = scmp.eq.s32.totalorder %s17, 0
    %p122 = por %p120, %p121
    %s123 = ssub.s32 %s11, %s18
    %p124 = scmp.eq.s32.totalorder %s123, 0
    %s126 = sadd.s32 %s125, 1
    %s127 = scalar_select %p124, %s125, %s126
    %p130 = pneg %p124
    %p131 = scmp.eq.s32.totalorder %s11, 1
    %p132 = por %p130, %p131
    %p133 = scmp.ne.s32.totalorder %s125, %s128
    %p134 = scmp.eq.s32.totalorder %s11, 0
    %p135 = por %p133, %p134
    %p136 = scmp.ne.s32.totalorder %s125, %s128
    %p137 = scmp.eq.s32.totalorder %s16, 1
    %p138 = por %p136, %p137
    %p139 = scmp.ne.s32.totalorder %s128, %s129
    %p140 = scmp.eq.s32.totalorder %s16, 0
    %p141 = por %p139, %p140
    %p142 = scmp.ne.s32.totalorder %s128, %s129
    %p143 = scmp.eq.s32.totalorder %s17, 1
    %p144 = por %p142, %p143
    %p146 = scmp.ne.s32.totalorder %s129, %s145
    %p147 = scmp.eq.s32.totalorder %s17, 0
    %p148 = por %p146, %p147
    %s149 = ssub.s32 %s11, %s18
    %p150 = scmp.eq.s32.totalorder %s149, 0
    %s152 = sadd.s32 %s151, 1
    %s153 = scalar_select %p150, %s151, %s152
    %p156 = pneg %p150
    %p157 = scmp.eq.s32.totalorder %s11, 1
    %p158 = por %p156, %p157
    %p159 = scmp.ne.s32.totalorder %s151, %s154
    %p160 = scmp.eq.s32.totalorder %s11, 0
    %p161 = por %p159, %p160
    %p162 = scmp.ne.s32.totalorder %s151, %s154
    %p163 = scmp.eq.s32.totalorder %s16, 1
    %p164 = por %p162, %p163
    %p165 = scmp.ne.s32.totalorder %s154, %s155
    %p166 = scmp.eq.s32.totalorder %s16, 0
    %p167 = por %p165, %p166
    %p168 = scmp.ne.s32.totalorder %s154, %s155
    %p169 = scmp.eq.s32.totalorder %s17, 1
    %p170 = por %p168, %p169
    %p172 = scmp.ne.s32.totalorder %s155, %s171
    %p173 = scmp.eq.s32.totalorder %s17, 0
    %p174 = por %p172, %p173
    %p175 = scmp.le.s32.totalorder 1, %s11
    %p176 = scmp.lt.s32.totalorder %s11, 3
    %p177 = pnand %p175, %p176
    %p178 = pneg %p177
    // Predicated region
    $region9: #{transformer_forward.26} parent=5 // pred_check
      _
    $region10: #{transformer_forward.26} parent=5 // pred_check_branch
      %180 = sbr.rel (%p177) target = $region12
    $region11: #{transformer_forward.26} parent=5 // pred_region
      %s181 = ssub.s32 %s11, 1
    $region12: #{transformer_forward.26} parent=5 // pred_fallthru
      _
    %p182 = scmp.lt.s32.totalorder %s11, 2
    // Predicated region
    $region13: #{transformer_forward.26} parent=5 // pred_check
      %p183 = pneg %p182
    $region14: #{transformer_forward.26} parent=5 // pred_check_branch
      %185 = sbr.rel (%p183) target = $region16
    $region15: #{transformer_forward.26} parent=5 // pred_region
      // Predicated region
      $region17: #{transformer_forward.26} parent=15 // pred_check
        %p186 = pneg %p31
      $region18: #{transformer_forward.26} parent=15 // pred_check_branch
        %188 = sbr.rel (%p186) target = $region20
      $region19: #{transformer_forward.26} parent=15 // pred_region
        %p189 = scmp.lt.s32.totalorder %s11, 1
        %s190 = scalar_select %p189, %s11, 1
        %s191 = smul.addr %s190, 8
        %s192 = scalar_lea.vmem %s0, %s191
      $region20: #{transformer_forward.26} parent=15 // pred_fallthru
        _
      // Predicated region
      $region21: #{transformer_forward.26} parent=15 // pred_check
        %p193 = pneg %p57
      $region22: #{transformer_forward.26} parent=15 // pred_check_branch
        %195 = sbr.rel (%p193) target = $region24
      $region23: #{transformer_forward.26} parent=15 // pred_region
        %p196 = scmp.lt.s32.totalorder %s11, 1
        %s197 = scalar_select %p196, %s11, 1
        %s198 = smul.addr %s197, 8
        %s199 = scalar_lea.vmem %s1, %s198
      $region24: #{transformer_forward.26} parent=15 // pred_fallthru
        _
      // Predicated region
      $region25: #{transformer_forward.26} parent=15 // pred_check
        %p200 = pneg %p83
      $region26: #{transformer_forward.26} parent=15 // pred_check_branch
        %202 = sbr.rel (%p200) target = $region28
      $region27: #{transformer_forward.26} parent=15 // pred_region
        %p203 = scmp.lt.s32.totalorder %s11, 1
        %s204 = scalar_select %p203, %s11, 1
        %s205 = smul.addr %s204, 8
        %s206 = scalar_lea.vmem %s2, %s205
      $region28: #{transformer_forward.26} parent=15 // pred_fallthru
        _
      // Predicated region
      $region29: #{transformer_forward.26} parent=15 // pred_check
        %p207 = pneg %p109
      $region30: #{transformer_forward.26} parent=15 // pred_check_branch
        %209 = sbr.rel (%p207) target = $region32
      $region31: #{transformer_forward.26} parent=15 // pred_region
        %p210 = scmp.lt.s32.totalorder %s11, 1
        %s211 = scalar_select %p210, %s11, 1
        %s212 = smul.addr %s211, 8
        %s213 = scalar_lea.vmem %s3, %s212
      $region32: #{transformer_forward.26} parent=15 // pred_fallthru
        _
      // Predicated region
      $region33: #{transformer_forward.26} parent=15 // pred_check
        %p214 = pneg %p135
      $region34: #{transformer_forward.26} parent=15 // pred_check_branch
        %216 = sbr.rel (%p214) target = $region36
      $region35: #{transformer_forward.26} parent=15 // pred_region
        %p217 = scmp.lt.s32.totalorder %s11, 1
        %s218 = scalar_select %p217, %s11, 1
        %s219 = scalar_lea.vmem %s4, %s218
      $region36: #{transformer_forward.26} parent=15 // pred_fallthru
        _
    $region16: #{transformer_forward.26} parent=5 // pred_fallthru
      _
    %p220 = scmp.le.s32.totalorder 1, %s11
    %p221 = scmp.lt.s32.totalorder %s11, 3
    %p222 = pnand %p220, %p221
    %p223 = pneg %p222
    // Predicated region
    $region37: #{transformer_forward.26} parent=5 // pred_check
      _
    $region38: #{transformer_forward.26} parent=5 // pred_check_branch
      %225 = sbr.rel (%p222) target = $region40
    $region39: #{transformer_forward.26} parent=5 // pred_region
      %s226 = ssub.s32 %s11, 1
      %p227 = scmp.lt.s32.totalorder %s16, 1
      %s228 = scalar_select %p227, %s16, 1
      %s229 = smul.addr %s228, 8
      %s230 = scalar_lea.vmem %s0, %s229
      %p231 = pneg %p37
      %p232 = pneg %p34
      %p233 = scmp.lt.s32.totalorder %s16, 1
      %s234 = scalar_select %p233, %s16, 1
      %s235 = smul.addr %s234, 8
      %s236 = scalar_lea.vmem %s1, %s235
      %p237 = pneg %p63
      %p238 = pneg %p60
      %p239 = scmp.lt.s32.totalorder %s16, 1
      %s240 = scalar_select %p239, %s16, 1
      %s241 = smul.addr %s240, 8
      %s242 = scalar_lea.vmem %s2, %s241
      %p243 = pneg %p89
      %p244 = pneg %p86
      %p245 = scmp.lt.s32.totalorder %s16, 1
      %s246 = scalar_select %p245, %s16, 1
      %s247 = smul.addr %s246, 8
      %s248 = scalar_lea.vmem %s3, %s247
      %p249 = pneg %p115
      %p250 = pneg %p112
      %p251 = scmp.lt.s32.totalorder %s16, 1
      %s252 = scalar_select %p251, %s16, 1
      %s253 = scalar_lea.vmem %s4, %s252
      %p254 = pneg %p141
      %p255 = pneg %p138
      %p256 = pneg %p167
      %p257 = pneg %p164
      %p258 = scmp.lt.s32.totalorder %s16, 1
      %s259 = scalar_select %p258, %s16, 1
      %s260 = smul.addr %s259, 8
      %s261 = scalar_lea.vmem %s5, %s260
      %p262 = scmp.lt.s32.totalorder %s16, 1
      %s263 = scalar_select %p262, %s16, 1
      %s264 = smul.addr %s263, 8
      %s265 = scalar_lea.vmem %s0, %s264
      %p266 = scmp.lt.s32.totalorder %s16, 1
      %s267 = scalar_select %p266, %s16, 1
      %s268 = smul.addr %s267, 8
      %s269 = scalar_lea.vmem %s1, %s268
      %p270 = scmp.lt.s32.totalorder %s16, 1
      %s271 = scalar_select %p270, %s16, 1
      %s272 = smul.addr %s271, 8
      %s273 = scalar_lea.vmem %s2, %s272
      %p274 = scmp.lt.s32.totalorder %s16, 1
      %s275 = scalar_select %p274, %s16, 1
      %s276 = smul.addr %s275, 8
      %s277 = scalar_lea.vmem %s3, %s276
      %p278 = scmp.lt.s32.totalorder %s16, 1
      %s279 = scalar_select %p278, %s16, 1
      %s280 = scalar_lea.vmem %s4, %s279
      %p281 = scmp.lt.s32.totalorder %s16, 1
      %s282 = scalar_select %p281, %s16, 1
      %s283 = smul.addr %s282, 8
      %s284 = scalar_lea.vmem %s5, %s283
      %v285 = vld [vmem:[%s265] sm:$0xff]
      %v286 = vld [vmem:[%s269] sm:$0xff]
      %v287 = vld [vmem:[%s273] sm:$0xff]
      %v288 = vld [vmem:[%s277] sm:$0xff]
      %v289 = vld [vmem:[%s280] sm:$0x1]
      %vm290 = vcmp.gt.f32.partialorder %v288, 0.0
      %vm291 = vcmp.gt.f32.partialorder %v289, 0.0
      %v292 = vsel %vm290, 1, 0
      %293 = vset.pattern.permute.xlu0 0
      %294 = vperm.xlu0 %293, %v292
      %v295 = vpop.permute.xlu0 %294
      %vm296 = vcmp.eq.s32.totalorder %v295, 1
      %v297 = vsel %vm291, 1, 0
      %v298 = vperm.slane %v297, 0
      %vm299 = vcmp.eq.s32.totalorder %v298, 1
      %vm300 = vmand %vm296, %vm299
      %vm301 = vcmask 64512
      %v303 = vsel %vm301, %v285, 0
      %v306 = vsel %vm301, %v286, 0
      %308 = vmatpush.xpose.msra.mxu0 0.0
      %309 = vmatpush.xpose.msra.mxu0 0.0
      %310 = vmatpush.xpose.msra.mxu0 0.0
      %311 = vmatpush.xpose.msra.mxu0 0.0
      %312 = vmatpush.xpose.msra.mxu0 0.0
      %313 = vmatpush.xpose.msra.mxu0 0.0
      %314 = vmatpush.xpose.msra.mxu0 0.0
      %315 = vmatpush.xpose.msra.mxu0 0.0
      %316 = vmatpush.xpose.msra.mxu0 0.0
      %317 = vmatpush.xpose.msra.mxu0 0.0
      %318 = vmatpush.xpose.msra.mxu0 0.0
      %319 = vmatpush.xpose.msra.mxu0 0.0
      %320 = vmatpush.xpose.msra.mxu0 0.0
      %321 = vmatpush.xpose.msra.mxu0 0.0
      %322 = vmatpush.xpose.msra.mxu0 0.0
      %323 = vmatpush.xpose.msra.mxu0 %v306
      %324 = vmatmul.f32.gmra.mxu0 %v303
      %v325 = vpop.f32.mrf.mxu0
      %v326 = vadd.f32 0.0, %v325
      %327 = vdwg.mxu0
      %v328 = vmul.f32 %v326, 0.35355338
      %v329 = vsel %vm300, %v328, -10000.0
      %v330 = vsel %vm301, %v329, -inf
      %331 = vmax.xlane.f32.xlu0 %v330
      %v332 = vpop.xlane.xlu0 %331
      %v333 = vsub.f32 %v329, %v332
      %v334 = vmul.f32 %v333, 1.442695
      %v335 = vpow.pop %v334
      %v336 = vsel %vm301, %v335, 0.0
      %337 = vadd.xlane.f32.xlu0 %v336
      %v338 = vpop.xlane.xlu0 %337
      %v339 = vrcp.pop %v338
      %v340 = vmul.f32 %v335, %v339
      %v342 = vsel %vm301, %v340, 0
      %344 = vmatpush.msra.mxu0 0.0
      %345 = vmatpush.msra.mxu0 0.0
      %346 = vmatpush.msra.mxu0 0.0
      %347 = vmatpush.msra.mxu0 0.0
      %348 = vmatpush.msra.mxu0 0.0
      %349 = vmatpush.msra.mxu0 0.0
      %350 = vmatpush.msra.mxu0 0.0
      %351 = vmatpush.msra.mxu0 0.0
      %352 = vmatpush.msra.mxu0 0.0
      %353 = vmatpush.msra.mxu0 0.0
      %354 = vmatpush.msra.mxu0 0.0
      %355 = vmatpush.msra.mxu0 0.0
      %356 = vmatpush.msra.mxu0 0.0
      %357 = vmatpush.msra.mxu0 0.0
      %358 = vmatpush.msra.mxu0 0.0
      %359 = vmatpush.msra.mxu0 %v287
      %360 = vmatmul.f32.gmra.mxu0 %v342
      %v361 = vpop.f32.mrf.mxu0
      %v362 = vadd.f32 0.0, %v361
      %363 = vdwg.mxu0
      %364 = vrot.lane.b32.xlu0 %v285, 120
      %v365 = vpop.permute.xlu0 %364
      %366 = vrot.lane.b32.xlu0 %v286, 120
      %v367 = vpop.permute.xlu0 %366
      %v368 = vsel %vm301, %v365, 0
      %v370 = vsel %vm301, %v367, 0
      %372 = vmatpush.xpose.msra.mxu0 0.0
      %373 = vmatpush.xpose.msra.mxu0 0.0
      %374 = vmatpush.xpose.msra.mxu0 0.0
      %375 = vmatpush.xpose.msra.mxu0 0.0
      %376 = vmatpush.xpose.msra.mxu0 0.0
      %377 = vmatpush.xpose.msra.mxu0 0.0
      %378 = vmatpush.xpose.msra.mxu0 0.0
      %379 = vmatpush.xpose.msra.mxu0 0.0
      %380 = vmatpush.xpose.msra.mxu0 0.0
      %381 = vmatpush.xpose.msra.mxu0 0.0
      %382 = vmatpush.xpose.msra.mxu0 0.0
      %383 = vmatpush.xpose.msra.mxu0 0.0
      %384 = vmatpush.xpose.msra.mxu0 0.0
      %385 = vmatpush.xpose.msra.mxu0 0.0
      %386 = vmatpush.xpose.msra.mxu0 0.0
      %387 = vmatpush.xpose.msra.mxu0 %v370
      %388 = vmatmul.f32.gmra.mxu0 %v368
      %v389 = vpop.f32.mrf.mxu0
      %v390 = vadd.f32 0.0, %v389
      %391 = vdwg.mxu0
      %v392 = vmul.f32 %v390, 0.35355338
      %v393 = vsel %vm300, %v392, -10000.0
      %v394 = vsel %vm301, %v393, -inf
      %395 = vmax.xlane.f32.xlu0 %v394
      %v396 = vpop.xlane.xlu0 %395
      %v397 = vsub.f32 %v393, %v396
      %v398 = vmul.f32 %v397, 1.442695
      %v399 = vpow.pop %v398
      %v400 = vsel %vm301, %v399, 0.0
      %401 = vadd.xlane.f32.xlu0 %v400
      %v402 = vpop.xlane.xlu0 %401
      %v403 = vrcp.pop %v402
      %v404 = vmul.f32 %v399, %v403
      %406 = vrot.lane.b32.xlu0 %v287, 120
      %v407 = vpop.permute.xlu0 %406
      %v410 = vsel %vm301, %v404, 0
      %412 = vmatpush.msra.mxu0 0.0
      %413 = vmatpush.msra.mxu0 0.0
      %414 = vmatpush.msra.mxu0 0.0
      %415 = vmatpush.msra.mxu0 0.0
      %416 = vmatpush.msra.mxu0 0.0
      %417 = vmatpush.msra.mxu0 0.0
      %418 = vmatpush.msra.mxu0 0.0
      %419 = vmatpush.msra.mxu0 0.0
      %420 = vmatpush.msra.mxu0 0.0
      %421 = vmatpush.msra.mxu0 0.0
      %422 = vmatpush.msra.mxu0 0.0
      %423 = vmatpush.msra.mxu0 0.0
      %424 = vmatpush.msra.mxu0 0.0
      %425 = vmatpush.msra.mxu0 0.0
      %426 = vmatpush.msra.mxu0 0.0
      %427 = vmatpush.msra.mxu0 %v407
      %428 = vmatmul.f32.gmra.mxu0 %v410
      %v429 = vpop.f32.mrf.mxu0
      %v430 = vadd.f32 0.0, %v429
      %431 = vdwg.mxu0
      %432 = vrot.lane.b32.xlu0 %v285, 112
      %v433 = vpop.permute.xlu0 %432
      %434 = vrot.lane.b32.xlu0 %v286, 112
      %v435 = vpop.permute.xlu0 %434
      %v436 = vsel %vm301, %v433, 0
      %v438 = vsel %vm301, %v435, 0
      %440 = vmatpush.xpose.msra.mxu0 0.0
      %441 = vmatpush.xpose.msra.mxu0 0.0
      %442 = vmatpush.xpose.msra.mxu0 0.0
      %443 = vmatpush.xpose.msra.mxu0 0.0
      %444 = vmatpush.xpose.msra.mxu0 0.0
      %445 = vmatpush.xpose.msra.mxu0 0.0
      %446 = vmatpush.xpose.msra.mxu0 0.0
      %447 = vmatpush.xpose.msra.mxu0 0.0
      %448 = vmatpush.xpose.msra.mxu0 0.0
      %449 = vmatpush.xpose.msra.mxu0 0.0
      %450 = vmatpush.xpose.msra.mxu0 0.0
      %451 = vmatpush.xpose.msra.mxu0 0.0
      %452 = vmatpush.xpose.msra.mxu0 0.0
      %453 = vmatpush.xpose.msra.mxu0 0.0
      %454 = vmatpush.xpose.msra.mxu0 0.0
      %455 = vmatpush.xpose.msra.mxu0 %v438
      %456 = vmatmul.f32.gmra.mxu0 %v436
      %v457 = vpop.f32.mrf.mxu0
      %v458 = vadd.f32 0.0, %v457
      %459 = vdwg.mxu0
      %v460 = vmul.f32 %v458, 0.35355338
      %v461 = vsel %vm300, %v460, -10000.0
      %v462 = vsel %vm301, %v461, -inf
      %463 = vmax.xlane.f32.xlu0 %v462
      %v464 = vpop.xlane.xlu0 %463
      %v465 = vsub.f32 %v461, %v464
      %v466 = vmul.f32 %v465, 1.442695
      %v467 = vpow.pop %v466
      %v468 = vsel %vm301, %v467, 0.0
      %469 = vadd.xlane.f32.xlu0 %v468
      %v470 = vpop.xlane.xlu0 %469
      %v471 = vrcp.pop %v470
      %v472 = vmul.f32 %v467, %v471
      %473 = vrot.lane.b32.xlu0 %v287, 112
      %v474 = vpop.permute.xlu0 %473
      %v477 = vsel %vm301, %v472, 0
      %479 = vmatpush.msra.mxu0 0.0
      %480 = vmatpush.msra.mxu0 0.0
      %481 = vmatpush.msra.mxu0 0.0
      %482 = vmatpush.msra.mxu0 0.0
      %483 = vmatpush.msra.mxu0 0.0
      %484 = vmatpush.msra.mxu0 0.0
      %485 = vmatpush.msra.mxu0 0.0
      %486 = vmatpush.msra.mxu0 0.0
      %487 = vmatpush.msra.mxu0 0.0
      %488 = vmatpush.msra.mxu0 0.0
      %489 = vmatpush.msra.mxu0 0.0
      %490 = vmatpush.msra.mxu0 0.0
      %491 = vmatpush.msra.mxu0 0.0
      %492 = vmatpush.msra.mxu0 0.0
      %493 = vmatpush.msra.mxu0 0.0
      %494 = vmatpush.msra.mxu0 %v474
      %495 = vmatmul.f32.gmra.mxu0 %v477
      %v496 = vpop.f32.mrf.mxu0
      %v497 = vadd.f32 0.0, %v496
      %498 = vdwg.mxu0
      %499 = vrot.lane.b32.xlu0 %v285, 104
      %v500 = vpop.permute.xlu0 %499
      %501 = vrot.lane.b32.xlu0 %v286, 104
      %v502 = vpop.permute.xlu0 %501
      %v503 = vsel %vm301, %v500, 0
      %v505 = vsel %vm301, %v502, 0
      %507 = vmatpush.xpose.msra.mxu0 0.0
      %508 = vmatpush.xpose.msra.mxu0 0.0
      %509 = vmatpush.xpose.msra.mxu0 0.0
      %510 = vmatpush.xpose.msra.mxu0 0.0
      %511 = vmatpush.xpose.msra.mxu0 0.0
      %512 = vmatpush.xpose.msra.mxu0 0.0
      %513 = vmatpush.xpose.msra.mxu0 0.0
      %514 = vmatpush.xpose.msra.mxu0 0.0
      %515 = vmatpush.xpose.msra.mxu0 0.0
      %516 = vmatpush.xpose.msra.mxu0 0.0
      %517 = vmatpush.xpose.msra.mxu0 0.0
      %518 = vmatpush.xpose.msra.mxu0 0.0
      %519 = vmatpush.xpose.msra.mxu0 0.0
      %520 = vmatpush.xpose.msra.mxu0 0.0
      %521 = vmatpush.xpose.msra.mxu0 0.0
      %522 = vmatpush.xpose.msra.mxu0 %v505
      %523 = vmatmul.f32.gmra.mxu0 %v503
      %v524 = vpop.f32.mrf.mxu0
      %v525 = vadd.f32 0.0, %v524
      %526 = vdwg.mxu0
      %v527 = vmul.f32 %v525, 0.35355338
      %v528 = vsel %vm300, %v527, -10000.0
      %v529 = vsel %vm301, %v528, -inf
      %530 = vmax.xlane.f32.xlu0 %v529
      %v531 = vpop.xlane.xlu0 %530
      %v532 = vsub.f32 %v528, %v531
      %v533 = vmul.f32 %v532, 1.442695
      %v534 = vpow.pop %v533
      %v535 = vsel %vm301, %v534, 0.0
      %536 = vadd.xlane.f32.xlu0 %v535
      %v537 = vpop.xlane.xlu0 %536
      %v538 = vrcp.pop %v537
      %v539 = vmul.f32 %v534, %v538
      %540 = vrot.lane.b32.xlu0 %v287, 104
      %v541 = vpop.permute.xlu0 %540
      %v544 = vsel %vm301, %v539, 0
      %546 = vmatpush.msra.mxu0 0.0
      %547 = vmatpush.msra.mxu0 0.0
      %548 = vmatpush.msra.mxu0 0.0
      %549 = vmatpush.msra.mxu0 0.0
      %550 = vmatpush.msra.mxu0 0.0
      %551 = vmatpush.msra.mxu0 0.0
      %552 = vmatpush.msra.mxu0 0.0
      %553 = vmatpush.msra.mxu0 0.0
      %554 = vmatpush.msra.mxu0 0.0
      %555 = vmatpush.msra.mxu0 0.0
      %556 = vmatpush.msra.mxu0 0.0
      %557 = vmatpush.msra.mxu0 0.0
      %558 = vmatpush.msra.mxu0 0.0
      %559 = vmatpush.msra.mxu0 0.0
      %560 = vmatpush.msra.mxu0 0.0
      %561 = vmatpush.msra.mxu0 %v541
      %562 = vmatmul.f32.gmra.mxu0 %v544
      %v563 = vpop.f32.mrf.mxu0
      %v564 = vadd.f32 0.0, %v563
      %565 = vdwg.mxu0
      %567 = vrot.lane.b32.xlu0 %v430, 8
      %v568 = vpop.permute.xlu0 %567
      %571 = vrot.lane.b32.xlu0 %v497, 16
      %v572 = vpop.permute.xlu0 %571
      %575 = vrot.lane.b32.xlu0 %v564, 24
      %v576 = vpop.permute.xlu0 %575
      %v578 = vsel %vm301, %v362, %v568
      %vm579 = vcmask 130048
      %v580 = vsel %vm579, %v578, %v572
      %vm581 = vcmask 195584
      %v582 = vsel %vm581, %v580, %v576
      %vm583 = vcmask 261120
      %584 = vst.msk [vmem:[%s284] sm:$0xff] %vm583, %v582
      %p585 = scmp.lt.s32.totalorder %s16, 1
      %s586 = scalar_select %p585, %s16, 1
      %s587 = smul.addr %s586, 8
      %s588 = scalar_lea.vmem %s5, %s587
      // Predicated region
      $region41: #{transformer_forward.26} parent=39 // pred_check
        %p589 = pneg %p164
      $region42: #{transformer_forward.26} parent=39 // pred_check_branch
        %591 = sbr.rel (%p589) target = $region44
      $region43: #{transformer_forward.26} parent=39 // pred_region
        _
      $region44: #{transformer_forward.26} parent=39 // pred_fallthru
        _
    $region40: #{transformer_forward.26} parent=5 // pred_fallthru
      _
    %p592 = scmp.le.s32.totalorder 2, %s11
    // Predicated region
    $region45: #{transformer_forward.26} parent=5 // pred_check
      %p593 = pneg %p592
    $region46: #{transformer_forward.26} parent=5 // pred_check_branch
      %595 = sbr.rel (%p593) target = $region48
    $region47: #{transformer_forward.26} parent=5 // pred_region
      %s596 = ssub.s32 %s11, 2
      // Predicated region
      $region49: #{transformer_forward.26} parent=47 // pred_check
        %p597 = pneg %p170
      $region50: #{transformer_forward.26} parent=47 // pred_check_branch
        %599 = sbr.rel (%p597) target = $region52
      $region51: #{transformer_forward.26} parent=47 // pred_region
        %p600 = scmp.lt.s32.totalorder %s17, 1
        %s601 = scalar_select %p600, %s17, 1
        %s602 = smul.addr %s601, 8
        %s603 = scalar_lea.vmem %s5, %s602
      $region52: #{transformer_forward.26} parent=47 // pred_fallthru
        _
    $region48: #{transformer_forward.26} parent=5 // pred_fallthru
      _
  $region6: #{transformer_forward.26} parent=0 // loop_footer
    %s15 = sadd.s32 1, %s11
  $region7: #{transformer_forward.26} parent=0 // loop_footer_branch
    %10 = sbr.rel target = $region3
  $region8: #{transformer_forward.26} parent=0 // loop_exit
    _

// kernel: transformer_forward.32
$region0: #{transformer_forward.32}
  #allocation0 [shape = 'u32[]', space=smem, size = 0x4, offset = 0x4, fixed_abs, tag = 'smem constant byte address 0x4 - core index']
  #allocation1 [shape = 'u32[72,128]{1,0:T(1,128)}', space=vmem, size = 0x9000, scoped, tag = 'internal scratch']
  #allocation2 [shape = 'f32[16,32]{1,0:T(8,128)}', space=vmem, size = 0x2000, scoped, tag = 'scratch operand']
  %s0 = inlined_call_operand.vmem [shape: f32[16,32], index: 0, kind: input, shape index: {}, may-alias: {0,5}]
  %s1 = inlined_call_operand.hbm [shape: f32[32,128], index: 1, kind: input, shape index: {}]
  %s2 = inlined_call_operand.vmem [shape: f32[1,128], index: 2, kind: input, shape index: {}]
  %s3 = inlined_call_operand.vmem [shape: f32[128,32], index: 3, kind: input, shape index: {}]
  %s4 = inlined_call_operand.vmem [shape: f32[1,32], index: 4, kind: input, shape index: {}, may-alias: {4,7}]
  %s5 = inlined_call_operand.vmem [shape: f32[16,32], index: 5, kind: input, shape index: {}, may-alias: {0,5}]
  %s6 = inlined_call_operand.vmem [shape: f32[1,32], index: 6, kind: input, shape index: {}]
  %s7 = inlined_call_operand.vmem [shape: f32[1,32], index: 7, kind: input, shape index: {}, may-alias: {4,7}]
  %s8 = inlined_call_operand.vmem [shape: f32[16,32], index: 8, kind: output, shape index: {}]
  %s9 = sld [smem:[#allocation0]]
  $region54: #{transformer_forward.32} parent=0
    _
  %s11 = ssub.s32 1, %s9
  %s12 = scalar_select 0, %s11, %s9
  $region1: #{transformer_forward.32} parent=0
    #allocation3 [shape = 'u8[16384]{0}', space=vmem, size = 0x4000, scoped, tag = 'input window, operand 1, single buffered']
    #allocation4 [shape = 's32[1]{0}', space=sflag, size = 0x4, scoped, tag = 'scoped memory for transformer_forward.32']
    %13 = vsyncpa [#allocation4], 0
    // Predicated region
    $region2: #{transformer_forward.32} parent=1 // pred_check
      _
    $region3: #{transformer_forward.32} parent=1 // pred_check_branch
      %15 = sbr.rel (0) target = $region5
    $region4: #{transformer_forward.32} parent=1 // pred_region
      _
    $region5: #{transformer_forward.32} parent=1 // pred_fallthru
      _
    // Predicated region
    $region6: #{transformer_forward.32} parent=1 // pred_check
      _
    $region7: #{transformer_forward.32} parent=1 // pred_check_branch
      %17 = sbr.rel (0) target = $region9
    $region8: #{transformer_forward.32} parent=1 // pred_region
      %19 = vsyncadd [#allocation4], 0
      %s20 = sshll.u32 %s1, 4
      %s21 = int_to_ptr.hbm [resolvable:$true] %s20
      %s22 = sshll.u32 [#allocation3], 4
      %s23 = int_to_ptr.vmem [resolvable:$true] %s22
      %28 = dma.hbm_to_vmem [thread:$0]  %s21, 512, %s23, [#allocation4], 128, 128, 8
    $region9: #{transformer_forward.32} parent=1 // pred_fallthru
      _
    // Predicated region
    $region10: #{transformer_forward.32} parent=1 // pred_check
      _
    $region11: #{transformer_forward.32} parent=1 // pred_check_branch
      %30 = sbr.rel (0) target = $region13
    $region12: #{transformer_forward.32} parent=1 // pred_region
      _
    $region13: #{transformer_forward.32} parent=1 // pred_fallthru
      _
    // Predicated region
    $region14: #{transformer_forward.32} parent=1 // pred_check
      _
    $region15: #{transformer_forward.32} parent=1 // pred_check_branch
      %32 = sbr.rel (0) target = $region17
    $region16: #{transformer_forward.32} parent=1 // pred_region
      _
    $region17: #{transformer_forward.32} parent=1 // pred_fallthru
      _
    // Predicated region
    $region18: #{transformer_forward.32} parent=1 // pred_check
      _
    $region19: #{transformer_forward.32} parent=1 // pred_check_branch
      %34 = sbr.rel (0) target = $region21
    $region20: #{transformer_forward.32} parent=1 // pred_region
      _
    $region21: #{transformer_forward.32} parent=1 // pred_fallthru
      _
    // Predicated region
    $region22: #{transformer_forward.32} parent=1 // pred_check
      _
    $region23: #{transformer_forward.32} parent=1 // pred_check_branch
      %36 = sbr.rel (0) target = $region25
    $region24: #{transformer_forward.32} parent=1 // pred_region
      _
    $region25: #{transformer_forward.32} parent=1 // pred_fallthru
      _
    // Predicated region
    $region26: #{transformer_forward.32} parent=1 // pred_check
      _
    $region27: #{transformer_forward.32} parent=1 // pred_check_branch
      %38 = sbr.rel (0) target = $region29
    $region28: #{transformer_forward.32} parent=1 // pred_region
      _
    $region29: #{transformer_forward.32} parent=1 // pred_fallthru
      _
    // Predicated region
    $region30: #{transformer_forward.32} parent=1 // pred_check
      _
    $region31: #{transformer_forward.32} parent=1 // pred_check_branch
      %40 = sbr.rel (0) target = $region33
    $region32: #{transformer_forward.32} parent=1 // pred_region
      _
    $region33: #{transformer_forward.32} parent=1 // pred_fallthru
      _
    // Predicated region
    $region34: #{transformer_forward.32} parent=1 // pred_check
      _
    $region35: #{transformer_forward.32} parent=1 // pred_check_branch
      %42 = sbr.rel (0) target = $region37
    $region36: #{transformer_forward.32} parent=1 // pred_region
      %44 = dma.done [#allocation4], 512
    $region37: #{transformer_forward.32} parent=1 // pred_fallthru
      _
    %p45 = scmp.eq.s32.totalorder 0, 0
    // Predicated region
    $region38: #{transformer_forward.32} parent=1 // pred_check
      %p46 = pneg %p45
    $region39: #{transformer_forward.32} parent=1 // pred_check_branch
      %48 = sbr.rel (%p46) target = $region41
    $region40: #{transformer_forward.32} parent=1 // pred_region
      %vm49 = vcmask 261120
      %50 = vst.msk [vmem:[#allocation2] sm:$0xff] %vm49, 0.0
      %51 = vst.msk [vmem:[#allocation2 + $0x8] sm:$0xff] %vm49, 0.0
    $region41: #{transformer_forward.32} parent=1 // pred_fallthru
      _
    %v52 = vld [vmem:[%s0] sm:$0xff]
    %v53 = vld [vmem:[%s0 + $0x8] sm:$0xff]
    %v54 = vld [vmem:[#allocation3] sm:$0xff]
    %v55 = vld [vmem:[#allocation3 + $0x8] sm:$0xff]
    %v56 = vld [vmem:[#allocation3 + $0x10] sm:$0xff]
    %v57 = vld [vmem:[#allocation3 + $0x18] sm:$0xff]
    %v58 = vld [vmem:[%s2] sm:$0x1]
    %v60 = vperm.slane %v58, 0
    %vm62 = vcmask 261120
    %v64 = vsel %vm62, %v52, 0
    %v67 = vsel %vm62, %v53, 0
    %69 = vmatpush.msra.mxu0 0.0
    %70 = vmatpush.msra.mxu0 0.0
    %71 = vmatpush.msra.mxu0 0.0
    %72 = vmatpush.msra.mxu0 0.0
    %73 = vmatpush.msra.mxu0 0.0
    %74 = vmatpush.msra.mxu0 0.0
    %75 = vmatpush.msra.mxu0 0.0
    %76 = vmatpush.msra.mxu0 0.0
    %77 = vmatpush.msra.mxu0 0.0
    %78 = vmatpush.msra.mxu0 0.0
    %79 = vmatpush.msra.mxu0 0.0
    %80 = vmatpush.msra.mxu0 0.0
    %81 = vmatpush.msra.mxu0 %v57
    %82 = vmatpush.msra.mxu0 %v56
    %83 = vmatpush.msra.mxu0 %v55
    %84 = vmatpush.msra.mxu0 %v54
    %85 = vmatmul.f32.gmra.mxu0 %v64
    %v86 = vpop.f32.mrf.mxu0
    %v87 = vadd.f32 %v60, %v86
    %88 = vmatmul.f32.gmra.mxu0 %v67
    %v89 = vpop.f32.mrf.mxu0
    %v90 = vadd.f32 %v60, %v89
    %91 = vdwg.mxu0
    %v92 = vmax.f32 %v87, 0.0
    %v93 = vmax.f32 %v90, 0.0
    %v94 = vld [vmem:[#allocation2] sm:$0xff]
    %v95 = vld [vmem:[#allocation2 + $0x8] sm:$0xff]
    %v96 = vld [vmem:[%s3] sm:$0xff]
    %v97 = vld [vmem:[%s3 + $0x8] sm:$0xff]
    %v98 = vld [vmem:[%s3 + $0x10] sm:$0xff]
    %v99 = vld [vmem:[%s3 + $0x18] sm:$0xff]
    %v100 = vld [vmem:[%s3 + $0x20] sm:$0xff]
    %v101 = vld [vmem:[%s3 + $0x28] sm:$0xff]
    %v102 = vld [vmem:[%s3 + $0x30] sm:$0xff]
    %v103 = vld [vmem:[%s3 + $0x38] sm:$0xff]
    %v104 = vld [vmem:[%s3 + $0x40] sm:$0xff]
    %v105 = vld [vmem:[%s3 + $0x48] sm:$0xff]
    %v106 = vld [vmem:[%s3 + $0x50] sm:$0xff]
    %v107 = vld [vmem:[%s3 + $0x58] sm:$0xff]
    %v108 = vld [vmem:[%s3 + $0x60] sm:$0xff]
    %v109 = vld [vmem:[%s3 + $0x68] sm:$0xff]
    %v110 = vld [vmem:[%s3 + $0x70] sm:$0xff]
    %v111 = vld [vmem:[%s3 + $0x78] sm:$0xff]
    %112 = vmatpush.msra.mxu0 %v111
    %113 = vmatpush.msra.mxu0 %v110
    %114 = vmatpush.msra.mxu0 %v109
    %115 = vmatpush.msra.mxu0 %v108
    %116 = vmatpush.msra.mxu0 %v107
    %117 = vmatpush.msra.mxu0 %v106
    %118 = vmatpush.msra.mxu0 %v105
    %119 = vmatpush.msra.mxu0 %v104
    %120 = vmatpush.msra.mxu0 %v103
    %121 = vmatpush.msra.mxu0 %v102
    %122 = vmatpush.msra.mxu0 %v101
    %123 = vmatpush.msra.mxu0 %v100
    %124 = vmatpush.msra.mxu0 %v99
    %125 = vmatpush.msra.mxu0 %v98
    %126 = vmatpush.msra.mxu0 %v97
    %127 = vmatpush.msra.mxu0 %v96
    %128 = vmatmul.f32.gmra.mxu0 %v92
    %v129 = vpop.f32.mrf.mxu0
    %v130 = vadd.f32 0.0, %v129
    %131 = vmatmul.f32.gmra.mxu0 %v93
    %v132 = vpop.f32.mrf.mxu0
    %v133 = vadd.f32 0.0, %v132
    %134 = vdwg.mxu0
    %v135 = vadd.f32 %v94, %v130
    %v136 = vadd.f32 %v95, %v133
    %137 = vst.msk [vmem:[#allocation2] sm:$0xff] %vm62, %v135
    %138 = vst.msk [vmem:[#allocation2 + $0x8] sm:$0xff] %vm62, %v136
    // Predicated region
    $region42: #{transformer_forward.32} parent=1 // pred_check
      %p139 = pneg %p45
    $region43: #{transformer_forward.32} parent=1 // pred_check_branch
      %141 = sbr.rel (%p139) target = $region45
    $region44: #{transformer_forward.32} parent=1 // pred_region
      %v142 = vld [vmem:[#allocation2] sm:$0xff]
      %v143 = vld [vmem:[#allocation2 + $0x8] sm:$0xff]
      %v144 = vld [vmem:[%s4] sm:$0x1]
      %v146 = vperm.slane %v144, 0
      %v148 = vadd.f32 %v142, %v146
      %v149 = vadd.f32 %v143, %v146
      %v150 = vld [vmem:[%s5] sm:$0xff]
      %v151 = vld [vmem:[%s5 + $0x8] sm:$0xff]
      %v152 = vadd.f32 %v148, %v150
      %v153 = vadd.f32 %v149, %v151
      %v154 = vsel %vm62, %v152, 0.0
      %155 = vadd.xlane.f32.xlu0 %v154
      %v156 = vpop.xlane.xlu0 %155
      %v157 = vsel %vm62, %v153, 0.0
      %158 = vadd.xlane.f32.xlu0 %v157
      %v159 = vpop.xlane.xlu0 %158
      %v160 = vrcp.pop 32.0
      %v161 = vmul.f32 32.0, %v160
      %v162 = vsub.f32 1.0, %v161
      %v163 = vmul.f32 %v160, %v162
      %v164 = vadd.f32 %v160, %v163
      %vm165 = vweird.f32 %v160
      %v166 = vsel %vm165, %v160, %v164
      %v167 = vmul.f32 %v156, %v166
      %v168 = vmul.f32 %v159, %v166
      %v169 = vsub.f32 %v152, %v167
      %v170 = vsub.f32 %v153, %v168
      %v171 = vmul.f32 %v169, %v169
      %v172 = vmul.f32 %v170, %v170
      %v173 = vsel %vm62, %v171, 0.0
      %174 = vadd.xlane.f32.xlu0 %v173
      %v175 = vpop.xlane.xlu0 %174
      %v176 = vsel %vm62, %v172, 0.0
      %177 = vadd.xlane.f32.xlu0 %v176
      %v178 = vpop.xlane.xlu0 %177
      %v179 = vmul.f32 %v175, %v166
      %v180 = vmul.f32 %v178, %v166
      %v181 = vadd.f32 %v179, 1e-12
      %v182 = vadd.f32 %v180, 1e-12
      %v183 = vrsqrt.pop %v181
      %v184 = vmul.f32 %v183, %v181
      %v185 = vmul.f32 %v184, %v183
      %v186 = vmul.f32 0.5, %v185
      %v187 = vsub.f32 1.5, %v186
      %v188 = vmul.f32 %v183, %v187
      %vm189 = vweird.f32 %v181
      %vm190 = vweird.f32 %v183
      %vm191 = vmor %vm189, %vm190
      %v192 = vsel %vm191, %v183, %v188
      %v193 = vrsqrt.pop %v182
      %v194 = vmul.f32 %v193, %v182
      %v195 = vmul.f32 %v194, %v193
      %v196 = vmul.f32 0.5, %v195
      %v197 = vsub.f32 1.5, %v196
      %v198 = vmul.f32 %v193, %v197
      %vm199 = vweird.f32 %v182
      %vm200 = vweird.f32 %v193
      %vm201 = vmor %vm199, %vm200
      %v202 = vsel %vm201, %v193, %v198
      %v203 = vmul.f32 %v169, %v192
      %v204 = vmul.f32 %v170, %v202
      %v205 = vld [vmem:[%s6] sm:$0x1]
      %v207 = vperm.slane %v205, 0
      %v209 = vmul.f32 %v207, %v203
      %v210 = vmul.f32 %v207, %v204
      %v211 = vld [vmem:[%s7] sm:$0x1]
      %v213 = vperm.slane %v211, 0
      %v215 = vadd.f32 %v209, %v213
      %v216 = vadd.f32 %v210, %v213
      %217 = vst.msk [vmem:[%s8] sm:$0xff] %vm62, %v215
      %218 = vst.msk [vmem:[%s8 + $0x8] sm:$0xff] %vm62, %v216
    $region45: #{transformer_forward.32} parent=1 // pred_fallthru
      _
    // Predicated region
    $region46: #{transformer_forward.32} parent=1 // pred_check
      _
    $region47: #{transformer_forward.32} parent=1 // pred_check_branch
      %220 = sbr.rel (0) target = $region49
    $region48: #{transformer_forward.32} parent=1 // pred_region
      _
    $region49: #{transformer_forward.32} parent=1 // pred_fallthru
      _
    // Predicated region
    $region50: #{transformer_forward.32} parent=1 // pred_check
      _
    $region51: #{transformer_forward.32} parent=1 // pred_check_branch
      %222 = sbr.rel (0) target = $region53
    $region52: #{transformer_forward.32} parent=1 // pred_region
      _
    $region53: #{transformer_forward.32} parent=1 // pred_fallthru
      _
    %223 = vsyncpa [#allocation4], 1

// kernel: transformer_forward.31
$region0: #{transformer_forward.31}
  #allocation0 [shape = 'u32[]', space=smem, size = 0x4, offset = 0x4, fixed_abs, tag = 'smem constant byte address 0x4 - core index']
  #allocation1 [shape = 'u32[72,128]{1,0:T(1,128)}', space=vmem, size = 0x9000, scoped, tag = 'internal scratch']
  #allocation2 [shape = 'f32[16,32]{1,0:T(8,128)}', space=vmem, size = 0x2000, scoped, tag = 'scratch operand']
  %s0 = inlined_call_operand.vmem [shape: f32[16,128], index: 0, kind: input, shape index: {}]
  %s1 = inlined_call_operand.vmem [shape: f32[128,32], index: 1, kind: input, shape index: {}]
  %s2 = inlined_call_operand.vmem [shape: f32[1,32], index: 2, kind: input, shape index: {}, may-alias: {2,5}]
  %s3 = inlined_call_operand.vmem [shape: f32[16,32], index: 3, kind: input, shape index: {}]
  %s4 = inlined_call_operand.vmem [shape: f32[1,32], index: 4, kind: input, shape index: {}]
  %s5 = inlined_call_operand.vmem [shape: f32[1,32], index: 5, kind: input, shape index: {}, may-alias: {2,5}]
  %s6 = inlined_call_operand.vmem [shape: f32[16,32], index: 6, kind: output, shape index: {}]
  %s7 = sld [smem:[#allocation0]]
  $region42: #{transformer_forward.31} parent=0
    _
  %s9 = ssub.s32 1, %s7
  %s10 = scalar_select 0, %s9, %s7
  // Predicated region
  $region2: #{transformer_forward.31} parent=0 // pred_check
    _
  $region3: #{transformer_forward.31} parent=0 // pred_check_branch
    %12 = sbr.rel (0) target = $region5
  $region4: #{transformer_forward.31} parent=0 // pred_region
    _
  $region5: #{transformer_forward.31} parent=0 // pred_fallthru
    _
  // Predicated region
  $region6: #{transformer_forward.31} parent=0 // pred_check
    _
  $region7: #{transformer_forward.31} parent=0 // pred_check_branch
    %14 = sbr.rel (0) target = $region9
  $region8: #{transformer_forward.31} parent=0 // pred_region
    _
  $region9: #{transformer_forward.31} parent=0 // pred_fallthru
    _
  // Predicated region
  $region10: #{transformer_forward.31} parent=0 // pred_check
    _
  $region11: #{transformer_forward.31} parent=0 // pred_check_branch
    %16 = sbr.rel (0) target = $region13
  $region12: #{transformer_forward.31} parent=0 // pred_region
    _
  $region13: #{transformer_forward.31} parent=0 // pred_fallthru
    _
  // Predicated region
  $region14: #{transformer_forward.31} parent=0 // pred_check
    _
  $region15: #{transformer_forward.31} parent=0 // pred_check_branch
    %18 = sbr.rel (0) target = $region17
  $region16: #{transformer_forward.31} parent=0 // pred_region
    _
  $region17: #{transformer_forward.31} parent=0 // pred_fallthru
    _
  // Predicated region
  $region18: #{transformer_forward.31} parent=0 // pred_check
    _
  $region19: #{transformer_forward.31} parent=0 // pred_check_branch
    %20 = sbr.rel (0) target = $region21
  $region20: #{transformer_forward.31} parent=0 // pred_region
    _
  $region21: #{transformer_forward.31} parent=0 // pred_fallthru
    _
  // Predicated region
  $region22: #{transformer_forward.31} parent=0 // pred_check
    _
  $region23: #{transformer_forward.31} parent=0 // pred_check_branch
    %22 = sbr.rel (0) target = $region25
  $region24: #{transformer_forward.31} parent=0 // pred_region
    _
  $region25: #{transformer_forward.31} parent=0 // pred_fallthru
    _
  %p23 = scmp.eq.s32.totalorder 0, 0
  // Predicated region
  $region26: #{transformer_forward.31} parent=0 // pred_check
    %p24 = pneg %p23
  $region27: #{transformer_forward.31} parent=0 // pred_check_branch
    %26 = sbr.rel (%p24) target = $region29
  $region28: #{transformer_forward.31} parent=0 // pred_region
    %vm27 = vcmask 261120
    %28 = vst.msk [vmem:[#allocation2] sm:$0xff] %vm27, 0.0
    %29 = vst.msk [vmem:[#allocation2 + $0x8] sm:$0xff] %vm27, 0.0
  $region29: #{transformer_forward.31} parent=0 // pred_fallthru
    _
  %v30 = vld [vmem:[#allocation2] sm:$0xff]
  %v31 = vld [vmem:[#allocation2 + $0x8] sm:$0xff]
  %v32 = vld [vmem:[%s0] sm:$0xff]
  %v33 = vld [vmem:[%s0 + $0x8] sm:$0xff]
  %v34 = vld [vmem:[%s1] sm:$0xff]
  %v35 = vld [vmem:[%s1 + $0x8] sm:$0xff]
  %v36 = vld [vmem:[%s1 + $0x10] sm:$0xff]
  %v37 = vld [vmem:[%s1 + $0x18] sm:$0xff]
  %v38 = vld [vmem:[%s1 + $0x20] sm:$0xff]
  %v39 = vld [vmem:[%s1 + $0x28] sm:$0xff]
  %v40 = vld [vmem:[%s1 + $0x30] sm:$0xff]
  %v41 = vld [vmem:[%s1 + $0x38] sm:$0xff]
  %v42 = vld [vmem:[%s1 + $0x40] sm:$0xff]
  %v43 = vld [vmem:[%s1 + $0x48] sm:$0xff]
  %v44 = vld [vmem:[%s1 + $0x50] sm:$0xff]
  %v45 = vld [vmem:[%s1 + $0x58] sm:$0xff]
  %v46 = vld [vmem:[%s1 + $0x60] sm:$0xff]
  %v47 = vld [vmem:[%s1 + $0x68] sm:$0xff]
  %v48 = vld [vmem:[%s1 + $0x70] sm:$0xff]
  %v49 = vld [vmem:[%s1 + $0x78] sm:$0xff]
  %50 = vmatpush.msra.mxu0 %v49
  %51 = vmatpush.msra.mxu0 %v48
  %52 = vmatpush.msra.mxu0 %v47
  %53 = vmatpush.msra.mxu0 %v46
  %54 = vmatpush.msra.mxu0 %v45
  %55 = vmatpush.msra.mxu0 %v44
  %56 = vmatpush.msra.mxu0 %v43
  %57 = vmatpush.msra.mxu0 %v42
  %58 = vmatpush.msra.mxu0 %v41
  %59 = vmatpush.msra.mxu0 %v40
  %60 = vmatpush.msra.mxu0 %v39
  %61 = vmatpush.msra.mxu0 %v38
  %62 = vmatpush.msra.mxu0 %v37
  %63 = vmatpush.msra.mxu0 %v36
  %64 = vmatpush.msra.mxu0 %v35
  %65 = vmatpush.msra.mxu0 %v34
  %66 = vmatmul.f32.gmra.mxu0 %v32
  %v67 = vpop.f32.mrf.mxu0
  %v68 = vadd.f32 0.0, %v67
  %69 = vmatmul.f32.gmra.mxu0 %v33
  %v70 = vpop.f32.mrf.mxu0
  %v71 = vadd.f32 0.0, %v70
  %72 = vdwg.mxu0
  %v73 = vadd.f32 %v30, %v68
  %v74 = vadd.f32 %v31, %v71
  %vm75 = vcmask 261120
  %76 = vst.msk [vmem:[#allocation2] sm:$0xff] %vm75, %v73
  %77 = vst.msk [vmem:[#allocation2 + $0x8] sm:$0xff] %vm75, %v74
  // Predicated region
  $region30: #{transformer_forward.31} parent=0 // pred_check
    %p78 = pneg %p23
  $region31: #{transformer_forward.31} parent=0 // pred_check_branch
    %80 = sbr.rel (%p78) target = $region33
  $region32: #{transformer_forward.31} parent=0 // pred_region
    %v81 = vld [vmem:[#allocation2] sm:$0xff]
    %v82 = vld [vmem:[#allocation2 + $0x8] sm:$0xff]
    %v83 = vld [vmem:[%s2] sm:$0x1]
    %v85 = vperm.slane %v83, 0
    %v87 = vadd.f32 %v81, %v85
    %v88 = vadd.f32 %v82, %v85
    %v89 = vld [vmem:[%s3] sm:$0xff]
    %v90 = vld [vmem:[%s3 + $0x8] sm:$0xff]
    %v91 = vadd.f32 %v87, %v89
    %v92 = vadd.f32 %v88, %v90
    %v93 = vsel %vm75, %v91, 0.0
    %94 = vadd.xlane.f32.xlu0 %v93
    %v95 = vpop.xlane.xlu0 %94
    %v96 = vsel %vm75, %v92, 0.0
    %97 = vadd.xlane.f32.xlu0 %v96
    %v98 = vpop.xlane.xlu0 %97
    %v99 = vrcp.pop 32.0
    %v100 = vmul.f32 32.0, %v99
    %v101 = vsub.f32 1.0, %v100
    %v102 = vmul.f32 %v99, %v101
    %v103 = vadd.f32 %v99, %v102
    %vm104 = vweird.f32 %v99
    %v105 = vsel %vm104, %v99, %v103
    %v106 = vmul.f32 %v95, %v105
    %v107 = vmul.f32 %v98, %v105
    %v108 = vsub.f32 %v91, %v106
    %v109 = vsub.f32 %v92, %v107
    %v110 = vmul.f32 %v108, %v108
    %v111 = vmul.f32 %v109, %v109
    %v112 = vsel %vm75, %v110, 0.0
    %113 = vadd.xlane.f32.xlu0 %v112
    %v114 = vpop.xlane.xlu0 %113
    %v115 = vsel %vm75, %v111, 0.0
    %116 = vadd.xlane.f32.xlu0 %v115
    %v117 = vpop.xlane.xlu0 %116
    %v118 = vmul.f32 %v114, %v105
    %v119 = vmul.f32 %v117, %v105
    %v120 = vadd.f32 %v118, 1e-12
    %v121 = vadd.f32 %v119, 1e-12
    %v122 = vrsqrt.pop %v120
    %v123 = vmul.f32 %v122, %v120
    %v124 = vmul.f32 %v123, %v122
    %v125 = vmul.f32 0.5, %v124
    %v126 = vsub.f32 1.5, %v125
    %v127 = vmul.f32 %v122, %v126
    %vm128 = vweird.f32 %v120
    %vm129 = vweird.f32 %v122
    %vm130 = vmor %vm128, %vm129
    %v131 = vsel %vm130, %v122, %v127
    %v132 = vrsqrt.pop %v121
    %v133 = vmul.f32 %v132, %v121
    %v134 = vmul.f32 %v133, %v132
    %v135 = vmul.f32 0.5, %v134
    %v136 = vsub.f32 1.5, %v135
    %v137 = vmul.f32 %v132, %v136
    %vm138 = vweird.f32 %v121
    %vm139 = vweird.f32 %v132
    %vm140 = vmor %vm138, %vm139
    %v141 = vsel %vm140, %v132, %v137
    %v142 = vmul.f32 %v108, %v131
    %v143 = vmul.f32 %v109, %v141
    %v144 = vld [vmem:[%s4] sm:$0x1]
    %v146 = vperm.slane %v144, 0
    %v148 = vmul.f32 %v146, %v142
    %v149 = vmul.f32 %v146, %v143
    %v150 = vld [vmem:[%s5] sm:$0x1]
    %v152 = vperm.slane %v150, 0
    %v154 = vadd.f32 %v148, %v152
    %v155 = vadd.f32 %v149, %v152
    %156 = vst.msk [vmem:[%s6] sm:$0xff] %vm75, %v154
    %157 = vst.msk [vmem:[%s6 + $0x8] sm:$0xff] %vm75, %v155
  $region33: #{transformer_forward.31} parent=0 // pred_fallthru
    _
  // Predicated region
  $region34: #{transformer_forward.31} parent=0 // pred_check
    _
  $region35: #{transformer_forward.31} parent=0 // pred_check_branch
    %159 = sbr.rel (0) target = $region37
  $region36: #{transformer_forward.31} parent=0 // pred_region
    _
  $region37: #{transformer_forward.31} parent=0 // pred_fallthru
    _
  // Predicated region
  $region38: #{transformer_forward.31} parent=0 // pred_check
    _
  $region39: #{transformer_forward.31} parent=0 // pred_check_branch
    %161 = sbr.rel (0) target = $region41
  $region40: #{transformer_forward.31} parent=0 // pred_region
    _
  $region41: #{transformer_forward.31} parent=0 // pred_fallthru
    _

// kernel: transformer_forward.48
$region0: #{transformer_forward.48}
  #allocation0 [shape = 'u32[]', space=smem, size = 0x4, offset = 0x4, fixed_abs, tag = 'smem constant byte address 0x4 - core index']
  #allocation1 [shape = 'u32[72,128]{1,0:T(1,128)}', space=vmem, size = 0x9000, scoped, tag = 'internal scratch']
  #allocation2 [shape = 'f32[16,32]{1,0:T(8,128)}', space=vmem, size = 0x2000, scoped, tag = 'scratch operand']
  %s0 = inlined_call_operand.vmem [shape: f32[16,32], index: 0, kind: input, shape index: {}, may-alias: {0,5}]
  %s1 = inlined_call_operand.vmem [shape: f32[32,128], index: 1, kind: input, shape index: {}]
  %s2 = inlined_call_operand.vmem [shape: f32[1,128], index: 2, kind: input, shape index: {}]
  %s3 = inlined_call_operand.vmem [shape: f32[128,32], index: 3, kind: input, shape index: {}]
  %s4 = inlined_call_operand.vmem [shape: f32[1,32], index: 4, kind: input, shape index: {}, may-alias: {4,7}]
  %s5 = inlined_call_operand.vmem [shape: f32[16,32], index: 5, kind: input, shape index: {}, may-alias: {0,5}]
  %s6 = inlined_call_operand.vmem [shape: f32[1,32], index: 6, kind: input, shape index: {}]
  %s7 = inlined_call_operand.vmem [shape: f32[1,32], index: 7, kind: input, shape index: {}, may-alias: {4,7}]
  %s8 = inlined_call_operand.vmem [shape: f32[16,32], index: 8, kind: output, shape index: {}]
  %s9 = sld [smem:[#allocation0]]
  $region50: #{transformer_forward.48} parent=0
    _
  %s11 = ssub.s32 1, %s9
  %s12 = scalar_select 0, %s11, %s9
  // Predicated region
  $region2: #{transformer_forward.48} parent=0 // pred_check
    _
  $region3: #{transformer_forward.48} parent=0 // pred_check_branch
    %14 = sbr.rel (0) target = $region5
  $region4: #{transformer_forward.48} parent=0 // pred_region
    _
  $region5: #{transformer_forward.48} parent=0 // pred_fallthru
    _
  // Predicated region
  $region6: #{transformer_forward.48} parent=0 // pred_check
    _
  $region7: #{transformer_forward.48} parent=0 // pred_check_branch
    %16 = sbr.rel (0) target = $region9
  $region8: #{transformer_forward.48} parent=0 // pred_region
    _
  $region9: #{transformer_forward.48} parent=0 // pred_fallthru
    _
  // Predicated region
  $region10: #{transformer_forward.48} parent=0 // pred_check
    _
  $region11: #{transformer_forward.48} parent=0 // pred_check_branch
    %18 = sbr.rel (0) target = $region13
  $region12: #{transformer_forward.48} parent=0 // pred_region
    _
  $region13: #{transformer_forward.48} parent=0 // pred_fallthru
    _
  // Predicated region
  $region14: #{transformer_forward.48} parent=0 // pred_check
    _
  $region15: #{transformer_forward.48} parent=0 // pred_check_branch
    %20 = sbr.rel (0) target = $region17
  $region16: #{transformer_forward.48} parent=0 // pred_region
    _
  $region17: #{transformer_forward.48} parent=0 // pred_fallthru
    _
  // Predicated region
  $region18: #{transformer_forward.48} parent=0 // pred_check
    _
  $region19: #{transformer_forward.48} parent=0 // pred_check_branch
    %22 = sbr.rel (0) target = $region21
  $region20: #{transformer_forward.48} parent=0 // pred_region
    _
  $region21: #{transformer_forward.48} parent=0 // pred_fallthru
    _
  // Predicated region
  $region22: #{transformer_forward.48} parent=0 // pred_check
    _
  $region23: #{transformer_forward.48} parent=0 // pred_check_branch
    %24 = sbr.rel (0) target = $region25
  $region24: #{transformer_forward.48} parent=0 // pred_region
    _
  $region25: #{transformer_forward.48} parent=0 // pred_fallthru
    _
  // Predicated region
  $region26: #{transformer_forward.48} parent=0 // pred_check
    _
  $region27: #{transformer_forward.48} parent=0 // pred_check_branch
    %26 = sbr.rel (0) target = $region29
  $region28: #{transformer_forward.48} parent=0 // pred_region
    _
  $region29: #{transformer_forward.48} parent=0 // pred_fallthru
    _
  // Predicated region
  $region30: #{transformer_forward.48} parent=0 // pred_check
    _
  $region31: #{transformer_forward.48} parent=0 // pred_check_branch
    %28 = sbr.rel (0) target = $region33
  $region32: #{transformer_forward.48} parent=0 // pred_region
    _
  $region33: #{transformer_forward.48} parent=0 // pred_fallthru
    _
  %p29 = scmp.eq.s32.totalorder 0, 0
  // Predicated region
  $region34: #{transformer_forward.48} parent=0 // pred_check
    %p30 = pneg %p29
  $region35: #{transformer_forward.48} parent=0 // pred_check_branch
    %32 = sbr.rel (%p30) target = $region37
  $region36: #{transformer_forward.48} parent=0 // pred_region
    %vm33 = vcmask 261120
    %34 = vst.msk [vmem:[#allocation2] sm:$0xff] %vm33, 0.0
    %35 = vst.msk [vmem:[#allocation2 + $0x8] sm:$0xff] %vm33, 0.0
  $region37: #{transformer_forward.48} parent=0 // pred_fallthru
    _
  %v36 = vld [vmem:[%s0] sm:$0xff]
  %v37 = vld [vmem:[%s0 + $0x8] sm:$0xff]
  %v38 = vld [vmem:[%s1] sm:$0xff]
  %v39 = vld [vmem:[%s1 + $0x8] sm:$0xff]
  %v40 = vld [vmem:[%s1 + $0x10] sm:$0xff]
  %v41 = vld [vmem:[%s1 + $0x18] sm:$0xff]
  %v42 = vld [vmem:[%s2] sm:$0x1]
  %v44 = vperm.slane %v42, 0
  %vm46 = vcmask 261120
  %v48 = vsel %vm46, %v36, 0
  %v51 = vsel %vm46, %v37, 0
  %53 = vmatpush.msra.mxu0 0.0
  %54 = vmatpush.msra.mxu0 0.0
  %55 = vmatpush.msra.mxu0 0.0
  %56 = vmatpush.msra.mxu0 0.0
  %57 = vmatpush.msra.mxu0 0.0
  %58 = vmatpush.msra.mxu0 0.0
  %59 = vmatpush.msra.mxu0 0.0
  %60 = vmatpush.msra.mxu0 0.0
  %61 = vmatpush.msra.mxu0 0.0
  %62 = vmatpush.msra.mxu0 0.0
  %63 = vmatpush.msra.mxu0 0.0
  %64 = vmatpush.msra.mxu0 0.0
  %65 = vmatpush.msra.mxu0 %v41
  %66 = vmatpush.msra.mxu0 %v40
  %67 = vmatpush.msra.mxu0 %v39
  %68 = vmatpush.msra.mxu0 %v38
  %69 = vmatmul.f32.gmra.mxu0 %v48
  %v70 = vpop.f32.mrf.mxu0
  %v71 = vadd.f32 %v44, %v70
  %72 = vmatmul.f32.gmra.mxu0 %v51
  %v73 = vpop.f32.mrf.mxu0
  %v74 = vadd.f32 %v44, %v73
  %75 = vdwg.mxu0
  %v76 = vmax.f32 %v71, 0.0
  %v77 = vmax.f32 %v74, 0.0
  %v78 = vld [vmem:[#allocation2] sm:$0xff]
  %v79 = vld [vmem:[#allocation2 + $0x8] sm:$0xff]
  %v80 = vld [vmem:[%s3] sm:$0xff]
  %v81 = vld [vmem:[%s3 + $0x8] sm:$0xff]
  %v82 = vld [vmem:[%s3 + $0x10] sm:$0xff]
  %v83 = vld [vmem:[%s3 + $0x18] sm:$0xff]
  %v84 = vld [vmem:[%s3 + $0x20] sm:$0xff]
  %v85 = vld [vmem:[%s3 + $0x28] sm:$0xff]
  %v86 = vld [vmem:[%s3 + $0x30] sm:$0xff]
  %v87 = vld [vmem:[%s3 + $0x38] sm:$0xff]
  %v88 = vld [vmem:[%s3 + $0x40] sm:$0xff]
  %v89 = vld [vmem:[%s3 + $0x48] sm:$0xff]
  %v90 = vld [vmem:[%s3 + $0x50] sm:$0xff]
  %v91 = vld [vmem:[%s3 + $0x58] sm:$0xff]
  %v92 = vld [vmem:[%s3 + $0x60] sm:$0xff]
  %v93 = vld [vmem:[%s3 + $0x68] sm:$0xff]
  %v94 = vld [vmem:[%s3 + $0x70] sm:$0xff]
  %v95 = vld [vmem:[%s3 + $0x78] sm:$0xff]
  %96 = vmatpush.msra.mxu0 %v95
  %97 = vmatpush.msra.mxu0 %v94
  %98 = vmatpush.msra.mxu0 %v93
  %99 = vmatpush.msra.mxu0 %v92
  %100 = vmatpush.msra.mxu0 %v91
  %101 = vmatpush.msra.mxu0 %v90
  %102 = vmatpush.msra.mxu0 %v89
  %103 = vmatpush.msra.mxu0 %v88
  %104 = vmatpush.msra.mxu0 %v87
  %105 = vmatpush.msra.mxu0 %v86
  %106 = vmatpush.msra.mxu0 %v85
  %107 = vmatpush.msra.mxu0 %v84
  %108 = vmatpush.msra.mxu0 %v83
  %109 = vmatpush.msra.mxu0 %v82
  %110 = vmatpush.msra.mxu0 %v81
  %111 = vmatpush.msra.mxu0 %v80
  %112 = vmatmul.f32.gmra.mxu0 %v76
  %v113 = vpop.f32.mrf.mxu0
  %v114 = vadd.f32 0.0, %v113
  %115 = vmatmul.f32.gmra.mxu0 %v77
  %v116 = vpop.f32.mrf.mxu0
  %v117 = vadd.f32 0.0, %v116
  %118 = vdwg.mxu0
  %v119 = vadd.f32 %v78, %v114
  %v120 = vadd.f32 %v79, %v117
  %121 = vst.msk [vmem:[#allocation2] sm:$0xff] %vm46, %v119
  %122 = vst.msk [vmem:[#allocation2 + $0x8] sm:$0xff] %vm46, %v120
  // Predicated region
  $region38: #{transformer_forward.48} parent=0 // pred_check
    %p123 = pneg %p29
  $region39: #{transformer_forward.48} parent=0 // pred_check_branch
    %125 = sbr.rel (%p123) target = $region41
  $region40: #{transformer_forward.48} parent=0 // pred_region
    %v126 = vld [vmem:[#allocation2] sm:$0xff]
    %v127 = vld [vmem:[#allocation2 + $0x8] sm:$0xff]
    %v128 = vld [vmem:[%s4] sm:$0x1]
    %v130 = vperm.slane %v128, 0
    %v132 = vadd.f32 %v126, %v130
    %v133 = vadd.f32 %v127, %v130
    %v134 = vld [vmem:[%s5] sm:$0xff]
    %v135 = vld [vmem:[%s5 + $0x8] sm:$0xff]
    %v136 = vadd.f32 %v132, %v134
    %v137 = vadd.f32 %v133, %v135
    %v138 = vsel %vm46, %v136, 0.0
    %139 = vadd.xlane.f32.xlu0 %v138
    %v140 = vpop.xlane.xlu0 %139
    %v141 = vsel %vm46, %v137, 0.0
    %142 = vadd.xlane.f32.xlu0 %v141
    %v143 = vpop.xlane.xlu0 %142
    %v144 = vrcp.pop 32.0
    %v145 = vmul.f32 32.0, %v144
    %v146 = vsub.f32 1.0, %v145
    %v147 = vmul.f32 %v144, %v146
    %v148 = vadd.f32 %v144, %v147
    %vm149 = vweird.f32 %v144
    %v150 = vsel %vm149, %v144, %v148
    %v151 = vmul.f32 %v140, %v150
    %v152 = vmul.f32 %v143, %v150
    %v153 = vsub.f32 %v136, %v151
    %v154 = vsub.f32 %v137, %v152
    %v155 = vmul.f32 %v153, %v153
    %v156 = vmul.f32 %v154, %v154
    %v157 = vsel %vm46, %v155, 0.0
    %158 = vadd.xlane.f32.xlu0 %v157
    %v159 = vpop.xlane.xlu0 %158
    %v160 = vsel %vm46, %v156, 0.0
    %161 = vadd.xlane.f32.xlu0 %v160
    %v162 = vpop.xlane.xlu0 %161
    %v163 = vmul.f32 %v159, %v150
    %v164 = vmul.f32 %v162, %v150
    %v165 = vadd.f32 %v163, 1e-12
    %v166 = vadd.f32 %v164, 1e-12
    %v167 = vrsqrt.pop %v165
    %v168 = vmul.f32 %v167, %v165
    %v169 = vmul.f32 %v168, %v167
    %v170 = vmul.f32 0.5, %v169
    %v171 = vsub.f32 1.5, %v170
    %v172 = vmul.f32 %v167, %v171
    %vm173 = vweird.f32 %v165
    %vm174 = vweird.f32 %v167
    %vm175 = vmor %vm173, %vm174
    %v176 = vsel %vm175, %v167, %v172
    %v177 = vrsqrt.pop %v166
    %v178 = vmul.f32 %v177, %v166
    %v179 = vmul.f32 %v178, %v177
    %v180 = vmul.f32 0.5, %v179
    %v181 = vsub.f32 1.5, %v180
    %v182 = vmul.f32 %v177, %v181
    %vm183 = vweird.f32 %v166
    %vm184 = vweird.f32 %v177
    %vm185 = vmor %vm183, %vm184
    %v186 = vsel %vm185, %v177, %v182
    %v187 = vmul.f32 %v153, %v176
    %v188 = vmul.f32 %v154, %v186
    %v189 = vld [vmem:[%s6] sm:$0x1]
    %v191 = vperm.slane %v189, 0
    %v193 = vmul.f32 %v191, %v187
    %v194 = vmul.f32 %v191, %v188
    %v195 = vld [vmem:[%s7] sm:$0x1]
    %v197 = vperm.slane %v195, 0
    %v199 = vadd.f32 %v193, %v197
    %v200 = vadd.f32 %v194, %v197
    %201 = vst.msk [vmem:[%s8] sm:$0xff] %vm46, %v199
    %202 = vst.msk [vmem:[%s8 + $0x8] sm:$0xff] %vm46, %v200
  $region41: #{transformer_forward.48} parent=0 // pred_fallthru
    _
  // Predicated region
  $region42: #{transformer_forward.48} parent=0 // pred_check
    _
  $region43: #{transformer_forward.48} parent=0 // pred_check_branch
    %204 = sbr.rel (0) target = $region45
  $region44: #{transformer_forward.48} parent=0 // pred_region
    _
  $region45: #{transformer_forward.48} parent=0 // pred_fallthru
    _
  // Predicated region
  $region46: #{transformer_forward.48} parent=0 // pred_check
    _
  $region47: #{transformer_forward.48} parent=0 // pred_check_branch
    %206 = sbr.rel (0) target = $region49
  $region48: #{transformer_forward.48} parent=0 // pred_region
    _
  $region49: #{transformer_forward.48} parent=0 // pred_fallthru
    _

</llo_original>
